<compile_context>
chip_gen: v7x
topology: tpu7x:2x2x1
jax: 0.10.0
libtpu: 0.0.40
codegen_flags: <defaults>
</compile_context>

<pallas_src>
import jax
import jax.numpy as jnp
from jax.experimental import pallas as pl
from jax.experimental.pallas import tpu as pltpu


def se_matmul_kernel(g_ref, x_ref, w3_ref, o_ref):
    """One output-channel tile of the gated 1x1 conv (conv2d73).

    Resident across the grid (constant index_map, fetched once):
      g_ref:  (1, C)   f32   channel gate = sigmoid(conv2d72(relu(conv2d71(x224))))
      x_ref:  (C, M)   bf16  main activation x223, channel-major
    Streamed per grid step:
      w3_ref: (tn, C)  bf16  conv2d73 weight rows (torch (C_out, C_in) layout)
      o_ref:  (tn, M)  f32   output tile, channel-major
    """
    # Fold the channel gate into the streamed weight rows (cheaper than scaling
    # x, and x stays untouched / resident):
    #   out[co, m] = sum_c w3[co, c] * g[c] * x[c, m]
    w3_scaled = w3_ref[...] * g_ref[...].astype(jnp.bfloat16)          # (tn, C) bf16
    y = jnp.dot(w3_scaled, x_ref[...], preferred_element_type=jnp.float32)
    o_ref[...] = y.astype(o_ref.dtype)                                  # (tn, M)


def gated_conv(g, x_cm, w3, *, tn=448):
    """out = (w3 * g) @ x_cm, streamed over tn-row tiles of w3."""
    C, M = x_cm.shape
    assert w3.shape == (C, C), w3.shape
    assert g.shape == (1, C), g.shape
    assert C % tn == 0, (C, tn)
    n_tiles = C // tn

    cost = pl.CostEstimate(
        flops=2 * C * C * M + C * C,                       # big matmul + gate fold
        transcendentals=0,
        bytes_accessed=2 * C * C + 2 * C * M + 4 * C * M + 4 * C,
    )

    return pl.pallas_call(
        se_matmul_kernel,
        out_shape=jax.ShapeDtypeStruct((C, M), jnp.float32),
        grid=(n_tiles,),
        in_specs=[
            pl.BlockSpec((1, C), lambda j: (0, 0)),        # g   (resident)
            pl.BlockSpec((C, M), lambda j: (0, 0)),        # x   (resident)
            pl.BlockSpec((tn, C), lambda j: (j, 0)),       # w3 row tile (streamed)
        ],
        out_specs=pl.BlockSpec((tn, M), lambda j: (j, 0)),
        compiler_params=pltpu.CompilerParams(
            # 2 tiles -> one per TensorCore on v7x; no effect (but harmless) on
            # single-core v5e/v6e.
            dimension_semantics=("parallel",),
        ),
        cost_estimate=cost,
    )(g, x_cm, w3)


@jax.jit
def forward(x224, x223, params):
    """Mirror of M.forward. x224: (N, C, 1, 1); x223: (N, C, H, W) in NCHW."""
    w1, b1, w2, b2, w3 = params
    N, C, H, W = x223.shape
    assert N == 1, "kernel written for N=1 (as in the reference module)"

    # Squeeze / gate path (conv2d71 -> ReLU -> conv2d72 -> Sigmoid) on the 1xC
    # pooled vector: ~0.4 MFLOP, computed once here (fuses into a tiny XLA op,
    # per the performance review) and fed to the kernel as a resident vector.
    s = x224.reshape(1, C)
    h = jnp.maximum(s @ w1 + b1, 0.0)                      # (1, Cmid)
    g = jax.nn.sigmoid(h @ w2 + b2)                        # (1, C) f32

    # Main path: channel-major, bf16 operands for the dominant matmul.
    x_cm = x223.reshape(C, H * W).astype(jnp.bfloat16)     # free reshape, then cast
    w3_bf = w3.astype(jnp.bfloat16)

    out_cm = gated_conv(g, x_cm, w3_bf)                    # (C, M) f32

    return out_cm.reshape(N, C, H, W)                      # free reshape back to NCHW


def init_params(key, c_in=896, c_mid=224):
    k1, k2, k3, k4, k5 = jax.random.split(key, 5)
    scale1 = 1.0 / jnp.sqrt(c_in)
    scale2 = 1.0 / jnp.sqrt(c_mid)
    # w1/w2 pre-transposed to (C_in, C_out); w3 kept in torch (C_out, C_in) layout.
    w1 = jax.random.normal(k1, (c_in, c_mid), jnp.float32) * scale1   # conv2d71
    b1 = jax.random.normal(k2, (1, c_mid), jnp.float32) * scale1
    w2 = jax.random.normal(k3, (c_mid, c_in), jnp.float32) * scale2   # conv2d72
    b2 = jax.random.normal(k4, (1, c_in), jnp.float32) * scale2
    w3 = jax.random.normal(k5, (c_in, c_in), jnp.float32) * scale1    # conv2d73 (no bias)
    return w1, b1, w2, b2, w3


def reference_forward(x224, x223, params):
    """Pure-JAX f32 reference (1x1 convs == channel matmuls)."""
    w1, b1, w2, b2, w3 = params
    N, C, H, W = x223.shape
    s = x224.reshape(1, C)
    h = jnp.maximum(s @ w1 + b1, 0.0)
    g = jax.nn.sigmoid(h @ w2 + b2)                 # (1, C)
    x_cm = x223.reshape(C, H * W)
    gated = x_cm * g.reshape(C, 1)                  # channel gate over spatial
    y = w3 @ gated                                  # (C_out, M)
    return y.reshape(N, C, H, W)


if __name__ == "__main__":
    key = jax.random.PRNGKey(0)
    k_x223, k_x224, k_params = jax.random.split(key, 3)

    # Shapes from the module: x223 = [1, 896, 14, 14], x224 = [1, 896, 1, 1]
    x223 = jax.random.normal(k_x223, (1, 896, 14, 14), jnp.float32)
    x224 = jax.random.normal(k_x224, (1, 896, 1, 1), jnp.float32)
    params = init_params(k_params, c_in=896, c_mid=224)

    out = jax.block_until_ready(forward(x224, x223, params))
    ref = jax.block_until_ready(reference_forward(x224, x223, params))

    assert out.shape == (1, 896, 14, 14), out.shape
    # bf16 operands with f32 accumulation over K=896 -> ~1e-2 worst-case abs error.
    max_err = float(jnp.max(jnp.abs(out - ref)))
    assert jnp.allclose(out, ref, atol=3e-2, rtol=3e-2), max_err
    print("KERNEL_OK")
</pallas_src>

<mosaic_0001>
module attributes {stable_mosaic.version = 11 : i64} {
  func.func @se_matmul_kernel(%arg0: i32, %arg1: memref<1x896xf32, #tpu.memory_space<vmem>>, %arg2: memref<896x196xbf16, #tpu.memory_space<vmem>>, %arg3: memref<448x896xbf16, #tpu.memory_space<vmem>>, %arg4: memref<448x196xf32, #tpu.memory_space<vmem>>) attributes {dimension_semantics = [#tpu.dimension_semantics<parallel>], iteration_bounds = array<i64: 2>, scalar_prefetch = 0 : i64, scratch_operands = 0 : i64, tpu.core_type = #tpu.core_type<tc>, window_params = [{pipeline_mode = #tpu.pipeline_mode<synchronous>, transform_indices = @transform_0, window_bounds = array<i64: 1, 896>}, {pipeline_mode = #tpu.pipeline_mode<synchronous>, transform_indices = @transform_1, window_bounds = array<i64: 896, 196>}, {transform_indices = @transform_2, window_bounds = array<i64: 448, 896>}, {transform_indices = @transform_3, window_bounds = array<i64: 448, 196>}]} {
    %c0 = arith.constant 0 : index
    %c0_0 = arith.constant 0 : index
    %0 = vector.load %arg3[%c0, %c0_0] : memref<448x896xbf16, #tpu.memory_space<vmem>>, vector<448x896xbf16>
    %c0_1 = arith.constant 0 : index
    %c0_2 = arith.constant 0 : index
    %1 = vector.load %arg1[%c0_1, %c0_2] : memref<1x896xf32, #tpu.memory_space<vmem>>, vector<1x896xf32>
    %2 = arith.truncf %1 : vector<1x896xf32> to vector<1x896xbf16>
    %3 = vector.broadcast %2 : vector<1x896xbf16> to vector<448x896xbf16>
    %4 = arith.mulf %0, %3 : vector<448x896xbf16>
    %c0_3 = arith.constant 0 : index
    %c0_4 = arith.constant 0 : index
    %5 = vector.load %arg2[%c0_3, %c0_4] : memref<896x196xbf16, #tpu.memory_space<vmem>>, vector<896x196xbf16>
    %cst = arith.constant dense<0.000000e+00> : vector<448x196xf32>
    %6 = tpu.matmul %4, %5, %cst {dimension_numbers = #tpu.dot_dimension_numbers<[1], [0], [0], [1], [0, 0, 1, 1], [], []>} : vector<448x896xbf16>, vector<896x196xbf16>, vector<448x196xf32> -> vector<448x196xf32>
    %c0_5 = arith.constant 0 : index
    %c0_6 = arith.constant 0 : index
    %7 = vector.load %arg4[%c0_5, %c0_6] : memref<448x196xf32, #tpu.memory_space<vmem>>, vector<448x196xf32>
    tpu.vector_store %arg4[%c0_5, %c0_6], %6 {strides = array<i32>} : memref<448x196xf32, #tpu.memory_space<vmem>>, vector<448x196xf32>,
    return
  }
  func.func @transform_0(%arg0: i32) -> (i32, i32) {
    %c0_i32 = arith.constant 0 : i32
    %c0_i32_0 = arith.constant 0 : i32
    %c0_i32_1 = arith.constant 0 : i32
    return %c0_i32, %c0_i32_0 : i32, i32
  }
  func.func @transform_1(%arg0: i32) -> (i32, i32) {
    %c0_i32 = arith.constant 0 : i32
    %c0_i32_0 = arith.constant 0 : i32
    %c0_i32_1 = arith.constant 0 : i32
    return %c0_i32, %c0_i32_0 : i32, i32
  }
  func.func @transform_2(%arg0: i32) -> (i32, i32) {
    %c0_i32 = arith.constant 0 : i32
    %c0_i32_0 = arith.constant 0 : i32
    return %arg0, %c0_i32 : i32, i32
  }
  func.func @transform_3(%arg0: i32) -> (i32, i32) {
    %c0_i32 = arith.constant 0 : i32
    %c0_i32_0 = arith.constant 0 : i32
    return %arg0, %c0_i32 : i32, i32
  }
}

</mosaic_0001>

<llo_original>
// kernel: forward.1
$region0: #{forward.1}
  #allocation0 [shape = 'u32[]', space=smem, size = 0x4, offset = 0x4, fixed_abs, tag = 'smem constant byte address 0x4 - core index']
  #allocation1 [shape = 'u32[144,128]{1,0:T(1,128)}', space=vmem, size = 0x12000, scoped, tag = 'internal scratch']
  %s0 = inlined_call_operand.vmem [shape: f32[1,896], index: 0, kind: input, shape index: {}]
  %s1 = inlined_call_operand.vmem [shape: bf16[896,196], index: 1, kind: input, shape index: {}]
  %s2 = inlined_call_operand.vmem [shape: bf16[896,896], index: 2, kind: input, shape index: {}]
  %s3 = inlined_call_operand.vmem [shape: f32[896,196], index: 3, kind: output, shape index: {}]
  %s4 = sld [smem:[#allocation0]]
  $region45: #{forward.1} parent=0
    _
  %s6 = ssub.s32 1, %s4
  %s7 = scalar_select 0, %s6, %s4
  loop: start=0, step=1, limit=4
  $region2: #{forward.1} parent=0 // loop_pre_header
    _
  $region3: #{forward.1} parent=0 // loop_header
    %s9 = sphi 0, %s13
    %p10 = scmp.ge.s32.totalorder %s9, 4
    %s17 = sphi 0, %s17
    %s19 = sphi 0, %s17
    %s20 = sphi 0, %s19
    %s34 = sphi 0, %s20
    %s38 = sphi 0, %s38
    %s40 = sphi 0, %s38
    %s41 = sphi 0, %s40
    %s55 = sphi 0, %s41
    %s61 = sphi 0, %s63
    %s64 = sphi 0, %s61
    %s65 = sphi 0, %s64
    %s81 = sphi 0, %s65
    %s87 = sphi 0, %s89
    %s90 = sphi 0, %s87
    %s91 = sphi 0, %s90
    %s107 = sphi 0, %s91
  $region4: #{forward.1} parent=0 // loop_header_branch
    %12 = sbr.rel (%p10) target = $region8
  $region5: #{forward.1} parent=0 // loop_body
    %s14 = ssub.s32 %s9, 1
    %s15 = ssub.s32 %s9, 2
    %s16 = sadd.s32 %s9, 1
    %s18 = sadd.s32 %s17, 1
    %p21 = scmp.eq.s32.totalorder %s9, 1
    %p22 = scmp.ne.s32.totalorder %s17, %s19
    %p23 = scmp.eq.s32.totalorder %s9, 0
    %p24 = por %p22, %p23
    %p25 = scmp.ne.s32.totalorder %s17, %s19
    %p26 = scmp.eq.s32.totalorder %s14, 1
    %p27 = por %p25, %p26
    %p28 = scmp.ne.s32.totalorder %s19, %s20
    %p29 = scmp.eq.s32.totalorder %s14, 0
    %p30 = por %p28, %p29
    %p31 = scmp.ne.s32.totalorder %s19, %s20
    %p32 = scmp.eq.s32.totalorder %s15, 1
    %p33 = por %p31, %p32
    %p35 = scmp.ne.s32.totalorder %s20, %s34
    %p36 = scmp.eq.s32.totalorder %s15, 0
    %p37 = por %p35, %p36
    %s39 = sadd.s32 %s38, 1
    %p42 = scmp.eq.s32.totalorder %s9, 1
    %p43 = scmp.ne.s32.totalorder %s38, %s40
    %p44 = scmp.eq.s32.totalorder %s9, 0
    %p45 = por %p43, %p44
    %p46 = scmp.ne.s32.totalorder %s38, %s40
    %p47 = scmp.eq.s32.totalorder %s14, 1
    %p48 = por %p46, %p47
    %p49 = scmp.ne.s32.totalorder %s40, %s41
    %p50 = scmp.eq.s32.totalorder %s14, 0
    %p51 = por %p49, %p50
    %p52 = scmp.ne.s32.totalorder %s40, %s41
    %p53 = scmp.eq.s32.totalorder %s15, 1
    %p54 = por %p52, %p53
    %p56 = scmp.ne.s32.totalorder %s41, %s55
    %p57 = scmp.eq.s32.totalorder %s15, 0
    %p58 = por %p56, %p57
    %s59 = ssub.s32 %s9, %s16
    %p60 = scmp.eq.s32.totalorder %s59, 0
    %s62 = sadd.s32 %s61, 1
    %s63 = scalar_select %p60, %s61, %s62
    %p66 = pneg %p60
    %p67 = scmp.eq.s32.totalorder %s9, 1
    %p68 = por %p66, %p67
    %p69 = scmp.ne.s32.totalorder %s61, %s64
    %p70 = scmp.eq.s32.totalorder %s9, 0
    %p71 = por %p69, %p70
    %p72 = scmp.ne.s32.totalorder %s61, %s64
    %p73 = scmp.eq.s32.totalorder %s14, 1
    %p74 = por %p72, %p73
    %p75 = scmp.ne.s32.totalorder %s64, %s65
    %p76 = scmp.eq.s32.totalorder %s14, 0
    %p77 = por %p75, %p76
    %p78 = scmp.ne.s32.totalorder %s64, %s65
    %p79 = scmp.eq.s32.totalorder %s15, 1
    %p80 = por %p78, %p79
    %p82 = scmp.ne.s32.totalorder %s65, %s81
    %p83 = scmp.eq.s32.totalorder %s15, 0
    %p84 = por %p82, %p83
    %s85 = ssub.s32 %s9, %s16
    %p86 = scmp.eq.s32.totalorder %s85, 0
    %s88 = sadd.s32 %s87, 1
    %s89 = scalar_select %p86, %s87, %s88
    %p92 = pneg %p86
    %p93 = scmp.eq.s32.totalorder %s9, 1
    %p94 = por %p92, %p93
    %p95 = scmp.ne.s32.totalorder %s87, %s90
    %p96 = scmp.eq.s32.totalorder %s9, 0
    %p97 = por %p95, %p96
    %p98 = scmp.ne.s32.totalorder %s87, %s90
    %p99 = scmp.eq.s32.totalorder %s14, 1
    %p100 = por %p98, %p99
    %p101 = scmp.ne.s32.totalorder %s90, %s91
    %p102 = scmp.eq.s32.totalorder %s14, 0
    %p103 = por %p101, %p102
    %p104 = scmp.ne.s32.totalorder %s90, %s91
    %p105 = scmp.eq.s32.totalorder %s15, 1
    %p106 = por %p104, %p105
    %p108 = scmp.ne.s32.totalorder %s91, %s107
    %p109 = scmp.eq.s32.totalorder %s15, 0
    %p110 = por %p108, %p109
    %p111 = scmp.le.s32.totalorder 1, %s9
    %p112 = scmp.lt.s32.totalorder %s9, 3
    %p113 = pnand %p111, %p112
    %p114 = pneg %p113
    // Predicated region
    $region9: #{forward.1} parent=5 // pred_check
      _
    $region10: #{forward.1} parent=5 // pred_check_branch
      %116 = sbr.rel (%p113) target = $region12
    $region11: #{forward.1} parent=5 // pred_region
      %s117 = ssub.s32 %s9, 1
      // Predicated region
      $region13: #{forward.1} parent=11 // pred_check
        %p118 = pneg %p30
      $region14: #{forward.1} parent=11 // pred_check_branch
        %120 = sbr.rel (%p118) target = $region16
      $region15: #{forward.1} parent=11 // pred_region
        _
      $region16: #{forward.1} parent=11 // pred_fallthru
        _
      // Predicated region
      $region17: #{forward.1} parent=11 // pred_check
        %p121 = pneg %p51
      $region18: #{forward.1} parent=11 // pred_check_branch
        %123 = sbr.rel (%p121) target = $region20
      $region19: #{forward.1} parent=11 // pred_region
        _
      $region20: #{forward.1} parent=11 // pred_fallthru
        _
    $region12: #{forward.1} parent=5 // pred_fallthru
      _
    %p124 = scmp.lt.s32.totalorder %s9, 2
    // Predicated region
    $region21: #{forward.1} parent=5 // pred_check
      %p125 = pneg %p124
    $region22: #{forward.1} parent=5 // pred_check_branch
      %127 = sbr.rel (%p125) target = $region24
    $region23: #{forward.1} parent=5 // pred_region
      // Predicated region
      $region25: #{forward.1} parent=23 // pred_check
        %p128 = pneg %p71
      $region26: #{forward.1} parent=23 // pred_check_branch
        %130 = sbr.rel (%p128) target = $region28
      $region27: #{forward.1} parent=23 // pred_region
        %s131 = smul.u32 56, %s9
        %p132 = scmp.lt.s32.totalorder %s131, 111
        %s133 = scalar_select %p132, %s131, 111
        %s134 = smul.addr %s133, 7
        %s135 = smul.addr %s134, 4
        %s136 = scalar_lea.vmem %s2, %s135
        %s137 = smul.u32 56, %s9
      $region28: #{forward.1} parent=23 // pred_fallthru
        _
    $region24: #{forward.1} parent=5 // pred_fallthru
      _
    %p138 = scmp.le.s32.totalorder 1, %s9
    %p139 = scmp.lt.s32.totalorder %s9, 3
    %p140 = pnand %p138, %p139
    %p141 = pneg %p140
    // Predicated region
    $region29: #{forward.1} parent=5 // pred_check
      _
    $region30: #{forward.1} parent=5 // pred_check_branch
      %143 = sbr.rel (%p140) target = $region32
    $region31: #{forward.1} parent=5 // pred_region
      %s144 = ssub.s32 %s9, 1
      %p145 = pneg %p30
      %p146 = pneg %p27
      %p147 = pneg %p51
      %p148 = pneg %p48
      %s149 = smul.u32 56, %s14
      %p150 = scmp.lt.s32.totalorder %s149, 111
      %s151 = scalar_select %p150, %s149, 111
      %s152 = smul.addr %s151, 7
      %s153 = smul.addr %s152, 4
      %s154 = scalar_lea.vmem %s2, %s153
      %p155 = pneg %p77
      %p156 = pneg %p74
      %p157 = pneg %p103
      %p158 = pneg %p100
      %s159 = smul.u32 56, %s14
      %p160 = scmp.lt.s32.totalorder %s159, 111
      %s161 = scalar_select %p160, %s159, 111
      %s162 = smul.addr %s161, 2
      %s163 = smul.addr %s162, 8
      %s164 = scalar_lea.vmem %s3, %s163
      %s165 = smul.u32 56, %s14
      %p166 = scmp.lt.s32.totalorder %s165, 111
      %s167 = scalar_select %p166, %s165, 111
      %s168 = smul.addr %s167, 7
      %s169 = smul.addr %s168, 4
      %s170 = scalar_lea.vmem %s2, %s169
      %s171 = smul.u32 56, %s14
      %s172 = smul.u32 56, %s14
      %p173 = scmp.lt.s32.totalorder %s172, 111
      %s174 = scalar_select %p173, %s172, 111
      %s175 = smul.addr %s174, 2
      %s176 = smul.addr %s175, 8
      %s177 = scalar_lea.vmem %s3, %s176
      %s178 = smul.u32 56, %s14
      %v180 = vld [vmem:[%s170] sm:$0xff]
      %v181 = vld [vmem:[%s170 + $0x8] sm:$0xff]
      %v182 = vld [vmem:[%s170 + $0x10] sm:$0xff]
      %v183 = vld [vmem:[%s170 + $0x18] sm:$0xf]
      %v184 = vld [vmem:[%s170 + $0x1c] sm:$0xff]
      %v185 = vld [vmem:[%s170 + $0x24] sm:$0xff]
      %v186 = vld [vmem:[%s170 + $0x2c] sm:$0xff]
      %v187 = vld [vmem:[%s170 + $0x34] sm:$0xf]
      %v188 = vld [vmem:[%s170 + $0x38] sm:$0xff]
      %v189 = vld [vmem:[%s170 + $0x40] sm:$0xff]
      %v190 = vld [vmem:[%s170 + $0x48] sm:$0xff]
      %v191 = vld [vmem:[%s170 + $0x50] sm:$0xf]
      %v192 = vld [vmem:[%s170 + $0x54] sm:$0xff]
      %v193 = vld [vmem:[%s170 + $0x5c] sm:$0xff]
      %v194 = vld [vmem:[%s170 + $0x64] sm:$0xff]
      %v195 = vld [vmem:[%s170 + $0x6c] sm:$0xf]
      %v196 = vld [vmem:[%s170 + $0x70] sm:$0xff]
      %v197 = vld [vmem:[%s170 + $0x78] sm:$0xff]
      %v198 = vld [vmem:[%s170 + $0x80] sm:$0xff]
      %v199 = vld [vmem:[%s170 + $0x88] sm:$0xf]
      %v200 = vld [vmem:[%s170 + $0x8c] sm:$0xff]
      %v201 = vld [vmem:[%s170 + $0x94] sm:$0xff]
      %v202 = vld [vmem:[%s170 + $0x9c] sm:$0xff]
      %v203 = vld [vmem:[%s170 + $0xa4] sm:$0xf]
      %v204 = vld [vmem:[%s170 + $0xa8] sm:$0xff]
      %v205 = vld [vmem:[%s170 + $0xb0] sm:$0xff]
      %v206 = vld [vmem:[%s170 + $0xb8] sm:$0xff]
      %v207 = vld [vmem:[%s170 + $0xc0] sm:$0xf]
      %v208 = vld [vmem:[%s170 + $0xc4] sm:$0xff]
      %v209 = vld [vmem:[%s170 + $0xcc] sm:$0xff]
      %v210 = vld [vmem:[%s170 + $0xd4] sm:$0xff]
      %v211 = vld [vmem:[%s170 + $0xdc] sm:$0xf]
      %v212 = vld [vmem:[%s170 + $0xe0] sm:$0xff]
      %v213 = vld [vmem:[%s170 + $0xe8] sm:$0xff]
      %v214 = vld [vmem:[%s170 + $0xf0] sm:$0xff]
      %v215 = vld [vmem:[%s170 + $0xf8] sm:$0xf]
      %v216 = vld [vmem:[%s170 + $0xfc] sm:$0xff]
      %v217 = vld [vmem:[%s170 + $0x104] sm:$0xff]
      %v218 = vld [vmem:[%s170 + $0x10c] sm:$0xff]
      %v219 = vld [vmem:[%s170 + $0x114] sm:$0xf]
      %v220 = vld [vmem:[%s170 + $0x118] sm:$0xff]
      %v221 = vld [vmem:[%s170 + $0x120] sm:$0xff]
      %v222 = vld [vmem:[%s170 + $0x128] sm:$0xff]
      %v223 = vld [vmem:[%s170 + $0x130] sm:$0xf]
      %v224 = vld [vmem:[%s170 + $0x134] sm:$0xff]
      %v225 = vld [vmem:[%s170 + $0x13c] sm:$0xff]
      %v226 = vld [vmem:[%s170 + $0x144] sm:$0xff]
      %v227 = vld [vmem:[%s170 + $0x14c] sm:$0xf]
      %v228 = vld [vmem:[%s170 + $0x150] sm:$0xff]
      %v229 = vld [vmem:[%s170 + $0x158] sm:$0xff]
      %v230 = vld [vmem:[%s170 + $0x160] sm:$0xff]
      %v231 = vld [vmem:[%s170 + $0x168] sm:$0xf]
      %v232 = vld [vmem:[%s170 + $0x16c] sm:$0xff]
      %v233 = vld [vmem:[%s170 + $0x174] sm:$0xff]
      %v234 = vld [vmem:[%s170 + $0x17c] sm:$0xff]
      %v235 = vld [vmem:[%s170 + $0x184] sm:$0xf]
      %v236 = vld [vmem:[%s170 + $0x188] sm:$0xff]
      %v237 = vld [vmem:[%s170 + $0x190] sm:$0xff]
      %v238 = vld [vmem:[%s170 + $0x198] sm:$0xff]
      %v239 = vld [vmem:[%s170 + $0x1a0] sm:$0xf]
      %v240 = vld [vmem:[%s170 + $0x1a4] sm:$0xff]
      %v241 = vld [vmem:[%s170 + $0x1ac] sm:$0xff]
      %v242 = vld [vmem:[%s170 + $0x1b4] sm:$0xff]
      %v243 = vld [vmem:[%s170 + $0x1bc] sm:$0xf]
      %v244 = vld [vmem:[%s170 + $0x1c0] sm:$0xff]
      %v245 = vld [vmem:[%s170 + $0x1c8] sm:$0xff]
      %v246 = vld [vmem:[%s170 + $0x1d0] sm:$0xff]
      %v247 = vld [vmem:[%s170 + $0x1d8] sm:$0xf]
      %v248 = vld [vmem:[%s170 + $0x1dc] sm:$0xff]
      %v249 = vld [vmem:[%s170 + $0x1e4] sm:$0xff]
      %v250 = vld [vmem:[%s170 + $0x1ec] sm:$0xff]
      %v251 = vld [vmem:[%s170 + $0x1f4] sm:$0xf]
      %v252 = vld [vmem:[%s170 + $0x1f8] sm:$0xff]
      %v253 = vld [vmem:[%s170 + $0x200] sm:$0xff]
      %v254 = vld [vmem:[%s170 + $0x208] sm:$0xff]
      %v255 = vld [vmem:[%s170 + $0x210] sm:$0xf]
      %v256 = vld [vmem:[%s170 + $0x214] sm:$0xff]
      %v257 = vld [vmem:[%s170 + $0x21c] sm:$0xff]
      %v258 = vld [vmem:[%s170 + $0x224] sm:$0xff]
      %v259 = vld [vmem:[%s170 + $0x22c] sm:$0xf]
      %v260 = vld [vmem:[%s170 + $0x230] sm:$0xff]
      %v261 = vld [vmem:[%s170 + $0x238] sm:$0xff]
      %v262 = vld [vmem:[%s170 + $0x240] sm:$0xff]
      %v263 = vld [vmem:[%s170 + $0x248] sm:$0xf]
      %v264 = vld [vmem:[%s170 + $0x24c] sm:$0xff]
      %v265 = vld [vmem:[%s170 + $0x254] sm:$0xff]
      %v266 = vld [vmem:[%s170 + $0x25c] sm:$0xff]
      %v267 = vld [vmem:[%s170 + $0x264] sm:$0xf]
      %v268 = vld [vmem:[%s170 + $0x268] sm:$0xff]
      %v269 = vld [vmem:[%s170 + $0x270] sm:$0xff]
      %v270 = vld [vmem:[%s170 + $0x278] sm:$0xff]
      %v271 = vld [vmem:[%s170 + $0x280] sm:$0xf]
      %v272 = vld [vmem:[%s170 + $0x284] sm:$0xff]
      %v273 = vld [vmem:[%s170 + $0x28c] sm:$0xff]
      %v274 = vld [vmem:[%s170 + $0x294] sm:$0xff]
      %v275 = vld [vmem:[%s170 + $0x29c] sm:$0xf]
      %v276 = vld [vmem:[%s170 + $0x2a0] sm:$0xff]
      %v277 = vld [vmem:[%s170 + $0x2a8] sm:$0xff]
      %v278 = vld [vmem:[%s170 + $0x2b0] sm:$0xff]
      %v279 = vld [vmem:[%s170 + $0x2b8] sm:$0xf]
      %v280 = vld [vmem:[%s170 + $0x2bc] sm:$0xff]
      %v281 = vld [vmem:[%s170 + $0x2c4] sm:$0xff]
      %v282 = vld [vmem:[%s170 + $0x2cc] sm:$0xff]
      %v283 = vld [vmem:[%s170 + $0x2d4] sm:$0xf]
      %v284 = vld [vmem:[%s170 + $0x2d8] sm:$0xff]
      %v285 = vld [vmem:[%s170 + $0x2e0] sm:$0xff]
      %v286 = vld [vmem:[%s170 + $0x2e8] sm:$0xff]
      %v287 = vld [vmem:[%s170 + $0x2f0] sm:$0xf]
      %v288 = vld [vmem:[%s170 + $0x2f4] sm:$0xff]
      %v289 = vld [vmem:[%s170 + $0x2fc] sm:$0xff]
      %v290 = vld [vmem:[%s170 + $0x304] sm:$0xff]
      %v291 = vld [vmem:[%s170 + $0x30c] sm:$0xf]
      %v292 = vld [vmem:[%s170 + $0x310] sm:$0xff]
      %v293 = vld [vmem:[%s170 + $0x318] sm:$0xff]
      %v294 = vld [vmem:[%s170 + $0x320] sm:$0xff]
      %v295 = vld [vmem:[%s170 + $0x328] sm:$0xf]
      %v296 = vld [vmem:[%s170 + $0x32c] sm:$0xff]
      %v297 = vld [vmem:[%s170 + $0x334] sm:$0xff]
      %v298 = vld [vmem:[%s170 + $0x33c] sm:$0xff]
      %v299 = vld [vmem:[%s170 + $0x344] sm:$0xf]
      %v300 = vld [vmem:[%s170 + $0x348] sm:$0xff]
      %v301 = vld [vmem:[%s170 + $0x350] sm:$0xff]
      %v302 = vld [vmem:[%s170 + $0x358] sm:$0xff]
      %v303 = vld [vmem:[%s170 + $0x360] sm:$0xf]
      %v304 = vld [vmem:[%s170 + $0x364] sm:$0xff]
      %v305 = vld [vmem:[%s170 + $0x36c] sm:$0xff]
      %v306 = vld [vmem:[%s170 + $0x374] sm:$0xff]
      %v307 = vld [vmem:[%s170 + $0x37c] sm:$0xf]
      %v308 = vld [vmem:[%s170 + $0x380] sm:$0xff]
      %v309 = vld [vmem:[%s170 + $0x388] sm:$0xff]
      %v310 = vld [vmem:[%s170 + $0x390] sm:$0xff]
      %v311 = vld [vmem:[%s170 + $0x398] sm:$0xf]
      %v312 = vld [vmem:[%s170 + $0x39c] sm:$0xff]
      %v313 = vld [vmem:[%s170 + $0x3a4] sm:$0xff]
      %v314 = vld [vmem:[%s170 + $0x3ac] sm:$0xff]
      %v315 = vld [vmem:[%s170 + $0x3b4] sm:$0xf]
      %v316 = vld [vmem:[%s170 + $0x3b8] sm:$0xff]
      %v317 = vld [vmem:[%s170 + $0x3c0] sm:$0xff]
      %v318 = vld [vmem:[%s170 + $0x3c8] sm:$0xff]
      %v319 = vld [vmem:[%s170 + $0x3d0] sm:$0xf]
      %v320 = vld [vmem:[%s170 + $0x3d4] sm:$0xff]
      %v321 = vld [vmem:[%s170 + $0x3dc] sm:$0xff]
      %v322 = vld [vmem:[%s170 + $0x3e4] sm:$0xff]
      %v323 = vld [vmem:[%s170 + $0x3ec] sm:$0xf]
      %v324 = vld [vmem:[%s170 + $0x3f0] sm:$0xff]
      %v325 = vld [vmem:[%s170 + $0x3f8] sm:$0xff]
      %v326 = vld [vmem:[%s170 + $0x400] sm:$0xff]
      %v327 = vld [vmem:[%s170 + $0x408] sm:$0xf]
      %v328 = vld [vmem:[%s170 + $0x40c] sm:$0xff]
      %v329 = vld [vmem:[%s170 + $0x414] sm:$0xff]
      %v330 = vld [vmem:[%s170 + $0x41c] sm:$0xff]
      %v331 = vld [vmem:[%s170 + $0x424] sm:$0xf]
      %v332 = vld [vmem:[%s170 + $0x428] sm:$0xff]
      %v333 = vld [vmem:[%s170 + $0x430] sm:$0xff]
      %v334 = vld [vmem:[%s170 + $0x438] sm:$0xff]
      %v335 = vld [vmem:[%s170 + $0x440] sm:$0xf]
      %v336 = vld [vmem:[%s170 + $0x444] sm:$0xff]
      %v337 = vld [vmem:[%s170 + $0x44c] sm:$0xff]
      %v338 = vld [vmem:[%s170 + $0x454] sm:$0xff]
      %v339 = vld [vmem:[%s170 + $0x45c] sm:$0xf]
      %v340 = vld [vmem:[%s170 + $0x460] sm:$0xff]
      %v341 = vld [vmem:[%s170 + $0x468] sm:$0xff]
      %v342 = vld [vmem:[%s170 + $0x470] sm:$0xff]
      %v343 = vld [vmem:[%s170 + $0x478] sm:$0xf]
      %v344 = vld [vmem:[%s170 + $0x47c] sm:$0xff]
      %v345 = vld [vmem:[%s170 + $0x484] sm:$0xff]
      %v346 = vld [vmem:[%s170 + $0x48c] sm:$0xff]
      %v347 = vld [vmem:[%s170 + $0x494] sm:$0xf]
      %v348 = vld [vmem:[%s170 + $0x498] sm:$0xff]
      %v349 = vld [vmem:[%s170 + $0x4a0] sm:$0xff]
      %v350 = vld [vmem:[%s170 + $0x4a8] sm:$0xff]
      %v351 = vld [vmem:[%s170 + $0x4b0] sm:$0xf]
      %v352 = vld [vmem:[%s170 + $0x4b4] sm:$0xff]
      %v353 = vld [vmem:[%s170 + $0x4bc] sm:$0xff]
      %v354 = vld [vmem:[%s170 + $0x4c4] sm:$0xff]
      %v355 = vld [vmem:[%s170 + $0x4cc] sm:$0xf]
      %v356 = vld [vmem:[%s170 + $0x4d0] sm:$0xff]
      %v357 = vld [vmem:[%s170 + $0x4d8] sm:$0xff]
      %v358 = vld [vmem:[%s170 + $0x4e0] sm:$0xff]
      %v359 = vld [vmem:[%s170 + $0x4e8] sm:$0xf]
      %v360 = vld [vmem:[%s170 + $0x4ec] sm:$0xff]
      %v361 = vld [vmem:[%s170 + $0x4f4] sm:$0xff]
      %v362 = vld [vmem:[%s170 + $0x4fc] sm:$0xff]
      %v363 = vld [vmem:[%s170 + $0x504] sm:$0xf]
      %v364 = vld [vmem:[%s170 + $0x508] sm:$0xff]
      %v365 = vld [vmem:[%s170 + $0x510] sm:$0xff]
      %v366 = vld [vmem:[%s170 + $0x518] sm:$0xff]
      %v367 = vld [vmem:[%s170 + $0x520] sm:$0xf]
      %v368 = vld [vmem:[%s170 + $0x524] sm:$0xff]
      %v369 = vld [vmem:[%s170 + $0x52c] sm:$0xff]
      %v370 = vld [vmem:[%s170 + $0x534] sm:$0xff]
      %v371 = vld [vmem:[%s170 + $0x53c] sm:$0xf]
      %v372 = vld [vmem:[%s170 + $0x540] sm:$0xff]
      %v373 = vld [vmem:[%s170 + $0x548] sm:$0xff]
      %v374 = vld [vmem:[%s170 + $0x550] sm:$0xff]
      %v375 = vld [vmem:[%s170 + $0x558] sm:$0xf]
      %v376 = vld [vmem:[%s170 + $0x55c] sm:$0xff]
      %v377 = vld [vmem:[%s170 + $0x564] sm:$0xff]
      %v378 = vld [vmem:[%s170 + $0x56c] sm:$0xff]
      %v379 = vld [vmem:[%s170 + $0x574] sm:$0xf]
      %v380 = vld [vmem:[%s170 + $0x578] sm:$0xff]
      %v381 = vld [vmem:[%s170 + $0x580] sm:$0xff]
      %v382 = vld [vmem:[%s170 + $0x588] sm:$0xff]
      %v383 = vld [vmem:[%s170 + $0x590] sm:$0xf]
      %v384 = vld [vmem:[%s170 + $0x594] sm:$0xff]
      %v385 = vld [vmem:[%s170 + $0x59c] sm:$0xff]
      %v386 = vld [vmem:[%s170 + $0x5a4] sm:$0xff]
      %v387 = vld [vmem:[%s170 + $0x5ac] sm:$0xf]
      %v388 = vld [vmem:[%s170 + $0x5b0] sm:$0xff]
      %v389 = vld [vmem:[%s170 + $0x5b8] sm:$0xff]
      %v390 = vld [vmem:[%s170 + $0x5c0] sm:$0xff]
      %v391 = vld [vmem:[%s170 + $0x5c8] sm:$0xf]
      %v392 = vld [vmem:[%s170 + $0x5cc] sm:$0xff]
      %v393 = vld [vmem:[%s170 + $0x5d4] sm:$0xff]
      %v394 = vld [vmem:[%s170 + $0x5dc] sm:$0xff]
      %v395 = vld [vmem:[%s170 + $0x5e4] sm:$0xf]
      %v396 = vld [vmem:[%s170 + $0x5e8] sm:$0xff]
      %v397 = vld [vmem:[%s170 + $0x5f0] sm:$0xff]
      %v398 = vld [vmem:[%s170 + $0x5f8] sm:$0xff]
      %v399 = vld [vmem:[%s170 + $0x600] sm:$0xf]
      %v400 = vld [vmem:[%s170 + $0x604] sm:$0xff]
      %v401 = vld [vmem:[%s170 + $0x60c] sm:$0xff]
      %v402 = vld [vmem:[%s170 + $0x614] sm:$0xff]
      %v403 = vld [vmem:[%s170 + $0x61c] sm:$0xf]
      %v404 = vld [vmem:[%s0] sm:$0xff]
      %v406 = vlaneseq
      %v407 = vshrl.u32 %v406, 7
      %v408 = vsub.s32 0, %v407
      %v409 = vrot.slane %v404, %v408
      %v410 = vlaneseq
      %v411 = vshrl.u32 %v410, 7
      %v412 = vsub.s32 1, %v411
      %v413 = vrot.slane %v404, %v412
      %v414 = vlaneseq
      %v415 = vshrl.u32 %v414, 7
      %v416 = vsub.s32 2, %v415
      %v417 = vrot.slane %v404, %v416
      %v418 = vlaneseq
      %v419 = vshrl.u32 %v418, 7
      %v420 = vsub.s32 3, %v419
      %v421 = vrot.slane %v404, %v420
      %v422 = vlaneseq
      %v423 = vshrl.u32 %v422, 7
      %v424 = vsub.s32 4, %v423
      %v425 = vrot.slane %v404, %v424
      %v426 = vlaneseq
      %v427 = vshrl.u32 %v426, 7
      %v428 = vsub.s32 5, %v427
      %v429 = vrot.slane %v404, %v428
      %v430 = vlaneseq
      %v431 = vshrl.u32 %v430, 7
      %v432 = vsub.s32 6, %v431
      %v433 = vrot.slane %v404, %v432
      %v441 = vpack.c.bf16 %v409, %v409
      %v442 = vpack.c.bf16 %v413, %v413
      %v443 = vpack.c.bf16 %v417, %v417
      %v444 = vpack.c.bf16 %v421, %v421
      %v445 = vpack.c.bf16 %v425, %v425
      %v446 = vpack.c.bf16 %v429, %v429
      %v447 = vpack.c.bf16 %v433, %v433
      %v449 = vpack.i.b16 %v441, %v441
      %v451 = vlaneseq
      %v452 = vshrl.u32 %v451, 7
      %v453 = vsub.s32 0, %v452
      %v454 = vrot.slane %v449, %v453
      %v456 = vpack.i.b16 %v442, %v442
      %v458 = vlaneseq
      %v459 = vshrl.u32 %v458, 7
      %v460 = vsub.s32 0, %v459
      %v461 = vrot.slane %v456, %v460
      %v463 = vpack.i.b16 %v443, %v443
      %v465 = vlaneseq
      %v466 = vshrl.u32 %v465, 7
      %v467 = vsub.s32 0, %v466
      %v468 = vrot.slane %v463, %v467
      %v470 = vpack.i.b16 %v444, %v444
      %v472 = vlaneseq
      %v473 = vshrl.u32 %v472, 7
      %v474 = vsub.s32 0, %v473
      %v475 = vrot.slane %v470, %v474
      %v477 = vpack.i.b16 %v445, %v445
      %v479 = vlaneseq
      %v480 = vshrl.u32 %v479, 7
      %v481 = vsub.s32 0, %v480
      %v482 = vrot.slane %v477, %v481
      %v484 = vpack.i.b16 %v446, %v446
      %v486 = vlaneseq
      %v487 = vshrl.u32 %v486, 7
      %v488 = vsub.s32 0, %v487
      %v489 = vrot.slane %v484, %v488
      %v491 = vpack.i.b16 %v447, %v447
      %v493 = vlaneseq
      %v494 = vshrl.u32 %v493, 7
      %v495 = vsub.s32 0, %v494
      %v496 = vrot.slane %v491, %v495
      %v504 = vunpack.c.l.b16 %v454
      %v505 = vunpack.c.l.b16 %v461
      %v506 = vunpack.c.l.b16 %v468
      %v507 = vunpack.c.l.b16 %v475
      %v508 = vunpack.c.l.b16 %v482
      %v509 = vunpack.c.l.b16 %v489
      %v510 = vunpack.c.l.b16 %v496
      %v511 = vpack.c.b16 %v505, %v504
      %v512 = vpack.c.b16 %v507, %v506
      %v513 = vpack.c.b16 %v509, %v508
      %v514 = vpack.c.b16 %v510, %v510
      %v519 = vmul.bf16 %v180, %v511
      %v520 = vmul.bf16 %v181, %v512
      %v521 = vmul.bf16 %v182, %v513
      %v522 = vmul.bf16 %v183, %v514
      %v523 = vmul.bf16 %v184, %v511
      %v524 = vmul.bf16 %v185, %v512
      %v525 = vmul.bf16 %v186, %v513
      %v526 = vmul.bf16 %v187, %v514
      %v527 = vmul.bf16 %v188, %v511
      %v528 = vmul.bf16 %v189, %v512
      %v529 = vmul.bf16 %v190, %v513
      %v530 = vmul.bf16 %v191, %v514
      %v531 = vmul.bf16 %v192, %v511
      %v532 = vmul.bf16 %v193, %v512
      %v533 = vmul.bf16 %v194, %v513
      %v534 = vmul.bf16 %v195, %v514
      %v535 = vmul.bf16 %v196, %v511
      %v536 = vmul.bf16 %v197, %v512
      %v537 = vmul.bf16 %v198, %v513
      %v538 = vmul.bf16 %v199, %v514
      %v539 = vmul.bf16 %v200, %v511
      %v540 = vmul.bf16 %v201, %v512
      %v541 = vmul.bf16 %v202, %v513
      %v542 = vmul.bf16 %v203, %v514
      %v543 = vmul.bf16 %v204, %v511
      %v544 = vmul.bf16 %v205, %v512
      %v545 = vmul.bf16 %v206, %v513
      %v546 = vmul.bf16 %v207, %v514
      %v547 = vmul.bf16 %v208, %v511
      %v548 = vmul.bf16 %v209, %v512
      %v549 = vmul.bf16 %v210, %v513
      %v550 = vmul.bf16 %v211, %v514
      %v551 = vmul.bf16 %v212, %v511
      %v552 = vmul.bf16 %v213, %v512
      %v553 = vmul.bf16 %v214, %v513
      %v554 = vmul.bf16 %v215, %v514
      %v555 = vmul.bf16 %v216, %v511
      %v556 = vmul.bf16 %v217, %v512
      %v557 = vmul.bf16 %v218, %v513
      %v558 = vmul.bf16 %v219, %v514
      %v559 = vmul.bf16 %v220, %v511
      %v560 = vmul.bf16 %v221, %v512
      %v561 = vmul.bf16 %v222, %v513
      %v562 = vmul.bf16 %v223, %v514
      %v563 = vmul.bf16 %v224, %v511
      %v564 = vmul.bf16 %v225, %v512
      %v565 = vmul.bf16 %v226, %v513
      %v566 = vmul.bf16 %v227, %v514
      %v567 = vmul.bf16 %v228, %v511
      %v568 = vmul.bf16 %v229, %v512
      %v569 = vmul.bf16 %v230, %v513
      %v570 = vmul.bf16 %v231, %v514
      %v571 = vmul.bf16 %v232, %v511
      %v572 = vmul.bf16 %v233, %v512
      %v573 = vmul.bf16 %v234, %v513
      %v574 = vmul.bf16 %v235, %v514
      %v575 = vmul.bf16 %v236, %v511
      %v576 = vmul.bf16 %v237, %v512
      %v577 = vmul.bf16 %v238, %v513
      %v578 = vmul.bf16 %v239, %v514
      %v579 = vmul.bf16 %v240, %v511
      %v580 = vmul.bf16 %v241, %v512
      %v581 = vmul.bf16 %v242, %v513
      %v582 = vmul.bf16 %v243, %v514
      %v583 = vmul.bf16 %v244, %v511
      %v584 = vmul.bf16 %v245, %v512
      %v585 = vmul.bf16 %v246, %v513
      %v586 = vmul.bf16 %v247, %v514
      %v587 = vmul.bf16 %v248, %v511
      %v588 = vmul.bf16 %v249, %v512
      %v589 = vmul.bf16 %v250, %v513
      %v590 = vmul.bf16 %v251, %v514
      %v591 = vmul.bf16 %v252, %v511
      %v592 = vmul.bf16 %v253, %v512
      %v593 = vmul.bf16 %v254, %v513
      %v594 = vmul.bf16 %v255, %v514
      %v595 = vmul.bf16 %v256, %v511
      %v596 = vmul.bf16 %v257, %v512
      %v597 = vmul.bf16 %v258, %v513
      %v598 = vmul.bf16 %v259, %v514
      %v599 = vmul.bf16 %v260, %v511
      %v600 = vmul.bf16 %v261, %v512
      %v601 = vmul.bf16 %v262, %v513
      %v602 = vmul.bf16 %v263, %v514
      %v603 = vmul.bf16 %v264, %v511
      %v604 = vmul.bf16 %v265, %v512
      %v605 = vmul.bf16 %v266, %v513
      %v606 = vmul.bf16 %v267, %v514
      %v607 = vmul.bf16 %v268, %v511
      %v608 = vmul.bf16 %v269, %v512
      %v609 = vmul.bf16 %v270, %v513
      %v610 = vmul.bf16 %v271, %v514
      %v611 = vmul.bf16 %v272, %v511
      %v612 = vmul.bf16 %v273, %v512
      %v613 = vmul.bf16 %v274, %v513
      %v614 = vmul.bf16 %v275, %v514
      %v615 = vmul.bf16 %v276, %v511
      %v616 = vmul.bf16 %v277, %v512
      %v617 = vmul.bf16 %v278, %v513
      %v618 = vmul.bf16 %v279, %v514
      %v619 = vmul.bf16 %v280, %v511
      %v620 = vmul.bf16 %v281, %v512
      %v621 = vmul.bf16 %v282, %v513
      %v622 = vmul.bf16 %v283, %v514
      %v623 = vmul.bf16 %v284, %v511
      %v624 = vmul.bf16 %v285, %v512
      %v625 = vmul.bf16 %v286, %v513
      %v626 = vmul.bf16 %v287, %v514
      %v627 = vmul.bf16 %v288, %v511
      %v628 = vmul.bf16 %v289, %v512
      %v629 = vmul.bf16 %v290, %v513
      %v630 = vmul.bf16 %v291, %v514
      %v631 = vmul.bf16 %v292, %v511
      %v632 = vmul.bf16 %v293, %v512
      %v633 = vmul.bf16 %v294, %v513
      %v634 = vmul.bf16 %v295, %v514
      %v635 = vmul.bf16 %v296, %v511
      %v636 = vmul.bf16 %v297, %v512
      %v637 = vmul.bf16 %v298, %v513
      %v638 = vmul.bf16 %v299, %v514
      %v639 = vmul.bf16 %v300, %v511
      %v640 = vmul.bf16 %v301, %v512
      %v641 = vmul.bf16 %v302, %v513
      %v642 = vmul.bf16 %v303, %v514
      %v643 = vmul.bf16 %v304, %v511
      %v644 = vmul.bf16 %v305, %v512
      %v645 = vmul.bf16 %v306, %v513
      %v646 = vmul.bf16 %v307, %v514
      %v647 = vmul.bf16 %v308, %v511
      %v648 = vmul.bf16 %v309, %v512
      %v649 = vmul.bf16 %v310, %v513
      %v650 = vmul.bf16 %v311, %v514
      %v651 = vmul.bf16 %v312, %v511
      %v652 = vmul.bf16 %v313, %v512
      %v653 = vmul.bf16 %v314, %v513
      %v654 = vmul.bf16 %v315, %v514
      %v655 = vmul.bf16 %v316, %v511
      %v656 = vmul.bf16 %v317, %v512
      %v657 = vmul.bf16 %v318, %v513
      %v658 = vmul.bf16 %v319, %v514
      %v659 = vmul.bf16 %v320, %v511
      %v660 = vmul.bf16 %v321, %v512
      %v661 = vmul.bf16 %v322, %v513
      %v662 = vmul.bf16 %v323, %v514
      %v663 = vmul.bf16 %v324, %v511
      %v664 = vmul.bf16 %v325, %v512
      %v665 = vmul.bf16 %v326, %v513
      %v666 = vmul.bf16 %v327, %v514
      %v667 = vmul.bf16 %v328, %v511
      %v668 = vmul.bf16 %v329, %v512
      %v669 = vmul.bf16 %v330, %v513
      %v670 = vmul.bf16 %v331, %v514
      %v671 = vmul.bf16 %v332, %v511
      %v672 = vmul.bf16 %v333, %v512
      %v673 = vmul.bf16 %v334, %v513
      %v674 = vmul.bf16 %v335, %v514
      %v675 = vmul.bf16 %v336, %v511
      %v676 = vmul.bf16 %v337, %v512
      %v677 = vmul.bf16 %v338, %v513
      %v678 = vmul.bf16 %v339, %v514
      %v679 = vmul.bf16 %v340, %v511
      %v680 = vmul.bf16 %v341, %v512
      %v681 = vmul.bf16 %v342, %v513
      %v682 = vmul.bf16 %v343, %v514
      %v683 = vmul.bf16 %v344, %v511
      %v684 = vmul.bf16 %v345, %v512
      %v685 = vmul.bf16 %v346, %v513
      %v686 = vmul.bf16 %v347, %v514
      %v687 = vmul.bf16 %v348, %v511
      %v688 = vmul.bf16 %v349, %v512
      %v689 = vmul.bf16 %v350, %v513
      %v690 = vmul.bf16 %v351, %v514
      %v691 = vmul.bf16 %v352, %v511
      %v692 = vmul.bf16 %v353, %v512
      %v693 = vmul.bf16 %v354, %v513
      %v694 = vmul.bf16 %v355, %v514
      %v695 = vmul.bf16 %v356, %v511
      %v696 = vmul.bf16 %v357, %v512
      %v697 = vmul.bf16 %v358, %v513
      %v698 = vmul.bf16 %v359, %v514
      %v699 = vmul.bf16 %v360, %v511
      %v700 = vmul.bf16 %v361, %v512
      %v701 = vmul.bf16 %v362, %v513
      %v702 = vmul.bf16 %v363, %v514
      %v703 = vmul.bf16 %v364, %v511
      %v704 = vmul.bf16 %v365, %v512
      %v705 = vmul.bf16 %v366, %v513
      %v706 = vmul.bf16 %v367, %v514
      %v707 = vmul.bf16 %v368, %v511
      %v708 = vmul.bf16 %v369, %v512
      %v709 = vmul.bf16 %v370, %v513
      %v710 = vmul.bf16 %v371, %v514
      %v711 = vmul.bf16 %v372, %v511
      %v712 = vmul.bf16 %v373, %v512
      %v713 = vmul.bf16 %v374, %v513
      %v714 = vmul.bf16 %v375, %v514
      %v715 = vmul.bf16 %v376, %v511
      %v716 = vmul.bf16 %v377, %v512
      %v717 = vmul.bf16 %v378, %v513
      %v718 = vmul.bf16 %v379, %v514
      %v719 = vmul.bf16 %v380, %v511
      %v720 = vmul.bf16 %v381, %v512
      %v721 = vmul.bf16 %v382, %v513
      %v722 = vmul.bf16 %v383, %v514
      %v723 = vmul.bf16 %v384, %v511
      %v724 = vmul.bf16 %v385, %v512
      %v725 = vmul.bf16 %v386, %v513
      %v726 = vmul.bf16 %v387, %v514
      %v727 = vmul.bf16 %v388, %v511
      %v728 = vmul.bf16 %v389, %v512
      %v729 = vmul.bf16 %v390, %v513
      %v730 = vmul.bf16 %v391, %v514
      %v731 = vmul.bf16 %v392, %v511
      %v732 = vmul.bf16 %v393, %v512
      %v733 = vmul.bf16 %v394, %v513
      %v734 = vmul.bf16 %v395, %v514
      %v735 = vmul.bf16 %v396, %v511
      %v736 = vmul.bf16 %v397, %v512
      %v737 = vmul.bf16 %v398, %v513
      %v738 = vmul.bf16 %v399, %v514
      %v739 = vmul.bf16 %v400, %v511
      %v740 = vmul.bf16 %v401, %v512
      %v741 = vmul.bf16 %v402, %v513
      %v742 = vmul.bf16 %v403, %v514
      %v743 = vld [vmem:[%s1] sm:$0xff]
      %v744 = vld [vmem:[%s1 + $0x8] sm:$0xff]
      %v745 = vld [vmem:[%s1 + $0x10] sm:$0xff]
      %v746 = vld [vmem:[%s1 + $0x18] sm:$0xff]
      %v747 = vld [vmem:[%s1 + $0x20] sm:$0xff]
      %v748 = vld [vmem:[%s1 + $0x28] sm:$0xff]
      %v749 = vld [vmem:[%s1 + $0x30] sm:$0xff]
      %v750 = vld [vmem:[%s1 + $0x38] sm:$0xff]
      %v751 = vld [vmem:[%s1 + $0x40] sm:$0xff]
      %v752 = vld [vmem:[%s1 + $0x48] sm:$0xff]
      %v753 = vld [vmem:[%s1 + $0x50] sm:$0xff]
      %v754 = vld [vmem:[%s1 + $0x58] sm:$0xff]
      %v755 = vld [vmem:[%s1 + $0x60] sm:$0xff]
      %v756 = vld [vmem:[%s1 + $0x68] sm:$0xff]
      %v757 = vld [vmem:[%s1 + $0x70] sm:$0xff]
      %v758 = vld [vmem:[%s1 + $0x78] sm:$0xff]
      %v759 = vld [vmem:[%s1 + $0x80] sm:$0xff]
      %v760 = vld [vmem:[%s1 + $0x88] sm:$0xff]
      %v761 = vld [vmem:[%s1 + $0x90] sm:$0xff]
      %v762 = vld [vmem:[%s1 + $0x98] sm:$0xff]
      %v763 = vld [vmem:[%s1 + $0xa0] sm:$0xff]
      %v764 = vld [vmem:[%s1 + $0xa8] sm:$0xff]
      %v765 = vld [vmem:[%s1 + $0xb0] sm:$0xff]
      %v766 = vld [vmem:[%s1 + $0xb8] sm:$0xff]
      %v767 = vld [vmem:[%s1 + $0xc0] sm:$0xff]
      %v768 = vld [vmem:[%s1 + $0xc8] sm:$0xff]
      %v769 = vld [vmem:[%s1 + $0xd0] sm:$0xff]
      %v770 = vld [vmem:[%s1 + $0xd8] sm:$0xff]
      %v771 = vld [vmem:[%s1 + $0xe0] sm:$0xff]
      %v772 = vld [vmem:[%s1 + $0xe8] sm:$0xff]
      %v773 = vld [vmem:[%s1 + $0xf0] sm:$0xff]
      %v774 = vld [vmem:[%s1 + $0xf8] sm:$0xff]
      %v775 = vld [vmem:[%s1 + $0x100] sm:$0xff]
      %v776 = vld [vmem:[%s1 + $0x108] sm:$0xff]
      %v777 = vld [vmem:[%s1 + $0x110] sm:$0xff]
      %v778 = vld [vmem:[%s1 + $0x118] sm:$0xff]
      %v779 = vld [vmem:[%s1 + $0x120] sm:$0xff]
      %v780 = vld [vmem:[%s1 + $0x128] sm:$0xff]
      %v781 = vld [vmem:[%s1 + $0x130] sm:$0xff]
      %v782 = vld [vmem:[%s1 + $0x138] sm:$0xff]
      %v783 = vld [vmem:[%s1 + $0x140] sm:$0xff]
      %v784 = vld [vmem:[%s1 + $0x148] sm:$0xff]
      %v785 = vld [vmem:[%s1 + $0x150] sm:$0xff]
      %v786 = vld [vmem:[%s1 + $0x158] sm:$0xff]
      %v787 = vld [vmem:[%s1 + $0x160] sm:$0xff]
      %v788 = vld [vmem:[%s1 + $0x168] sm:$0xff]
      %v789 = vld [vmem:[%s1 + $0x170] sm:$0xff]
      %v790 = vld [vmem:[%s1 + $0x178] sm:$0xff]
      %v791 = vld [vmem:[%s1 + $0x180] sm:$0xff]
      %v792 = vld [vmem:[%s1 + $0x188] sm:$0xff]
      %v793 = vld [vmem:[%s1 + $0x190] sm:$0xff]
      %v794 = vld [vmem:[%s1 + $0x198] sm:$0xff]
      %v795 = vld [vmem:[%s1 + $0x1a0] sm:$0xff]
      %v796 = vld [vmem:[%s1 + $0x1a8] sm:$0xff]
      %v797 = vld [vmem:[%s1 + $0x1b0] sm:$0xff]
      %v798 = vld [vmem:[%s1 + $0x1b8] sm:$0xff]
      %v799 = vld [vmem:[%s1 + $0x1c0] sm:$0xff]
      %v800 = vld [vmem:[%s1 + $0x1c8] sm:$0xff]
      %v801 = vld [vmem:[%s1 + $0x1d0] sm:$0xff]
      %v802 = vld [vmem:[%s1 + $0x1d8] sm:$0xff]
      %v803 = vld [vmem:[%s1 + $0x1e0] sm:$0xff]
      %v804 = vld [vmem:[%s1 + $0x1e8] sm:$0xff]
      %v805 = vld [vmem:[%s1 + $0x1f0] sm:$0xff]
      %v806 = vld [vmem:[%s1 + $0x1f8] sm:$0xff]
      %v807 = vld [vmem:[%s1 + $0x200] sm:$0xff]
      %v808 = vld [vmem:[%s1 + $0x208] sm:$0xff]
      %v809 = vld [vmem:[%s1 + $0x210] sm:$0xff]
      %v810 = vld [vmem:[%s1 + $0x218] sm:$0xff]
      %v811 = vld [vmem:[%s1 + $0x220] sm:$0xff]
      %v812 = vld [vmem:[%s1 + $0x228] sm:$0xff]
      %v813 = vld [vmem:[%s1 + $0x230] sm:$0xff]
      %v814 = vld [vmem:[%s1 + $0x238] sm:$0xff]
      %v815 = vld [vmem:[%s1 + $0x240] sm:$0xff]
      %v816 = vld [vmem:[%s1 + $0x248] sm:$0xff]
      %v817 = vld [vmem:[%s1 + $0x250] sm:$0xff]
      %v818 = vld [vmem:[%s1 + $0x258] sm:$0xff]
      %v819 = vld [vmem:[%s1 + $0x260] sm:$0xff]
      %v820 = vld [vmem:[%s1 + $0x268] sm:$0xff]
      %v821 = vld [vmem:[%s1 + $0x270] sm:$0xff]
      %v822 = vld [vmem:[%s1 + $0x278] sm:$0xff]
      %v823 = vld [vmem:[%s1 + $0x280] sm:$0xff]
      %v824 = vld [vmem:[%s1 + $0x288] sm:$0xff]
      %v825 = vld [vmem:[%s1 + $0x290] sm:$0xff]
      %v826 = vld [vmem:[%s1 + $0x298] sm:$0xff]
      %v827 = vld [vmem:[%s1 + $0x2a0] sm:$0xff]
      %v828 = vld [vmem:[%s1 + $0x2a8] sm:$0xff]
      %v829 = vld [vmem:[%s1 + $0x2b0] sm:$0xff]
      %v830 = vld [vmem:[%s1 + $0x2b8] sm:$0xff]
      %v831 = vld [vmem:[%s1 + $0x2c0] sm:$0xff]
      %v832 = vld [vmem:[%s1 + $0x2c8] sm:$0xff]
      %v833 = vld [vmem:[%s1 + $0x2d0] sm:$0xff]
      %v834 = vld [vmem:[%s1 + $0x2d8] sm:$0xff]
      %v835 = vld [vmem:[%s1 + $0x2e0] sm:$0xff]
      %v836 = vld [vmem:[%s1 + $0x2e8] sm:$0xff]
      %v837 = vld [vmem:[%s1 + $0x2f0] sm:$0xff]
      %v838 = vld [vmem:[%s1 + $0x2f8] sm:$0xff]
      %v839 = vld [vmem:[%s1 + $0x300] sm:$0xff]
      %v840 = vld [vmem:[%s1 + $0x308] sm:$0xff]
      %v841 = vld [vmem:[%s1 + $0x310] sm:$0xff]
      %v842 = vld [vmem:[%s1 + $0x318] sm:$0xff]
      %v843 = vld [vmem:[%s1 + $0x320] sm:$0xff]
      %v844 = vld [vmem:[%s1 + $0x328] sm:$0xff]
      %v845 = vld [vmem:[%s1 + $0x330] sm:$0xff]
      %v846 = vld [vmem:[%s1 + $0x338] sm:$0xff]
      %v847 = vld [vmem:[%s1 + $0x340] sm:$0xff]
      %v848 = vld [vmem:[%s1 + $0x348] sm:$0xff]
      %v849 = vld [vmem:[%s1 + $0x350] sm:$0xff]
      %v850 = vld [vmem:[%s1 + $0x358] sm:$0xff]
      %v851 = vld [vmem:[%s1 + $0x360] sm:$0xff]
      %v852 = vld [vmem:[%s1 + $0x368] sm:$0xff]
      %v853 = vld [vmem:[%s1 + $0x370] sm:$0xff]
      %v854 = vld [vmem:[%s1 + $0x378] sm:$0xff]
      %v1079 = vunpack.c.l.b16 %v519
      %v1080 = vunpack.c.h.b16 %v519
      %v1081 = vunpack.c.l.b16 %v520
      %v1082 = vunpack.c.h.b16 %v520
      %v1083 = vunpack.c.l.b16 %v521
      %v1084 = vunpack.c.h.b16 %v521
      %v1085 = vunpack.c.l.b16 %v522
      %v1086 = vunpack.c.l.b16 %v523
      %v1087 = vunpack.c.h.b16 %v523
      %v1088 = vunpack.c.l.b16 %v524
      %v1089 = vunpack.c.h.b16 %v524
      %v1090 = vunpack.c.l.b16 %v525
      %v1091 = vunpack.c.h.b16 %v525
      %v1092 = vunpack.c.l.b16 %v526
      %v1093 = vunpack.c.l.b16 %v527
      %v1094 = vunpack.c.h.b16 %v527
      %v1095 = vunpack.c.l.b16 %v528
      %v1096 = vunpack.c.h.b16 %v528
      %v1097 = vunpack.c.l.b16 %v529
      %v1098 = vunpack.c.h.b16 %v529
      %v1099 = vunpack.c.l.b16 %v530
      %v1100 = vunpack.c.l.b16 %v531
      %v1101 = vunpack.c.h.b16 %v531
      %v1102 = vunpack.c.l.b16 %v532
      %v1103 = vunpack.c.h.b16 %v532
      %v1104 = vunpack.c.l.b16 %v533
      %v1105 = vunpack.c.h.b16 %v533
      %v1106 = vunpack.c.l.b16 %v534
      %v1107 = vunpack.c.l.b16 %v535
      %v1108 = vunpack.c.h.b16 %v535
      %v1109 = vunpack.c.l.b16 %v536
      %v1110 = vunpack.c.h.b16 %v536
      %v1111 = vunpack.c.l.b16 %v537
      %v1112 = vunpack.c.h.b16 %v537
      %v1113 = vunpack.c.l.b16 %v538
      %v1114 = vunpack.c.l.b16 %v539
      %v1115 = vunpack.c.h.b16 %v539
      %v1116 = vunpack.c.l.b16 %v540
      %v1117 = vunpack.c.h.b16 %v540
      %v1118 = vunpack.c.l.b16 %v541
      %v1119 = vunpack.c.h.b16 %v541
      %v1120 = vunpack.c.l.b16 %v542
      %v1121 = vunpack.c.l.b16 %v543
      %v1122 = vunpack.c.h.b16 %v543
      %v1123 = vunpack.c.l.b16 %v544
      %v1124 = vunpack.c.h.b16 %v544
      %v1125 = vunpack.c.l.b16 %v545
      %v1126 = vunpack.c.h.b16 %v545
      %v1127 = vunpack.c.l.b16 %v546
      %v1128 = vunpack.c.l.b16 %v547
      %v1129 = vunpack.c.h.b16 %v547
      %v1130 = vunpack.c.l.b16 %v548
      %v1131 = vunpack.c.h.b16 %v548
      %v1132 = vunpack.c.l.b16 %v549
      %v1133 = vunpack.c.h.b16 %v549
      %v1134 = vunpack.c.l.b16 %v550
      %v1135 = vunpack.c.l.b16 %v551
      %v1136 = vunpack.c.h.b16 %v551
      %v1137 = vunpack.c.l.b16 %v552
      %v1138 = vunpack.c.h.b16 %v552
      %v1139 = vunpack.c.l.b16 %v553
      %v1140 = vunpack.c.h.b16 %v553
      %v1141 = vunpack.c.l.b16 %v554
      %v1142 = vunpack.c.l.b16 %v555
      %v1143 = vunpack.c.h.b16 %v555
      %v1144 = vunpack.c.l.b16 %v556
      %v1145 = vunpack.c.h.b16 %v556
      %v1146 = vunpack.c.l.b16 %v557
      %v1147 = vunpack.c.h.b16 %v557
      %v1148 = vunpack.c.l.b16 %v558
      %v1149 = vunpack.c.l.b16 %v559
      %v1150 = vunpack.c.h.b16 %v559
      %v1151 = vunpack.c.l.b16 %v560
      %v1152 = vunpack.c.h.b16 %v560
      %v1153 = vunpack.c.l.b16 %v561
      %v1154 = vunpack.c.h.b16 %v561
      %v1155 = vunpack.c.l.b16 %v562
      %v1156 = vunpack.c.l.b16 %v563
      %v1157 = vunpack.c.h.b16 %v563
      %v1158 = vunpack.c.l.b16 %v564
      %v1159 = vunpack.c.h.b16 %v564
      %v1160 = vunpack.c.l.b16 %v565
      %v1161 = vunpack.c.h.b16 %v565
      %v1162 = vunpack.c.l.b16 %v566
      %v1163 = vunpack.c.l.b16 %v567
      %v1164 = vunpack.c.h.b16 %v567
      %v1165 = vunpack.c.l.b16 %v568
      %v1166 = vunpack.c.h.b16 %v568
      %v1167 = vunpack.c.l.b16 %v569
      %v1168 = vunpack.c.h.b16 %v569
      %v1169 = vunpack.c.l.b16 %v570
      %v1170 = vunpack.c.l.b16 %v571
      %v1171 = vunpack.c.h.b16 %v571
      %v1172 = vunpack.c.l.b16 %v572
      %v1173 = vunpack.c.h.b16 %v572
      %v1174 = vunpack.c.l.b16 %v573
      %v1175 = vunpack.c.h.b16 %v573
      %v1176 = vunpack.c.l.b16 %v574
      %v1177 = vunpack.c.l.b16 %v575
      %v1178 = vunpack.c.h.b16 %v575
      %v1179 = vunpack.c.l.b16 %v576
      %v1180 = vunpack.c.h.b16 %v576
      %v1181 = vunpack.c.l.b16 %v577
      %v1182 = vunpack.c.h.b16 %v577
      %v1183 = vunpack.c.l.b16 %v578
      %v1184 = vunpack.c.l.b16 %v579
      %v1185 = vunpack.c.h.b16 %v579
      %v1186 = vunpack.c.l.b16 %v580
      %v1187 = vunpack.c.h.b16 %v580
      %v1188 = vunpack.c.l.b16 %v581
      %v1189 = vunpack.c.h.b16 %v581
      %v1190 = vunpack.c.l.b16 %v582
      %v1191 = vunpack.c.l.b16 %v583
      %v1192 = vunpack.c.h.b16 %v583
      %v1193 = vunpack.c.l.b16 %v584
      %v1194 = vunpack.c.h.b16 %v584
      %v1195 = vunpack.c.l.b16 %v585
      %v1196 = vunpack.c.h.b16 %v585
      %v1197 = vunpack.c.l.b16 %v586
      %v1198 = vunpack.c.l.b16 %v587
      %v1199 = vunpack.c.h.b16 %v587
      %v1200 = vunpack.c.l.b16 %v588
      %v1201 = vunpack.c.h.b16 %v588
      %v1202 = vunpack.c.l.b16 %v589
      %v1203 = vunpack.c.h.b16 %v589
      %v1204 = vunpack.c.l.b16 %v590
      %v1205 = vunpack.c.l.b16 %v591
      %v1206 = vunpack.c.h.b16 %v591
      %v1207 = vunpack.c.l.b16 %v592
      %v1208 = vunpack.c.h.b16 %v592
      %v1209 = vunpack.c.l.b16 %v593
      %v1210 = vunpack.c.h.b16 %v593
      %v1211 = vunpack.c.l.b16 %v594
      %v1212 = vunpack.c.l.b16 %v595
      %v1213 = vunpack.c.h.b16 %v595
      %v1214 = vunpack.c.l.b16 %v596
      %v1215 = vunpack.c.h.b16 %v596
      %v1216 = vunpack.c.l.b16 %v597
      %v1217 = vunpack.c.h.b16 %v597
      %v1218 = vunpack.c.l.b16 %v598
      %v1219 = vunpack.c.l.b16 %v599
      %v1220 = vunpack.c.h.b16 %v599
      %v1221 = vunpack.c.l.b16 %v600
      %v1222 = vunpack.c.h.b16 %v600
      %v1223 = vunpack.c.l.b16 %v601
      %v1224 = vunpack.c.h.b16 %v601
      %v1225 = vunpack.c.l.b16 %v602
      %v1226 = vunpack.c.l.b16 %v603
      %v1227 = vunpack.c.h.b16 %v603
      %v1228 = vunpack.c.l.b16 %v604
      %v1229 = vunpack.c.h.b16 %v604
      %v1230 = vunpack.c.l.b16 %v605
      %v1231 = vunpack.c.h.b16 %v605
      %v1232 = vunpack.c.l.b16 %v606
      %v1233 = vunpack.c.l.b16 %v607
      %v1234 = vunpack.c.h.b16 %v607
      %v1235 = vunpack.c.l.b16 %v608
      %v1236 = vunpack.c.h.b16 %v608
      %v1237 = vunpack.c.l.b16 %v609
      %v1238 = vunpack.c.h.b16 %v609
      %v1239 = vunpack.c.l.b16 %v610
      %v1240 = vunpack.c.l.b16 %v611
      %v1241 = vunpack.c.h.b16 %v611
      %v1242 = vunpack.c.l.b16 %v612
      %v1243 = vunpack.c.h.b16 %v612
      %v1244 = vunpack.c.l.b16 %v613
      %v1245 = vunpack.c.h.b16 %v613
      %v1246 = vunpack.c.l.b16 %v614
      %v1247 = vunpack.c.l.b16 %v615
      %v1248 = vunpack.c.h.b16 %v615
      %v1249 = vunpack.c.l.b16 %v616
      %v1250 = vunpack.c.h.b16 %v616
      %v1251 = vunpack.c.l.b16 %v617
      %v1252 = vunpack.c.h.b16 %v617
      %v1253 = vunpack.c.l.b16 %v618
      %v1254 = vunpack.c.l.b16 %v619
      %v1255 = vunpack.c.h.b16 %v619
      %v1256 = vunpack.c.l.b16 %v620
      %v1257 = vunpack.c.h.b16 %v620
      %v1258 = vunpack.c.l.b16 %v621
      %v1259 = vunpack.c.h.b16 %v621
      %v1260 = vunpack.c.l.b16 %v622
      %v1261 = vunpack.c.l.b16 %v623
      %v1262 = vunpack.c.h.b16 %v623
      %v1263 = vunpack.c.l.b16 %v624
      %v1264 = vunpack.c.h.b16 %v624
      %v1265 = vunpack.c.l.b16 %v625
      %v1266 = vunpack.c.h.b16 %v625
      %v1267 = vunpack.c.l.b16 %v626
      %v1268 = vunpack.c.l.b16 %v627
      %v1269 = vunpack.c.h.b16 %v627
      %v1270 = vunpack.c.l.b16 %v628
      %v1271 = vunpack.c.h.b16 %v628
      %v1272 = vunpack.c.l.b16 %v629
      %v1273 = vunpack.c.h.b16 %v629
      %v1274 = vunpack.c.l.b16 %v630
      %v1275 = vunpack.c.l.b16 %v631
      %v1276 = vunpack.c.h.b16 %v631
      %v1277 = vunpack.c.l.b16 %v632
      %v1278 = vunpack.c.h.b16 %v632
      %v1279 = vunpack.c.l.b16 %v633
      %v1280 = vunpack.c.h.b16 %v633
      %v1281 = vunpack.c.l.b16 %v634
      %v1282 = vunpack.c.l.b16 %v635
      %v1283 = vunpack.c.h.b16 %v635
      %v1284 = vunpack.c.l.b16 %v636
      %v1285 = vunpack.c.h.b16 %v636
      %v1286 = vunpack.c.l.b16 %v637
      %v1287 = vunpack.c.h.b16 %v637
      %v1288 = vunpack.c.l.b16 %v638
      %v1289 = vunpack.c.l.b16 %v639
      %v1290 = vunpack.c.h.b16 %v639
      %v1291 = vunpack.c.l.b16 %v640
      %v1292 = vunpack.c.h.b16 %v640
      %v1293 = vunpack.c.l.b16 %v641
      %v1294 = vunpack.c.h.b16 %v641
      %v1295 = vunpack.c.l.b16 %v642
      %v1296 = vunpack.c.l.b16 %v643
      %v1297 = vunpack.c.h.b16 %v643
      %v1298 = vunpack.c.l.b16 %v644
      %v1299 = vunpack.c.h.b16 %v644
      %v1300 = vunpack.c.l.b16 %v645
      %v1301 = vunpack.c.h.b16 %v645
      %v1302 = vunpack.c.l.b16 %v646
      %v1303 = vunpack.c.l.b16 %v647
      %v1304 = vunpack.c.h.b16 %v647
      %v1305 = vunpack.c.l.b16 %v648
      %v1306 = vunpack.c.h.b16 %v648
      %v1307 = vunpack.c.l.b16 %v649
      %v1308 = vunpack.c.h.b16 %v649
      %v1309 = vunpack.c.l.b16 %v650
      %v1310 = vunpack.c.l.b16 %v651
      %v1311 = vunpack.c.h.b16 %v651
      %v1312 = vunpack.c.l.b16 %v652
      %v1313 = vunpack.c.h.b16 %v652
      %v1314 = vunpack.c.l.b16 %v653
      %v1315 = vunpack.c.h.b16 %v653
      %v1316 = vunpack.c.l.b16 %v654
      %v1317 = vunpack.c.l.b16 %v655
      %v1318 = vunpack.c.h.b16 %v655
      %v1319 = vunpack.c.l.b16 %v656
      %v1320 = vunpack.c.h.b16 %v656
      %v1321 = vunpack.c.l.b16 %v657
      %v1322 = vunpack.c.h.b16 %v657
      %v1323 = vunpack.c.l.b16 %v658
      %v1324 = vunpack.c.l.b16 %v659
      %v1325 = vunpack.c.h.b16 %v659
      %v1326 = vunpack.c.l.b16 %v660
      %v1327 = vunpack.c.h.b16 %v660
      %v1328 = vunpack.c.l.b16 %v661
      %v1329 = vunpack.c.h.b16 %v661
      %v1330 = vunpack.c.l.b16 %v662
      %v1331 = vunpack.c.l.b16 %v663
      %v1332 = vunpack.c.h.b16 %v663
      %v1333 = vunpack.c.l.b16 %v664
      %v1334 = vunpack.c.h.b16 %v664
      %v1335 = vunpack.c.l.b16 %v665
      %v1336 = vunpack.c.h.b16 %v665
      %v1337 = vunpack.c.l.b16 %v666
      %v1338 = vunpack.c.l.b16 %v667
      %v1339 = vunpack.c.h.b16 %v667
      %v1340 = vunpack.c.l.b16 %v668
      %v1341 = vunpack.c.h.b16 %v668
      %v1342 = vunpack.c.l.b16 %v669
      %v1343 = vunpack.c.h.b16 %v669
      %v1344 = vunpack.c.l.b16 %v670
      %v1345 = vunpack.c.l.b16 %v671
      %v1346 = vunpack.c.h.b16 %v671
      %v1347 = vunpack.c.l.b16 %v672
      %v1348 = vunpack.c.h.b16 %v672
      %v1349 = vunpack.c.l.b16 %v673
      %v1350 = vunpack.c.h.b16 %v673
      %v1351 = vunpack.c.l.b16 %v674
      %v1352 = vunpack.c.l.b16 %v675
      %v1353 = vunpack.c.h.b16 %v675
      %v1354 = vunpack.c.l.b16 %v676
      %v1355 = vunpack.c.h.b16 %v676
      %v1356 = vunpack.c.l.b16 %v677
      %v1357 = vunpack.c.h.b16 %v677
      %v1358 = vunpack.c.l.b16 %v678
      %v1359 = vunpack.c.l.b16 %v679
      %v1360 = vunpack.c.h.b16 %v679
      %v1361 = vunpack.c.l.b16 %v680
      %v1362 = vunpack.c.h.b16 %v680
      %v1363 = vunpack.c.l.b16 %v681
      %v1364 = vunpack.c.h.b16 %v681
      %v1365 = vunpack.c.l.b16 %v682
      %v1366 = vunpack.c.l.b16 %v683
      %v1367 = vunpack.c.h.b16 %v683
      %v1368 = vunpack.c.l.b16 %v684
      %v1369 = vunpack.c.h.b16 %v684
      %v1370 = vunpack.c.l.b16 %v685
      %v1371 = vunpack.c.h.b16 %v685
      %v1372 = vunpack.c.l.b16 %v686
      %v1373 = vunpack.c.l.b16 %v687
      %v1374 = vunpack.c.h.b16 %v687
      %v1375 = vunpack.c.l.b16 %v688
      %v1376 = vunpack.c.h.b16 %v688
      %v1377 = vunpack.c.l.b16 %v689
      %v1378 = vunpack.c.h.b16 %v689
      %v1379 = vunpack.c.l.b16 %v690
      %v1380 = vunpack.c.l.b16 %v691
      %v1381 = vunpack.c.h.b16 %v691
      %v1382 = vunpack.c.l.b16 %v692
      %v1383 = vunpack.c.h.b16 %v692
      %v1384 = vunpack.c.l.b16 %v693
      %v1385 = vunpack.c.h.b16 %v693
      %v1386 = vunpack.c.l.b16 %v694
      %v1387 = vunpack.c.l.b16 %v695
      %v1388 = vunpack.c.h.b16 %v695
      %v1389 = vunpack.c.l.b16 %v696
      %v1390 = vunpack.c.h.b16 %v696
      %v1391 = vunpack.c.l.b16 %v697
      %v1392 = vunpack.c.h.b16 %v697
      %v1393 = vunpack.c.l.b16 %v698
      %v1394 = vunpack.c.l.b16 %v699
      %v1395 = vunpack.c.h.b16 %v699
      %v1396 = vunpack.c.l.b16 %v700
      %v1397 = vunpack.c.h.b16 %v700
      %v1398 = vunpack.c.l.b16 %v701
      %v1399 = vunpack.c.h.b16 %v701
      %v1400 = vunpack.c.l.b16 %v702
      %v1401 = vunpack.c.l.b16 %v703
      %v1402 = vunpack.c.h.b16 %v703
      %v1403 = vunpack.c.l.b16 %v704
      %v1404 = vunpack.c.h.b16 %v704
      %v1405 = vunpack.c.l.b16 %v705
      %v1406 = vunpack.c.h.b16 %v705
      %v1407 = vunpack.c.l.b16 %v706
      %v1408 = vunpack.c.l.b16 %v707
      %v1409 = vunpack.c.h.b16 %v707
      %v1410 = vunpack.c.l.b16 %v708
      %v1411 = vunpack.c.h.b16 %v708
      %v1412 = vunpack.c.l.b16 %v709
      %v1413 = vunpack.c.h.b16 %v709
      %v1414 = vunpack.c.l.b16 %v710
      %v1415 = vunpack.c.l.b16 %v711
      %v1416 = vunpack.c.h.b16 %v711
      %v1417 = vunpack.c.l.b16 %v712
      %v1418 = vunpack.c.h.b16 %v712
      %v1419 = vunpack.c.l.b16 %v713
      %v1420 = vunpack.c.h.b16 %v713
      %v1421 = vunpack.c.l.b16 %v714
      %v1422 = vunpack.c.l.b16 %v715
      %v1423 = vunpack.c.h.b16 %v715
      %v1424 = vunpack.c.l.b16 %v716
      %v1425 = vunpack.c.h.b16 %v716
      %v1426 = vunpack.c.l.b16 %v717
      %v1427 = vunpack.c.h.b16 %v717
      %v1428 = vunpack.c.l.b16 %v718
      %v1429 = vunpack.c.l.b16 %v719
      %v1430 = vunpack.c.h.b16 %v719
      %v1431 = vunpack.c.l.b16 %v720
      %v1432 = vunpack.c.h.b16 %v720
      %v1433 = vunpack.c.l.b16 %v721
      %v1434 = vunpack.c.h.b16 %v721
      %v1435 = vunpack.c.l.b16 %v722
      %v1436 = vunpack.c.l.b16 %v723
      %v1437 = vunpack.c.h.b16 %v723
      %v1438 = vunpack.c.l.b16 %v724
      %v1439 = vunpack.c.h.b16 %v724
      %v1440 = vunpack.c.l.b16 %v725
      %v1441 = vunpack.c.h.b16 %v725
      %v1442 = vunpack.c.l.b16 %v726
      %v1443 = vunpack.c.l.b16 %v727
      %v1444 = vunpack.c.h.b16 %v727
      %v1445 = vunpack.c.l.b16 %v728
      %v1446 = vunpack.c.h.b16 %v728
      %v1447 = vunpack.c.l.b16 %v729
      %v1448 = vunpack.c.h.b16 %v729
      %v1449 = vunpack.c.l.b16 %v730
      %v1450 = vunpack.c.l.b16 %v731
      %v1451 = vunpack.c.h.b16 %v731
      %v1452 = vunpack.c.l.b16 %v732
      %v1453 = vunpack.c.h.b16 %v732
      %v1454 = vunpack.c.l.b16 %v733
      %v1455 = vunpack.c.h.b16 %v733
      %v1456 = vunpack.c.l.b16 %v734
      %v1457 = vunpack.c.l.b16 %v735
      %v1458 = vunpack.c.h.b16 %v735
      %v1459 = vunpack.c.l.b16 %v736
      %v1460 = vunpack.c.h.b16 %v736
      %v1461 = vunpack.c.l.b16 %v737
      %v1462 = vunpack.c.h.b16 %v737
      %v1463 = vunpack.c.l.b16 %v738
      %v1464 = vunpack.c.l.b16 %v739
      %v1465 = vunpack.c.h.b16 %v739
      %v1466 = vunpack.c.l.b16 %v740
      %v1467 = vunpack.c.h.b16 %v740
      %v1468 = vunpack.c.l.b16 %v741
      %v1469 = vunpack.c.h.b16 %v741
      %v1470 = vunpack.c.l.b16 %v742
      %v1471 = vpack.c.b16 %v1086, %v1079
      %v1472 = vpack.c.b16 %v1087, %v1080
      %v1473 = vpack.c.b16 %v1088, %v1081
      %v1474 = vpack.c.b16 %v1089, %v1082
      %v1475 = vpack.c.b16 %v1090, %v1083
      %v1476 = vpack.c.b16 %v1091, %v1084
      %v1477 = vpack.c.b16 %v1092, %v1085
      %v1478 = vpack.c.b16 %v1100, %v1093
      %v1479 = vpack.c.b16 %v1101, %v1094
      %v1480 = vpack.c.b16 %v1102, %v1095
      %v1481 = vpack.c.b16 %v1103, %v1096
      %v1482 = vpack.c.b16 %v1104, %v1097
      %v1483 = vpack.c.b16 %v1105, %v1098
      %v1484 = vpack.c.b16 %v1106, %v1099
      %v1485 = vpack.c.b16 %v1114, %v1107
      %v1486 = vpack.c.b16 %v1115, %v1108
      %v1487 = vpack.c.b16 %v1116, %v1109
      %v1488 = vpack.c.b16 %v1117, %v1110
      %v1489 = vpack.c.b16 %v1118, %v1111
      %v1490 = vpack.c.b16 %v1119, %v1112
      %v1491 = vpack.c.b16 %v1120, %v1113
      %v1492 = vpack.c.b16 %v1128, %v1121
      %v1493 = vpack.c.b16 %v1129, %v1122
      %v1494 = vpack.c.b16 %v1130, %v1123
      %v1495 = vpack.c.b16 %v1131, %v1124
      %v1496 = vpack.c.b16 %v1132, %v1125
      %v1497 = vpack.c.b16 %v1133, %v1126
      %v1498 = vpack.c.b16 %v1134, %v1127
      %v1499 = vpack.c.b16 %v1142, %v1135
      %v1500 = vpack.c.b16 %v1143, %v1136
      %v1501 = vpack.c.b16 %v1144, %v1137
      %v1502 = vpack.c.b16 %v1145, %v1138
      %v1503 = vpack.c.b16 %v1146, %v1139
      %v1504 = vpack.c.b16 %v1147, %v1140
      %v1505 = vpack.c.b16 %v1148, %v1141
      %v1506 = vpack.c.b16 %v1156, %v1149
      %v1507 = vpack.c.b16 %v1157, %v1150
      %v1508 = vpack.c.b16 %v1158, %v1151
      %v1509 = vpack.c.b16 %v1159, %v1152
      %v1510 = vpack.c.b16 %v1160, %v1153
      %v1511 = vpack.c.b16 %v1161, %v1154
      %v1512 = vpack.c.b16 %v1162, %v1155
      %v1513 = vpack.c.b16 %v1170, %v1163
      %v1514 = vpack.c.b16 %v1171, %v1164
      %v1515 = vpack.c.b16 %v1172, %v1165
      %v1516 = vpack.c.b16 %v1173, %v1166
      %v1517 = vpack.c.b16 %v1174, %v1167
      %v1518 = vpack.c.b16 %v1175, %v1168
      %v1519 = vpack.c.b16 %v1176, %v1169
      %v1520 = vpack.c.b16 %v1184, %v1177
      %v1521 = vpack.c.b16 %v1185, %v1178
      %v1522 = vpack.c.b16 %v1186, %v1179
      %v1523 = vpack.c.b16 %v1187, %v1180
      %v1524 = vpack.c.b16 %v1188, %v1181
      %v1525 = vpack.c.b16 %v1189, %v1182
      %v1526 = vpack.c.b16 %v1190, %v1183
      %v1527 = vpack.c.b16 %v1198, %v1191
      %v1528 = vpack.c.b16 %v1199, %v1192
      %v1529 = vpack.c.b16 %v1200, %v1193
      %v1530 = vpack.c.b16 %v1201, %v1194
      %v1531 = vpack.c.b16 %v1202, %v1195
      %v1532 = vpack.c.b16 %v1203, %v1196
      %v1533 = vpack.c.b16 %v1204, %v1197
      %v1534 = vpack.c.b16 %v1212, %v1205
      %v1535 = vpack.c.b16 %v1213, %v1206
      %v1536 = vpack.c.b16 %v1214, %v1207
      %v1537 = vpack.c.b16 %v1215, %v1208
      %v1538 = vpack.c.b16 %v1216, %v1209
      %v1539 = vpack.c.b16 %v1217, %v1210
      %v1540 = vpack.c.b16 %v1218, %v1211
      %v1541 = vpack.c.b16 %v1226, %v1219
      %v1542 = vpack.c.b16 %v1227, %v1220
      %v1543 = vpack.c.b16 %v1228, %v1221
      %v1544 = vpack.c.b16 %v1229, %v1222
      %v1545 = vpack.c.b16 %v1230, %v1223
      %v1546 = vpack.c.b16 %v1231, %v1224
      %v1547 = vpack.c.b16 %v1232, %v1225
      %v1548 = vpack.c.b16 %v1240, %v1233
      %v1549 = vpack.c.b16 %v1241, %v1234
      %v1550 = vpack.c.b16 %v1242, %v1235
      %v1551 = vpack.c.b16 %v1243, %v1236
      %v1552 = vpack.c.b16 %v1244, %v1237
      %v1553 = vpack.c.b16 %v1245, %v1238
      %v1554 = vpack.c.b16 %v1246, %v1239
      %v1555 = vpack.c.b16 %v1254, %v1247
      %v1556 = vpack.c.b16 %v1255, %v1248
      %v1557 = vpack.c.b16 %v1256, %v1249
      %v1558 = vpack.c.b16 %v1257, %v1250
      %v1559 = vpack.c.b16 %v1258, %v1251
      %v1560 = vpack.c.b16 %v1259, %v1252
      %v1561 = vpack.c.b16 %v1260, %v1253
      %v1562 = vpack.c.b16 %v1268, %v1261
      %v1563 = vpack.c.b16 %v1269, %v1262
      %v1564 = vpack.c.b16 %v1270, %v1263
      %v1565 = vpack.c.b16 %v1271, %v1264
      %v1566 = vpack.c.b16 %v1272, %v1265
      %v1567 = vpack.c.b16 %v1273, %v1266
      %v1568 = vpack.c.b16 %v1274, %v1267
      %v1569 = vpack.c.b16 %v1282, %v1275
      %v1570 = vpack.c.b16 %v1283, %v1276
      %v1571 = vpack.c.b16 %v1284, %v1277
      %v1572 = vpack.c.b16 %v1285, %v1278
      %v1573 = vpack.c.b16 %v1286, %v1279
      %v1574 = vpack.c.b16 %v1287, %v1280
      %v1575 = vpack.c.b16 %v1288, %v1281
      %v1576 = vpack.c.b16 %v1296, %v1289
      %v1577 = vpack.c.b16 %v1297, %v1290
      %v1578 = vpack.c.b16 %v1298, %v1291
      %v1579 = vpack.c.b16 %v1299, %v1292
      %v1580 = vpack.c.b16 %v1300, %v1293
      %v1581 = vpack.c.b16 %v1301, %v1294
      %v1582 = vpack.c.b16 %v1302, %v1295
      %v1583 = vpack.c.b16 %v1310, %v1303
      %v1584 = vpack.c.b16 %v1311, %v1304
      %v1585 = vpack.c.b16 %v1312, %v1305
      %v1586 = vpack.c.b16 %v1313, %v1306
      %v1587 = vpack.c.b16 %v1314, %v1307
      %v1588 = vpack.c.b16 %v1315, %v1308
      %v1589 = vpack.c.b16 %v1316, %v1309
      %v1590 = vpack.c.b16 %v1324, %v1317
      %v1591 = vpack.c.b16 %v1325, %v1318
      %v1592 = vpack.c.b16 %v1326, %v1319
      %v1593 = vpack.c.b16 %v1327, %v1320
      %v1594 = vpack.c.b16 %v1328, %v1321
      %v1595 = vpack.c.b16 %v1329, %v1322
      %v1596 = vpack.c.b16 %v1330, %v1323
      %v1597 = vpack.c.b16 %v1338, %v1331
      %v1598 = vpack.c.b16 %v1339, %v1332
      %v1599 = vpack.c.b16 %v1340, %v1333
      %v1600 = vpack.c.b16 %v1341, %v1334
      %v1601 = vpack.c.b16 %v1342, %v1335
      %v1602 = vpack.c.b16 %v1343, %v1336
      %v1603 = vpack.c.b16 %v1344, %v1337
      %v1604 = vpack.c.b16 %v1352, %v1345
      %v1605 = vpack.c.b16 %v1353, %v1346
      %v1606 = vpack.c.b16 %v1354, %v1347
      %v1607 = vpack.c.b16 %v1355, %v1348
      %v1608 = vpack.c.b16 %v1356, %v1349
      %v1609 = vpack.c.b16 %v1357, %v1350
      %v1610 = vpack.c.b16 %v1358, %v1351
      %v1611 = vpack.c.b16 %v1366, %v1359
      %v1612 = vpack.c.b16 %v1367, %v1360
      %v1613 = vpack.c.b16 %v1368, %v1361
      %v1614 = vpack.c.b16 %v1369, %v1362
      %v1615 = vpack.c.b16 %v1370, %v1363
      %v1616 = vpack.c.b16 %v1371, %v1364
      %v1617 = vpack.c.b16 %v1372, %v1365
      %v1618 = vpack.c.b16 %v1380, %v1373
      %v1619 = vpack.c.b16 %v1381, %v1374
      %v1620 = vpack.c.b16 %v1382, %v1375
      %v1621 = vpack.c.b16 %v1383, %v1376
      %v1622 = vpack.c.b16 %v1384, %v1377
      %v1623 = vpack.c.b16 %v1385, %v1378
      %v1624 = vpack.c.b16 %v1386, %v1379
      %v1625 = vpack.c.b16 %v1394, %v1387
      %v1626 = vpack.c.b16 %v1395, %v1388
      %v1627 = vpack.c.b16 %v1396, %v1389
      %v1628 = vpack.c.b16 %v1397, %v1390
      %v1629 = vpack.c.b16 %v1398, %v1391
      %v1630 = vpack.c.b16 %v1399, %v1392
      %v1631 = vpack.c.b16 %v1400, %v1393
      %v1632 = vpack.c.b16 %v1408, %v1401
      %v1633 = vpack.c.b16 %v1409, %v1402
      %v1634 = vpack.c.b16 %v1410, %v1403
      %v1635 = vpack.c.b16 %v1411, %v1404
      %v1636 = vpack.c.b16 %v1412, %v1405
      %v1637 = vpack.c.b16 %v1413, %v1406
      %v1638 = vpack.c.b16 %v1414, %v1407
      %v1639 = vpack.c.b16 %v1422, %v1415
      %v1640 = vpack.c.b16 %v1423, %v1416
      %v1641 = vpack.c.b16 %v1424, %v1417
      %v1642 = vpack.c.b16 %v1425, %v1418
      %v1643 = vpack.c.b16 %v1426, %v1419
      %v1644 = vpack.c.b16 %v1427, %v1420
      %v1645 = vpack.c.b16 %v1428, %v1421
      %v1646 = vpack.c.b16 %v1436, %v1429
      %v1647 = vpack.c.b16 %v1437, %v1430
      %v1648 = vpack.c.b16 %v1438, %v1431
      %v1649 = vpack.c.b16 %v1439, %v1432
      %v1650 = vpack.c.b16 %v1440, %v1433
      %v1651 = vpack.c.b16 %v1441, %v1434
      %v1652 = vpack.c.b16 %v1442, %v1435
      %v1653 = vpack.c.b16 %v1450, %v1443
      %v1654 = vpack.c.b16 %v1451, %v1444
      %v1655 = vpack.c.b16 %v1452, %v1445
      %v1656 = vpack.c.b16 %v1453, %v1446
      %v1657 = vpack.c.b16 %v1454, %v1447
      %v1658 = vpack.c.b16 %v1455, %v1448
      %v1659 = vpack.c.b16 %v1456, %v1449
      %v1660 = vpack.c.b16 %v1464, %v1457
      %v1661 = vpack.c.b16 %v1465, %v1458
      %v1662 = vpack.c.b16 %v1466, %v1459
      %v1663 = vpack.c.b16 %v1467, %v1460
      %v1664 = vpack.c.b16 %v1468, %v1461
      %v1665 = vpack.c.b16 %v1469, %v1462
      %v1666 = vpack.c.b16 %v1470, %v1463
      %v1975 = vunpack.c.l.b16 %v743
      %v1976 = vunpack.c.h.b16 %v743
      %v1977 = vunpack.c.l.b16 %v744
      %v1978 = vunpack.c.h.b16 %v744
      %v1979 = vunpack.c.l.b16 %v745
      %v1980 = vunpack.c.h.b16 %v745
      %v1981 = vunpack.c.l.b16 %v746
      %v1982 = vunpack.c.h.b16 %v746
      %v1983 = vunpack.c.l.b16 %v747
      %v1984 = vunpack.c.h.b16 %v747
      %v1985 = vunpack.c.l.b16 %v748
      %v1986 = vunpack.c.h.b16 %v748
      %v1987 = vunpack.c.l.b16 %v749
      %v1988 = vunpack.c.h.b16 %v749
      %v1989 = vunpack.c.l.b16 %v750
      %v1990 = vunpack.c.h.b16 %v750
      %v1991 = vunpack.c.l.b16 %v751
      %v1992 = vunpack.c.h.b16 %v751
      %v1993 = vunpack.c.l.b16 %v752
      %v1994 = vunpack.c.h.b16 %v752
      %v1995 = vunpack.c.l.b16 %v753
      %v1996 = vunpack.c.h.b16 %v753
      %v1997 = vunpack.c.l.b16 %v754
      %v1998 = vunpack.c.h.b16 %v754
      %v1999 = vunpack.c.l.b16 %v755
      %v2000 = vunpack.c.h.b16 %v755
      %v2001 = vunpack.c.l.b16 %v756
      %v2002 = vunpack.c.h.b16 %v756
      %v2003 = vunpack.c.l.b16 %v757
      %v2004 = vunpack.c.h.b16 %v757
      %v2005 = vunpack.c.l.b16 %v758
      %v2006 = vunpack.c.h.b16 %v758
      %v2007 = vunpack.c.l.b16 %v759
      %v2008 = vunpack.c.h.b16 %v759
      %v2009 = vunpack.c.l.b16 %v760
      %v2010 = vunpack.c.h.b16 %v760
      %v2011 = vunpack.c.l.b16 %v761
      %v2012 = vunpack.c.h.b16 %v761
      %v2013 = vunpack.c.l.b16 %v762
      %v2014 = vunpack.c.h.b16 %v762
      %v2015 = vunpack.c.l.b16 %v763
      %v2016 = vunpack.c.h.b16 %v763
      %v2017 = vunpack.c.l.b16 %v764
      %v2018 = vunpack.c.h.b16 %v764
      %v2019 = vunpack.c.l.b16 %v765
      %v2020 = vunpack.c.h.b16 %v765
      %v2021 = vunpack.c.l.b16 %v766
      %v2022 = vunpack.c.h.b16 %v766
      %v2023 = vunpack.c.l.b16 %v767
      %v2024 = vunpack.c.h.b16 %v767
      %v2025 = vunpack.c.l.b16 %v768
      %v2026 = vunpack.c.h.b16 %v768
      %v2027 = vunpack.c.l.b16 %v769
      %v2028 = vunpack.c.h.b16 %v769
      %v2029 = vunpack.c.l.b16 %v770
      %v2030 = vunpack.c.h.b16 %v770
      %v2031 = vunpack.c.l.b16 %v771
      %v2032 = vunpack.c.h.b16 %v771
      %v2033 = vunpack.c.l.b16 %v772
      %v2034 = vunpack.c.h.b16 %v772
      %v2035 = vunpack.c.l.b16 %v773
      %v2036 = vunpack.c.h.b16 %v773
      %v2037 = vunpack.c.l.b16 %v774
      %v2038 = vunpack.c.h.b16 %v774
      %v2039 = vunpack.c.l.b16 %v775
      %v2040 = vunpack.c.h.b16 %v775
      %v2041 = vunpack.c.l.b16 %v776
      %v2042 = vunpack.c.h.b16 %v776
      %v2043 = vunpack.c.l.b16 %v777
      %v2044 = vunpack.c.h.b16 %v777
      %v2045 = vunpack.c.l.b16 %v778
      %v2046 = vunpack.c.h.b16 %v778
      %v2047 = vunpack.c.l.b16 %v779
      %v2048 = vunpack.c.h.b16 %v779
      %v2049 = vunpack.c.l.b16 %v780
      %v2050 = vunpack.c.h.b16 %v780
      %v2051 = vunpack.c.l.b16 %v781
      %v2052 = vunpack.c.h.b16 %v781
      %v2053 = vunpack.c.l.b16 %v782
      %v2054 = vunpack.c.h.b16 %v782
      %v2055 = vunpack.c.l.b16 %v783
      %v2056 = vunpack.c.h.b16 %v783
      %v2057 = vunpack.c.l.b16 %v784
      %v2058 = vunpack.c.h.b16 %v784
      %v2059 = vunpack.c.l.b16 %v785
      %v2060 = vunpack.c.h.b16 %v785
      %v2061 = vunpack.c.l.b16 %v786
      %v2062 = vunpack.c.h.b16 %v786
      %v2063 = vunpack.c.l.b16 %v787
      %v2064 = vunpack.c.h.b16 %v787
      %v2065 = vunpack.c.l.b16 %v788
      %v2066 = vunpack.c.h.b16 %v788
      %v2067 = vunpack.c.l.b16 %v789
      %v2068 = vunpack.c.h.b16 %v789
      %v2069 = vunpack.c.l.b16 %v790
      %v2070 = vunpack.c.h.b16 %v790
      %v2071 = vunpack.c.l.b16 %v791
      %v2072 = vunpack.c.h.b16 %v791
      %v2073 = vunpack.c.l.b16 %v792
      %v2074 = vunpack.c.h.b16 %v792
      %v2075 = vunpack.c.l.b16 %v793
      %v2076 = vunpack.c.h.b16 %v793
      %v2077 = vunpack.c.l.b16 %v794
      %v2078 = vunpack.c.h.b16 %v794
      %v2079 = vunpack.c.l.b16 %v795
      %v2080 = vunpack.c.h.b16 %v795
      %v2081 = vunpack.c.l.b16 %v796
      %v2082 = vunpack.c.h.b16 %v796
      %v2083 = vunpack.c.l.b16 %v797
      %v2084 = vunpack.c.h.b16 %v797
      %v2085 = vunpack.c.l.b16 %v798
      %v2086 = vunpack.c.h.b16 %v798
      %v2087 = vunpack.c.l.b16 %v799
      %v2088 = vunpack.c.h.b16 %v799
      %v2089 = vunpack.c.l.b16 %v800
      %v2090 = vunpack.c.h.b16 %v800
      %v2091 = vunpack.c.l.b16 %v801
      %v2092 = vunpack.c.h.b16 %v801
      %v2093 = vunpack.c.l.b16 %v802
      %v2094 = vunpack.c.h.b16 %v802
      %v2095 = vunpack.c.l.b16 %v803
      %v2096 = vunpack.c.h.b16 %v803
      %v2097 = vunpack.c.l.b16 %v804
      %v2098 = vunpack.c.h.b16 %v804
      %v2099 = vunpack.c.l.b16 %v805
      %v2100 = vunpack.c.h.b16 %v805
      %v2101 = vunpack.c.l.b16 %v806
      %v2102 = vunpack.c.h.b16 %v806
      %v2103 = vunpack.c.l.b16 %v807
      %v2104 = vunpack.c.h.b16 %v807
      %v2105 = vunpack.c.l.b16 %v808
      %v2106 = vunpack.c.h.b16 %v808
      %v2107 = vunpack.c.l.b16 %v809
      %v2108 = vunpack.c.h.b16 %v809
      %v2109 = vunpack.c.l.b16 %v810
      %v2110 = vunpack.c.h.b16 %v810
      %v2111 = vunpack.c.l.b16 %v811
      %v2112 = vunpack.c.h.b16 %v811
      %v2113 = vunpack.c.l.b16 %v812
      %v2114 = vunpack.c.h.b16 %v812
      %v2115 = vunpack.c.l.b16 %v813
      %v2116 = vunpack.c.h.b16 %v813
      %v2117 = vunpack.c.l.b16 %v814
      %v2118 = vunpack.c.h.b16 %v814
      %v2119 = vunpack.c.l.b16 %v815
      %v2120 = vunpack.c.h.b16 %v815
      %v2121 = vunpack.c.l.b16 %v816
      %v2122 = vunpack.c.h.b16 %v816
      %v2123 = vunpack.c.l.b16 %v817
      %v2124 = vunpack.c.h.b16 %v817
      %v2125 = vunpack.c.l.b16 %v818
      %v2126 = vunpack.c.h.b16 %v818
      %v2127 = vunpack.c.l.b16 %v819
      %v2128 = vunpack.c.h.b16 %v819
      %v2129 = vunpack.c.l.b16 %v820
      %v2130 = vunpack.c.h.b16 %v820
      %v2131 = vunpack.c.l.b16 %v821
      %v2132 = vunpack.c.h.b16 %v821
      %v2133 = vunpack.c.l.b16 %v822
      %v2134 = vunpack.c.h.b16 %v822
      %v2135 = vunpack.c.l.b16 %v823
      %v2136 = vunpack.c.h.b16 %v823
      %v2137 = vunpack.c.l.b16 %v824
      %v2138 = vunpack.c.h.b16 %v824
      %v2139 = vunpack.c.l.b16 %v825
      %v2140 = vunpack.c.h.b16 %v825
      %v2141 = vunpack.c.l.b16 %v826
      %v2142 = vunpack.c.h.b16 %v826
      %v2143 = vunpack.c.l.b16 %v827
      %v2144 = vunpack.c.h.b16 %v827
      %v2145 = vunpack.c.l.b16 %v828
      %v2146 = vunpack.c.h.b16 %v828
      %v2147 = vunpack.c.l.b16 %v829
      %v2148 = vunpack.c.h.b16 %v829
      %v2149 = vunpack.c.l.b16 %v830
      %v2150 = vunpack.c.h.b16 %v830
      %v2151 = vunpack.c.l.b16 %v831
      %v2152 = vunpack.c.h.b16 %v831
      %v2153 = vunpack.c.l.b16 %v832
      %v2154 = vunpack.c.h.b16 %v832
      %v2155 = vunpack.c.l.b16 %v833
      %v2156 = vunpack.c.h.b16 %v833
      %v2157 = vunpack.c.l.b16 %v834
      %v2158 = vunpack.c.h.b16 %v834
      %v2159 = vunpack.c.l.b16 %v835
      %v2160 = vunpack.c.h.b16 %v835
      %v2161 = vunpack.c.l.b16 %v836
      %v2162 = vunpack.c.h.b16 %v836
      %v2163 = vunpack.c.l.b16 %v837
      %v2164 = vunpack.c.h.b16 %v837
      %v2165 = vunpack.c.l.b16 %v838
      %v2166 = vunpack.c.h.b16 %v838
      %v2167 = vunpack.c.l.b16 %v839
      %v2168 = vunpack.c.h.b16 %v839
      %v2169 = vunpack.c.l.b16 %v840
      %v2170 = vunpack.c.h.b16 %v840
      %v2171 = vunpack.c.l.b16 %v841
      %v2172 = vunpack.c.h.b16 %v841
      %v2173 = vunpack.c.l.b16 %v842
      %v2174 = vunpack.c.h.b16 %v842
      %v2175 = vunpack.c.l.b16 %v843
      %v2176 = vunpack.c.h.b16 %v843
      %v2177 = vunpack.c.l.b16 %v844
      %v2178 = vunpack.c.h.b16 %v844
      %v2179 = vunpack.c.l.b16 %v845
      %v2180 = vunpack.c.h.b16 %v845
      %v2181 = vunpack.c.l.b16 %v846
      %v2182 = vunpack.c.h.b16 %v846
      %v2183 = vunpack.c.l.b16 %v847
      %v2184 = vunpack.c.h.b16 %v847
      %v2185 = vunpack.c.l.b16 %v848
      %v2186 = vunpack.c.h.b16 %v848
      %v2187 = vunpack.c.l.b16 %v849
      %v2188 = vunpack.c.h.b16 %v849
      %v2189 = vunpack.c.l.b16 %v850
      %v2190 = vunpack.c.h.b16 %v850
      %v2191 = vunpack.c.l.b16 %v851
      %v2192 = vunpack.c.h.b16 %v851
      %v2193 = vunpack.c.l.b16 %v852
      %v2194 = vunpack.c.h.b16 %v852
      %v2195 = vunpack.c.l.b16 %v853
      %v2196 = vunpack.c.h.b16 %v853
      %v2197 = vunpack.c.l.b16 %v854
      %v2198 = vunpack.c.h.b16 %v854
      %v2199 = vpack.c.b16 %v1977, %v1975
      %v2200 = vpack.c.b16 %v1978, %v1976
      %v2201 = vpack.c.b16 %v1981, %v1979
      %v2202 = vpack.c.b16 %v1982, %v1980
      %v2203 = vpack.c.b16 %v1985, %v1983
      %v2204 = vpack.c.b16 %v1986, %v1984
      %v2205 = vpack.c.b16 %v1989, %v1987
      %v2206 = vpack.c.b16 %v1990, %v1988
      %v2207 = vpack.c.b16 %v1993, %v1991
      %v2208 = vpack.c.b16 %v1994, %v1992
      %v2209 = vpack.c.b16 %v1997, %v1995
      %v2210 = vpack.c.b16 %v1998, %v1996
      %v2211 = vpack.c.b16 %v2001, %v1999
      %v2212 = vpack.c.b16 %v2002, %v2000
      %v2213 = vpack.c.b16 %v2005, %v2003
      %v2214 = vpack.c.b16 %v2006, %v2004
      %v2215 = vpack.c.b16 %v2009, %v2007
      %v2216 = vpack.c.b16 %v2010, %v2008
      %v2217 = vpack.c.b16 %v2013, %v2011
      %v2218 = vpack.c.b16 %v2014, %v2012
      %v2219 = vpack.c.b16 %v2017, %v2015
      %v2220 = vpack.c.b16 %v2018, %v2016
      %v2221 = vpack.c.b16 %v2021, %v2019
      %v2222 = vpack.c.b16 %v2022, %v2020
      %v2223 = vpack.c.b16 %v2025, %v2023
      %v2224 = vpack.c.b16 %v2026, %v2024
      %v2225 = vpack.c.b16 %v2029, %v2027
      %v2226 = vpack.c.b16 %v2030, %v2028
      %v2227 = vpack.c.b16 %v2033, %v2031
      %v2228 = vpack.c.b16 %v2034, %v2032
      %v2229 = vpack.c.b16 %v2037, %v2035
      %v2230 = vpack.c.b16 %v2038, %v2036
      %v2231 = vpack.c.b16 %v2041, %v2039
      %v2232 = vpack.c.b16 %v2042, %v2040
      %v2233 = vpack.c.b16 %v2045, %v2043
      %v2234 = vpack.c.b16 %v2046, %v2044
      %v2235 = vpack.c.b16 %v2049, %v2047
      %v2236 = vpack.c.b16 %v2050, %v2048
      %v2237 = vpack.c.b16 %v2053, %v2051
      %v2238 = vpack.c.b16 %v2054, %v2052
      %v2239 = vpack.c.b16 %v2057, %v2055
      %v2240 = vpack.c.b16 %v2058, %v2056
      %v2241 = vpack.c.b16 %v2061, %v2059
      %v2242 = vpack.c.b16 %v2062, %v2060
      %v2243 = vpack.c.b16 %v2065, %v2063
      %v2244 = vpack.c.b16 %v2066, %v2064
      %v2245 = vpack.c.b16 %v2069, %v2067
      %v2246 = vpack.c.b16 %v2070, %v2068
      %v2247 = vpack.c.b16 %v2073, %v2071
      %v2248 = vpack.c.b16 %v2074, %v2072
      %v2249 = vpack.c.b16 %v2077, %v2075
      %v2250 = vpack.c.b16 %v2078, %v2076
      %v2251 = vpack.c.b16 %v2081, %v2079
      %v2252 = vpack.c.b16 %v2082, %v2080
      %v2253 = vpack.c.b16 %v2085, %v2083
      %v2254 = vpack.c.b16 %v2086, %v2084
      %v2255 = vpack.c.b16 %v2089, %v2087
      %v2256 = vpack.c.b16 %v2090, %v2088
      %v2257 = vpack.c.b16 %v2093, %v2091
      %v2258 = vpack.c.b16 %v2094, %v2092
      %v2259 = vpack.c.b16 %v2097, %v2095
      %v2260 = vpack.c.b16 %v2098, %v2096
      %v2261 = vpack.c.b16 %v2101, %v2099
      %v2262 = vpack.c.b16 %v2102, %v2100
      %v2263 = vpack.c.b16 %v2105, %v2103
      %v2264 = vpack.c.b16 %v2106, %v2104
      %v2265 = vpack.c.b16 %v2109, %v2107
      %v2266 = vpack.c.b16 %v2110, %v2108
      %v2267 = vpack.c.b16 %v2113, %v2111
      %v2268 = vpack.c.b16 %v2114, %v2112
      %v2269 = vpack.c.b16 %v2117, %v2115
      %v2270 = vpack.c.b16 %v2118, %v2116
      %v2271 = vpack.c.b16 %v2121, %v2119
      %v2272 = vpack.c.b16 %v2122, %v2120
      %v2273 = vpack.c.b16 %v2125, %v2123
      %v2274 = vpack.c.b16 %v2126, %v2124
      %v2275 = vpack.c.b16 %v2129, %v2127
      %v2276 = vpack.c.b16 %v2130, %v2128
      %v2277 = vpack.c.b16 %v2133, %v2131
      %v2278 = vpack.c.b16 %v2134, %v2132
      %v2279 = vpack.c.b16 %v2137, %v2135
      %v2280 = vpack.c.b16 %v2138, %v2136
      %v2281 = vpack.c.b16 %v2141, %v2139
      %v2282 = vpack.c.b16 %v2142, %v2140
      %v2283 = vpack.c.b16 %v2145, %v2143
      %v2284 = vpack.c.b16 %v2146, %v2144
      %v2285 = vpack.c.b16 %v2149, %v2147
      %v2286 = vpack.c.b16 %v2150, %v2148
      %v2287 = vpack.c.b16 %v2153, %v2151
      %v2288 = vpack.c.b16 %v2154, %v2152
      %v2289 = vpack.c.b16 %v2157, %v2155
      %v2290 = vpack.c.b16 %v2158, %v2156
      %v2291 = vpack.c.b16 %v2161, %v2159
      %v2292 = vpack.c.b16 %v2162, %v2160
      %v2293 = vpack.c.b16 %v2165, %v2163
      %v2294 = vpack.c.b16 %v2166, %v2164
      %v2295 = vpack.c.b16 %v2169, %v2167
      %v2296 = vpack.c.b16 %v2170, %v2168
      %v2297 = vpack.c.b16 %v2173, %v2171
      %v2298 = vpack.c.b16 %v2174, %v2172
      %v2299 = vpack.c.b16 %v2177, %v2175
      %v2300 = vpack.c.b16 %v2178, %v2176
      %v2301 = vpack.c.b16 %v2181, %v2179
      %v2302 = vpack.c.b16 %v2182, %v2180
      %v2303 = vpack.c.b16 %v2185, %v2183
      %v2304 = vpack.c.b16 %v2186, %v2184
      %v2305 = vpack.c.b16 %v2189, %v2187
      %v2306 = vpack.c.b16 %v2190, %v2188
      %v2307 = vpack.c.b16 %v2193, %v2191
      %v2308 = vpack.c.b16 %v2194, %v2192
      %v2309 = vpack.c.b16 %v2197, %v2195
      %v2310 = vpack.c.b16 %v2198, %v2196
      %2423 = vmatprep.subr.bf16.mxu0 %v2200
      %2424 = vmatpush1.bf16.msra.mxu0 %v2199
      %2425 = vmatprep.subr.bf16.mxu0 %v2202
      %2426 = vmatpush1.bf16.msra.mxu0 %v2201
      %2427 = vmatprep.subr.bf16.mxu0 %v2204
      %2428 = vmatpush1.bf16.msra.mxu0 %v2203
      %2429 = vmatprep.subr.bf16.mxu0 %v2206
      %2430 = vmatpush1.bf16.msra.mxu0 %v2205
      %2431 = vmatprep.subr.bf16.mxu0 %v2208
      %2432 = vmatpush1.bf16.msra.mxu0 %v2207
      %2433 = vmatprep.subr.bf16.mxu0 %v2210
      %2434 = vmatpush1.bf16.msra.mxu0 %v2209
      %2435 = vmatprep.subr.bf16.mxu0 %v2212
      %2436 = vmatpush1.bf16.msra.mxu0 %v2211
      %2437 = vmatprep.subr.bf16.mxu0 %v2214
      %2438 = vmatpush1.bf16.msra.mxu0 %v2213
      %2439 = vmatprep.subr.bf16.mxu0 %v2216
      %2440 = vmatpush1.bf16.msra.mxu0 %v2215
      %2441 = vmatprep.subr.bf16.mxu0 %v2218
      %2442 = vmatpush1.bf16.msra.mxu0 %v2217
      %2443 = vmatprep.subr.bf16.mxu0 %v2220
      %2444 = vmatpush1.bf16.msra.mxu0 %v2219
      %2445 = vmatprep.subr.bf16.mxu0 %v2222
      %2446 = vmatpush1.bf16.msra.mxu0 %v2221
      %2447 = vmatprep.subr.bf16.mxu0 %v2224
      %2448 = vmatpush1.bf16.msra.mxu0 %v2223
      %2449 = vmatprep.subr.bf16.mxu0 %v2226
      %2450 = vmatpush1.bf16.msra.mxu0 %v2225
      %2451 = vmatprep.subr.bf16.mxu0 %v2228
      %2452 = vmatpush1.bf16.msra.mxu0 %v2227
      %2453 = vmatprep.subr.bf16.mxu0 %v2230
      %2454 = vmatpush1.bf16.msra.mxu0 %v2229
      %2455 = vmatprep.mubr.bf16.mxu0 %v1472
      %2456 = vmatmul.mubr.bf16.gmra.mrb[0].mxu0 %v1471
      %v2457 = vpop.f32.mrb[0].mxu0
      %v2458 = vadd.f32 0.0, %v2457
      %v2459 = vpop.f32.mrb[0].mxu0
      %v2460 = vadd.f32 0.0, %v2459
      %v2461 = vpop.f32.mrb[0].mxu0
      %v2462 = vadd.f32 0.0, %v2461
      %v2463 = vpop.f32.mrb[0].mxu0
      %v2464 = vadd.f32 0.0, %v2463
      %2465 = vmatprep.mubr.bf16.mxu0 %v1479
      %2466 = vmatmul.mubr.bf16.gmra.mrb[0].mxu0 %v1478
      %v2467 = vpop.f32.mrb[0].mxu0
      %v2468 = vadd.f32 0.0, %v2467
      %v2469 = vpop.f32.mrb[0].mxu0
      %v2470 = vadd.f32 0.0, %v2469
      %v2471 = vpop.f32.mrb[0].mxu0
      %v2472 = vadd.f32 0.0, %v2471
      %v2473 = vpop.f32.mrb[0].mxu0
      %v2474 = vadd.f32 0.0, %v2473
      %2475 = vmatprep.mubr.bf16.mxu0 %v1486
      %2476 = vmatmul.mubr.bf16.gmra.mrb[0].mxu0 %v1485
      %v2477 = vpop.f32.mrb[0].mxu0
      %v2478 = vadd.f32 0.0, %v2477
      %v2479 = vpop.f32.mrb[0].mxu0
      %v2480 = vadd.f32 0.0, %v2479
      %v2481 = vpop.f32.mrb[0].mxu0
      %v2482 = vadd.f32 0.0, %v2481
      %v2483 = vpop.f32.mrb[0].mxu0
      %v2484 = vadd.f32 0.0, %v2483
      %2485 = vmatprep.mubr.bf16.mxu0 %v1493
      %2486 = vmatmul.mubr.bf16.gmra.mrb[0].mxu0 %v1492
      %v2487 = vpop.f32.mrb[0].mxu0
      %v2488 = vadd.f32 0.0, %v2487
      %v2489 = vpop.f32.mrb[0].mxu0
      %v2490 = vadd.f32 0.0, %v2489
      %v2491 = vpop.f32.mrb[0].mxu0
      %v2492 = vadd.f32 0.0, %v2491
      %v2493 = vpop.f32.mrb[0].mxu0
      %v2494 = vadd.f32 0.0, %v2493
      %2495 = vmatprep.mubr.bf16.mxu0 %v1500
      %2496 = vmatmul.mubr.bf16.gmra.mrb[0].mxu0 %v1499
      %v2497 = vpop.f32.mrb[0].mxu0
      %v2498 = vadd.f32 0.0, %v2497
      %v2499 = vpop.f32.mrb[0].mxu0
      %v2500 = vadd.f32 0.0, %v2499
      %v2501 = vpop.f32.mrb[0].mxu0
      %v2502 = vadd.f32 0.0, %v2501
      %v2503 = vpop.f32.mrb[0].mxu0
      %v2504 = vadd.f32 0.0, %v2503
      %2505 = vmatprep.mubr.bf16.mxu0 %v1507
      %2506 = vmatmul.mubr.bf16.gmra.mrb[0].mxu0 %v1506
      %v2507 = vpop.f32.mrb[0].mxu0
      %v2508 = vadd.f32 0.0, %v2507
      %v2509 = vpop.f32.mrb[0].mxu0
      %v2510 = vadd.f32 0.0, %v2509
      %v2511 = vpop.f32.mrb[0].mxu0
      %v2512 = vadd.f32 0.0, %v2511
      %v2513 = vpop.f32.mrb[0].mxu0
      %v2514 = vadd.f32 0.0, %v2513
      %2515 = vmatprep.mubr.bf16.mxu0 %v1514
      %2516 = vmatmul.mubr.bf16.gmra.mrb[0].mxu0 %v1513
      %v2517 = vpop.f32.mrb[0].mxu0
      %v2518 = vadd.f32 0.0, %v2517
      %v2519 = vpop.f32.mrb[0].mxu0
      %v2520 = vadd.f32 0.0, %v2519
      %v2521 = vpop.f32.mrb[0].mxu0
      %v2522 = vadd.f32 0.0, %v2521
      %v2523 = vpop.f32.mrb[0].mxu0
      %v2524 = vadd.f32 0.0, %v2523
      %2525 = vmatprep.mubr.bf16.mxu0 %v1521
      %2526 = vmatmul.mubr.bf16.gmra.mrb[0].mxu0 %v1520
      %v2527 = vpop.f32.mrb[0].mxu0
      %v2528 = vadd.f32 0.0, %v2527
      %v2529 = vpop.f32.mrb[0].mxu0
      %v2530 = vadd.f32 0.0, %v2529
      %v2531 = vpop.f32.mrb[0].mxu0
      %v2532 = vadd.f32 0.0, %v2531
      %v2533 = vpop.f32.mrb[0].mxu0
      %v2534 = vadd.f32 0.0, %v2533
      %2535 = vmatprep.mubr.bf16.mxu0 %v1528
      %2536 = vmatmul.mubr.bf16.gmra.mrb[0].mxu0 %v1527
      %v2537 = vpop.f32.mrb[0].mxu0
      %v2538 = vadd.f32 0.0, %v2537
      %v2539 = vpop.f32.mrb[0].mxu0
      %v2540 = vadd.f32 0.0, %v2539
      %v2541 = vpop.f32.mrb[0].mxu0
      %v2542 = vadd.f32 0.0, %v2541
      %v2543 = vpop.f32.mrb[0].mxu0
      %v2544 = vadd.f32 0.0, %v2543
      %2545 = vmatprep.mubr.bf16.mxu0 %v1535
      %2546 = vmatmul.mubr.bf16.gmra.mrb[0].mxu0 %v1534
      %v2547 = vpop.f32.mrb[0].mxu0
      %v2548 = vadd.f32 0.0, %v2547
      %v2549 = vpop.f32.mrb[0].mxu0
      %v2550 = vadd.f32 0.0, %v2549
      %v2551 = vpop.f32.mrb[0].mxu0
      %v2552 = vadd.f32 0.0, %v2551
      %v2553 = vpop.f32.mrb[0].mxu0
      %v2554 = vadd.f32 0.0, %v2553
      %2555 = vmatprep.mubr.bf16.mxu0 %v1542
      %2556 = vmatmul.mubr.bf16.gmra.mrb[0].mxu0 %v1541
      %v2557 = vpop.f32.mrb[0].mxu0
      %v2558 = vadd.f32 0.0, %v2557
      %v2559 = vpop.f32.mrb[0].mxu0
      %v2560 = vadd.f32 0.0, %v2559
      %v2561 = vpop.f32.mrb[0].mxu0
      %v2562 = vadd.f32 0.0, %v2561
      %v2563 = vpop.f32.mrb[0].mxu0
      %v2564 = vadd.f32 0.0, %v2563
      %2565 = vmatprep.mubr.bf16.mxu0 %v1549
      %2566 = vmatmul.mubr.bf16.gmra.mrb[0].mxu0 %v1548
      %v2567 = vpop.f32.mrb[0].mxu0
      %v2568 = vadd.f32 0.0, %v2567
      %v2569 = vpop.f32.mrb[0].mxu0
      %v2570 = vadd.f32 0.0, %v2569
      %v2571 = vpop.f32.mrb[0].mxu0
      %v2572 = vadd.f32 0.0, %v2571
      %v2573 = vpop.f32.mrb[0].mxu0
      %v2574 = vadd.f32 0.0, %v2573
      %2575 = vmatprep.mubr.bf16.mxu0 %v1556
      %2576 = vmatmul.mubr.bf16.gmra.mrb[0].mxu0 %v1555
      %v2577 = vpop.f32.mrb[0].mxu0
      %v2578 = vadd.f32 0.0, %v2577
      %v2579 = vpop.f32.mrb[0].mxu0
      %v2580 = vadd.f32 0.0, %v2579
      %v2581 = vpop.f32.mrb[0].mxu0
      %v2582 = vadd.f32 0.0, %v2581
      %v2583 = vpop.f32.mrb[0].mxu0
      %v2584 = vadd.f32 0.0, %v2583
      %2585 = vmatprep.mubr.bf16.mxu0 %v1563
      %2586 = vmatmul.mubr.bf16.gmra.mrb[0].mxu0 %v1562
      %v2587 = vpop.f32.mrb[0].mxu0
      %v2588 = vadd.f32 0.0, %v2587
      %v2589 = vpop.f32.mrb[0].mxu0
      %v2590 = vadd.f32 0.0, %v2589
      %v2591 = vpop.f32.mrb[0].mxu0
      %v2592 = vadd.f32 0.0, %v2591
      %v2593 = vpop.f32.mrb[0].mxu0
      %v2594 = vadd.f32 0.0, %v2593
      %2595 = vmatprep.mubr.bf16.mxu0 %v1570
      %2596 = vmatmul.mubr.bf16.gmra.mrb[0].mxu0 %v1569
      %v2597 = vpop.f32.mrb[0].mxu0
      %v2598 = vadd.f32 0.0, %v2597
      %v2599 = vpop.f32.mrb[0].mxu0
      %v2600 = vadd.f32 0.0, %v2599
      %v2601 = vpop.f32.mrb[0].mxu0
      %v2602 = vadd.f32 0.0, %v2601
      %v2603 = vpop.f32.mrb[0].mxu0
      %v2604 = vadd.f32 0.0, %v2603
      %2605 = vmatprep.mubr.bf16.mxu0 %v1577
      %2606 = vmatmul.mubr.bf16.gmra.mrb[0].mxu0 %v1576
      %v2607 = vpop.f32.mrb[0].mxu0
      %v2608 = vadd.f32 0.0, %v2607
      %v2609 = vpop.f32.mrb[0].mxu0
      %v2610 = vadd.f32 0.0, %v2609
      %v2611 = vpop.f32.mrb[0].mxu0
      %v2612 = vadd.f32 0.0, %v2611
      %v2613 = vpop.f32.mrb[0].mxu0
      %v2614 = vadd.f32 0.0, %v2613
      %2615 = vmatprep.mubr.bf16.mxu0 %v1584
      %2616 = vmatmul.mubr.bf16.gmra.mrb[0].mxu0 %v1583
      %v2617 = vpop.f32.mrb[0].mxu0
      %v2618 = vadd.f32 0.0, %v2617
      %v2619 = vpop.f32.mrb[0].mxu0
      %v2620 = vadd.f32 0.0, %v2619
      %v2621 = vpop.f32.mrb[0].mxu0
      %v2622 = vadd.f32 0.0, %v2621
      %v2623 = vpop.f32.mrb[0].mxu0
      %v2624 = vadd.f32 0.0, %v2623
      %2625 = vmatprep.mubr.bf16.mxu0 %v1591
      %2626 = vmatmul.mubr.bf16.gmra.mrb[0].mxu0 %v1590
      %v2627 = vpop.f32.mrb[0].mxu0
      %v2628 = vadd.f32 0.0, %v2627
      %v2629 = vpop.f32.mrb[0].mxu0
      %v2630 = vadd.f32 0.0, %v2629
      %v2631 = vpop.f32.mrb[0].mxu0
      %v2632 = vadd.f32 0.0, %v2631
      %v2633 = vpop.f32.mrb[0].mxu0
      %v2634 = vadd.f32 0.0, %v2633
      %2635 = vmatprep.mubr.bf16.mxu0 %v1598
      %2636 = vmatmul.mubr.bf16.gmra.mrb[0].mxu0 %v1597
      %v2637 = vpop.f32.mrb[0].mxu0
      %v2638 = vadd.f32 0.0, %v2637
      %v2639 = vpop.f32.mrb[0].mxu0
      %v2640 = vadd.f32 0.0, %v2639
      %v2641 = vpop.f32.mrb[0].mxu0
      %v2642 = vadd.f32 0.0, %v2641
      %v2643 = vpop.f32.mrb[0].mxu0
      %v2644 = vadd.f32 0.0, %v2643
      %2645 = vmatprep.mubr.bf16.mxu0 %v1605
      %2646 = vmatmul.mubr.bf16.gmra.mrb[0].mxu0 %v1604
      %v2647 = vpop.f32.mrb[0].mxu0
      %v2648 = vadd.f32 0.0, %v2647
      %v2649 = vpop.f32.mrb[0].mxu0
      %v2650 = vadd.f32 0.0, %v2649
      %v2651 = vpop.f32.mrb[0].mxu0
      %v2652 = vadd.f32 0.0, %v2651
      %v2653 = vpop.f32.mrb[0].mxu0
      %v2654 = vadd.f32 0.0, %v2653
      %2655 = vmatprep.mubr.bf16.mxu0 %v1612
      %2656 = vmatmul.mubr.bf16.gmra.mrb[0].mxu0 %v1611
      %v2657 = vpop.f32.mrb[0].mxu0
      %v2658 = vadd.f32 0.0, %v2657
      %v2659 = vpop.f32.mrb[0].mxu0
      %v2660 = vadd.f32 0.0, %v2659
      %v2661 = vpop.f32.mrb[0].mxu0
      %v2662 = vadd.f32 0.0, %v2661
      %v2663 = vpop.f32.mrb[0].mxu0
      %v2664 = vadd.f32 0.0, %v2663
      %2665 = vmatprep.mubr.bf16.mxu0 %v1619
      %2666 = vmatmul.mubr.bf16.gmra.mrb[0].mxu0 %v1618
      %v2667 = vpop.f32.mrb[0].mxu0
      %v2668 = vadd.f32 0.0, %v2667
      %v2669 = vpop.f32.mrb[0].mxu0
      %v2670 = vadd.f32 0.0, %v2669
      %v2671 = vpop.f32.mrb[0].mxu0
      %v2672 = vadd.f32 0.0, %v2671
      %v2673 = vpop.f32.mrb[0].mxu0
      %v2674 = vadd.f32 0.0, %v2673
      %2675 = vmatprep.mubr.bf16.mxu0 %v1626
      %2676 = vmatmul.mubr.bf16.gmra.mrb[0].mxu0 %v1625
      %v2677 = vpop.f32.mrb[0].mxu0
      %v2678 = vadd.f32 0.0, %v2677
      %v2679 = vpop.f32.mrb[0].mxu0
      %v2680 = vadd.f32 0.0, %v2679
      %v2681 = vpop.f32.mrb[0].mxu0
      %v2682 = vadd.f32 0.0, %v2681
      %v2683 = vpop.f32.mrb[0].mxu0
      %v2684 = vadd.f32 0.0, %v2683
      %2685 = vmatprep.mubr.bf16.mxu0 %v1633
      %2686 = vmatmul.mubr.bf16.gmra.mrb[0].mxu0 %v1632
      %v2687 = vpop.f32.mrb[0].mxu0
      %v2688 = vadd.f32 0.0, %v2687
      %v2689 = vpop.f32.mrb[0].mxu0
      %v2690 = vadd.f32 0.0, %v2689
      %v2691 = vpop.f32.mrb[0].mxu0
      %v2692 = vadd.f32 0.0, %v2691
      %v2693 = vpop.f32.mrb[0].mxu0
      %v2694 = vadd.f32 0.0, %v2693
      %2695 = vmatprep.mubr.bf16.mxu0 %v1640
      %2696 = vmatmul.mubr.bf16.gmra.mrb[0].mxu0 %v1639
      %v2697 = vpop.f32.mrb[0].mxu0
      %v2698 = vadd.f32 0.0, %v2697
      %v2699 = vpop.f32.mrb[0].mxu0
      %v2700 = vadd.f32 0.0, %v2699
      %v2701 = vpop.f32.mrb[0].mxu0
      %v2702 = vadd.f32 0.0, %v2701
      %v2703 = vpop.f32.mrb[0].mxu0
      %v2704 = vadd.f32 0.0, %v2703
      %2705 = vmatprep.mubr.bf16.mxu0 %v1647
      %2706 = vmatmul.mubr.bf16.gmra.mrb[0].mxu0 %v1646
      %v2707 = vpop.f32.mrb[0].mxu0
      %v2708 = vadd.f32 0.0, %v2707
      %v2709 = vpop.f32.mrb[0].mxu0
      %v2710 = vadd.f32 0.0, %v2709
      %v2711 = vpop.f32.mrb[0].mxu0
      %v2712 = vadd.f32 0.0, %v2711
      %v2713 = vpop.f32.mrb[0].mxu0
      %v2714 = vadd.f32 0.0, %v2713
      %2715 = vmatprep.mubr.bf16.mxu0 %v1654
      %2716 = vmatmul.mubr.bf16.gmra.mrb[0].mxu0 %v1653
      %v2717 = vpop.f32.mrb[0].mxu0
      %v2718 = vadd.f32 0.0, %v2717
      %v2719 = vpop.f32.mrb[0].mxu0
      %v2720 = vadd.f32 0.0, %v2719
      %v2721 = vpop.f32.mrb[0].mxu0
      %v2722 = vadd.f32 0.0, %v2721
      %v2723 = vpop.f32.mrb[0].mxu0
      %v2724 = vadd.f32 0.0, %v2723
      %2725 = vmatprep.mubr.bf16.mxu0 %v1661
      %2726 = vmatmul.mubr.bf16.gmra.mrb[0].mxu0 %v1660
      %v2727 = vpop.f32.mrb[0].mxu0
      %v2728 = vadd.f32 0.0, %v2727
      %v2729 = vpop.f32.mrb[0].mxu0
      %v2730 = vadd.f32 0.0, %v2729
      %v2731 = vpop.f32.mrb[0].mxu0
      %v2732 = vadd.f32 0.0, %v2731
      %v2733 = vpop.f32.mrb[0].mxu0
      %v2734 = vadd.f32 0.0, %v2733
      %2735 = vdwg.mxu0
      %2736 = vmatprep.subr.bf16.mxu0 %v2232
      %2737 = vmatpush1.bf16.msra.mxu0 %v2231
      %2738 = vmatprep.subr.bf16.mxu0 %v2234
      %2739 = vmatpush1.bf16.msra.mxu0 %v2233
      %2740 = vmatprep.subr.bf16.mxu0 %v2236
      %2741 = vmatpush1.bf16.msra.mxu0 %v2235
      %2742 = vmatprep.subr.bf16.mxu0 %v2238
      %2743 = vmatpush1.bf16.msra.mxu0 %v2237
      %2744 = vmatprep.subr.bf16.mxu0 %v2240
      %2745 = vmatpush1.bf16.msra.mxu0 %v2239
      %2746 = vmatprep.subr.bf16.mxu0 %v2242
      %2747 = vmatpush1.bf16.msra.mxu0 %v2241
      %2748 = vmatprep.subr.bf16.mxu0 %v2244
      %2749 = vmatpush1.bf16.msra.mxu0 %v2243
      %2750 = vmatprep.subr.bf16.mxu0 %v2246
      %2751 = vmatpush1.bf16.msra.mxu0 %v2245
      %2752 = vmatprep.subr.bf16.mxu0 %v2248
      %2753 = vmatpush1.bf16.msra.mxu0 %v2247
      %2754 = vmatprep.subr.bf16.mxu0 %v2250
      %2755 = vmatpush1.bf16.msra.mxu0 %v2249
      %2756 = vmatprep.subr.bf16.mxu0 %v2252
      %2757 = vmatpush1.bf16.msra.mxu0 %v2251
      %2758 = vmatprep.subr.bf16.mxu0 %v2254
      %2759 = vmatpush1.bf16.msra.mxu0 %v2253
      %2760 = vmatprep.subr.bf16.mxu0 %v2256
      %2761 = vmatpush1.bf16.msra.mxu0 %v2255
      %2762 = vmatprep.subr.bf16.mxu0 %v2258
      %2763 = vmatpush1.bf16.msra.mxu0 %v2257
      %2764 = vmatprep.subr.bf16.mxu0 %v2260
      %2765 = vmatpush1.bf16.msra.mxu0 %v2259
      %2766 = vmatprep.subr.bf16.mxu0 %v2262
      %2767 = vmatpush1.bf16.msra.mxu0 %v2261
      %2768 = vmatprep.mubr.bf16.mxu0 %v1474
      %2769 = vmatmul.mubr.bf16.gmra.mrb[0].mxu0 %v1473
      %v2770 = vpop.f32.mrb[0].mxu0
      %v2771 = vadd.f32 %v2458, %v2770
      %v2772 = vpop.f32.mrb[0].mxu0
      %v2773 = vadd.f32 %v2460, %v2772
      %v2774 = vpop.f32.mrb[0].mxu0
      %v2775 = vadd.f32 %v2462, %v2774
      %v2776 = vpop.f32.mrb[0].mxu0
      %v2777 = vadd.f32 %v2464, %v2776
      %2778 = vmatprep.mubr.bf16.mxu0 %v1481
      %2779 = vmatmul.mubr.bf16.gmra.mrb[0].mxu0 %v1480
      %v2780 = vpop.f32.mrb[0].mxu0
      %v2781 = vadd.f32 %v2468, %v2780
      %v2782 = vpop.f32.mrb[0].mxu0
      %v2783 = vadd.f32 %v2470, %v2782
      %v2784 = vpop.f32.mrb[0].mxu0
      %v2785 = vadd.f32 %v2472, %v2784
      %v2786 = vpop.f32.mrb[0].mxu0
      %v2787 = vadd.f32 %v2474, %v2786
      %2788 = vmatprep.mubr.bf16.mxu0 %v1488
      %2789 = vmatmul.mubr.bf16.gmra.mrb[0].mxu0 %v1487
      %v2790 = vpop.f32.mrb[0].mxu0
      %v2791 = vadd.f32 %v2478, %v2790
      %v2792 = vpop.f32.mrb[0].mxu0
      %v2793 = vadd.f32 %v2480, %v2792
      %v2794 = vpop.f32.mrb[0].mxu0
      %v2795 = vadd.f32 %v2482, %v2794
      %v2796 = vpop.f32.mrb[0].mxu0
      %v2797 = vadd.f32 %v2484, %v2796
      %2798 = vmatprep.mubr.bf16.mxu0 %v1495
      %2799 = vmatmul.mubr.bf16.gmra.mrb[0].mxu0 %v1494
      %v2800 = vpop.f32.mrb[0].mxu0
      %v2801 = vadd.f32 %v2488, %v2800
      %v2802 = vpop.f32.mrb[0].mxu0
      %v2803 = vadd.f32 %v2490, %v2802
      %v2804 = vpop.f32.mrb[0].mxu0
      %v2805 = vadd.f32 %v2492, %v2804
      %v2806 = vpop.f32.mrb[0].mxu0
      %v2807 = vadd.f32 %v2494, %v2806
      %2808 = vmatprep.mubr.bf16.mxu0 %v1502
      %2809 = vmatmul.mubr.bf16.gmra.mrb[0].mxu0 %v1501
      %v2810 = vpop.f32.mrb[0].mxu0
      %v2811 = vadd.f32 %v2498, %v2810
      %v2812 = vpop.f32.mrb[0].mxu0
      %v2813 = vadd.f32 %v2500, %v2812
      %v2814 = vpop.f32.mrb[0].mxu0
      %v2815 = vadd.f32 %v2502, %v2814
      %v2816 = vpop.f32.mrb[0].mxu0
      %v2817 = vadd.f32 %v2504, %v2816
      %2818 = vmatprep.mubr.bf16.mxu0 %v1509
      %2819 = vmatmul.mubr.bf16.gmra.mrb[0].mxu0 %v1508
      %v2820 = vpop.f32.mrb[0].mxu0
      %v2821 = vadd.f32 %v2508, %v2820
      %v2822 = vpop.f32.mrb[0].mxu0
      %v2823 = vadd.f32 %v2510, %v2822
      %v2824 = vpop.f32.mrb[0].mxu0
      %v2825 = vadd.f32 %v2512, %v2824
      %v2826 = vpop.f32.mrb[0].mxu0
      %v2827 = vadd.f32 %v2514, %v2826
      %2828 = vmatprep.mubr.bf16.mxu0 %v1516
      %2829 = vmatmul.mubr.bf16.gmra.mrb[0].mxu0 %v1515
      %v2830 = vpop.f32.mrb[0].mxu0
      %v2831 = vadd.f32 %v2518, %v2830
      %v2832 = vpop.f32.mrb[0].mxu0
      %v2833 = vadd.f32 %v2520, %v2832
      %v2834 = vpop.f32.mrb[0].mxu0
      %v2835 = vadd.f32 %v2522, %v2834
      %v2836 = vpop.f32.mrb[0].mxu0
      %v2837 = vadd.f32 %v2524, %v2836
      %2838 = vmatprep.mubr.bf16.mxu0 %v1523
      %2839 = vmatmul.mubr.bf16.gmra.mrb[0].mxu0 %v1522
      %v2840 = vpop.f32.mrb[0].mxu0
      %v2841 = vadd.f32 %v2528, %v2840
      %v2842 = vpop.f32.mrb[0].mxu0
      %v2843 = vadd.f32 %v2530, %v2842
      %v2844 = vpop.f32.mrb[0].mxu0
      %v2845 = vadd.f32 %v2532, %v2844
      %v2846 = vpop.f32.mrb[0].mxu0
      %v2847 = vadd.f32 %v2534, %v2846
      %2848 = vmatprep.mubr.bf16.mxu0 %v1530
      %2849 = vmatmul.mubr.bf16.gmra.mrb[0].mxu0 %v1529
      %v2850 = vpop.f32.mrb[0].mxu0
      %v2851 = vadd.f32 %v2538, %v2850
      %v2852 = vpop.f32.mrb[0].mxu0
      %v2853 = vadd.f32 %v2540, %v2852
      %v2854 = vpop.f32.mrb[0].mxu0
      %v2855 = vadd.f32 %v2542, %v2854
      %v2856 = vpop.f32.mrb[0].mxu0
      %v2857 = vadd.f32 %v2544, %v2856
      %2858 = vmatprep.mubr.bf16.mxu0 %v1537
      %2859 = vmatmul.mubr.bf16.gmra.mrb[0].mxu0 %v1536
      %v2860 = vpop.f32.mrb[0].mxu0
      %v2861 = vadd.f32 %v2548, %v2860
      %v2862 = vpop.f32.mrb[0].mxu0
      %v2863 = vadd.f32 %v2550, %v2862
      %v2864 = vpop.f32.mrb[0].mxu0
      %v2865 = vadd.f32 %v2552, %v2864
      %v2866 = vpop.f32.mrb[0].mxu0
      %v2867 = vadd.f32 %v2554, %v2866
      %2868 = vmatprep.mubr.bf16.mxu0 %v1544
      %2869 = vmatmul.mubr.bf16.gmra.mrb[0].mxu0 %v1543
      %v2870 = vpop.f32.mrb[0].mxu0
      %v2871 = vadd.f32 %v2558, %v2870
      %v2872 = vpop.f32.mrb[0].mxu0
      %v2873 = vadd.f32 %v2560, %v2872
      %v2874 = vpop.f32.mrb[0].mxu0
      %v2875 = vadd.f32 %v2562, %v2874
      %v2876 = vpop.f32.mrb[0].mxu0
      %v2877 = vadd.f32 %v2564, %v2876
      %2878 = vmatprep.mubr.bf16.mxu0 %v1551
      %2879 = vmatmul.mubr.bf16.gmra.mrb[0].mxu0 %v1550
      %v2880 = vpop.f32.mrb[0].mxu0
      %v2881 = vadd.f32 %v2568, %v2880
      %v2882 = vpop.f32.mrb[0].mxu0
      %v2883 = vadd.f32 %v2570, %v2882
      %v2884 = vpop.f32.mrb[0].mxu0
      %v2885 = vadd.f32 %v2572, %v2884
      %v2886 = vpop.f32.mrb[0].mxu0
      %v2887 = vadd.f32 %v2574, %v2886
      %2888 = vmatprep.mubr.bf16.mxu0 %v1558
      %2889 = vmatmul.mubr.bf16.gmra.mrb[0].mxu0 %v1557
      %v2890 = vpop.f32.mrb[0].mxu0
      %v2891 = vadd.f32 %v2578, %v2890
      %v2892 = vpop.f32.mrb[0].mxu0
      %v2893 = vadd.f32 %v2580, %v2892
      %v2894 = vpop.f32.mrb[0].mxu0
      %v2895 = vadd.f32 %v2582, %v2894
      %v2896 = vpop.f32.mrb[0].mxu0
      %v2897 = vadd.f32 %v2584, %v2896
      %2898 = vmatprep.mubr.bf16.mxu0 %v1565
      %2899 = vmatmul.mubr.bf16.gmra.mrb[0].mxu0 %v1564
      %v2900 = vpop.f32.mrb[0].mxu0
      %v2901 = vadd.f32 %v2588, %v2900
      %v2902 = vpop.f32.mrb[0].mxu0
      %v2903 = vadd.f32 %v2590, %v2902
      %v2904 = vpop.f32.mrb[0].mxu0
      %v2905 = vadd.f32 %v2592, %v2904
      %v2906 = vpop.f32.mrb[0].mxu0
      %v2907 = vadd.f32 %v2594, %v2906
      %2908 = vmatprep.mubr.bf16.mxu0 %v1572
      %2909 = vmatmul.mubr.bf16.gmra.mrb[0].mxu0 %v1571
      %v2910 = vpop.f32.mrb[0].mxu0
      %v2911 = vadd.f32 %v2598, %v2910
      %v2912 = vpop.f32.mrb[0].mxu0
      %v2913 = vadd.f32 %v2600, %v2912
      %v2914 = vpop.f32.mrb[0].mxu0
      %v2915 = vadd.f32 %v2602, %v2914
      %v2916 = vpop.f32.mrb[0].mxu0
      %v2917 = vadd.f32 %v2604, %v2916
      %2918 = vmatprep.mubr.bf16.mxu0 %v1579
      %2919 = vmatmul.mubr.bf16.gmra.mrb[0].mxu0 %v1578
      %v2920 = vpop.f32.mrb[0].mxu0
      %v2921 = vadd.f32 %v2608, %v2920
      %v2922 = vpop.f32.mrb[0].mxu0
      %v2923 = vadd.f32 %v2610, %v2922
      %v2924 = vpop.f32.mrb[0].mxu0
      %v2925 = vadd.f32 %v2612, %v2924
      %v2926 = vpop.f32.mrb[0].mxu0
      %v2927 = vadd.f32 %v2614, %v2926
      %2928 = vmatprep.mubr.bf16.mxu0 %v1586
      %2929 = vmatmul.mubr.bf16.gmra.mrb[0].mxu0 %v1585
      %v2930 = vpop.f32.mrb[0].mxu0
      %v2931 = vadd.f32 %v2618, %v2930
      %v2932 = vpop.f32.mrb[0].mxu0
      %v2933 = vadd.f32 %v2620, %v2932
      %v2934 = vpop.f32.mrb[0].mxu0
      %v2935 = vadd.f32 %v2622, %v2934
      %v2936 = vpop.f32.mrb[0].mxu0
      %v2937 = vadd.f32 %v2624, %v2936
      %2938 = vmatprep.mubr.bf16.mxu0 %v1593
      %2939 = vmatmul.mubr.bf16.gmra.mrb[0].mxu0 %v1592
      %v2940 = vpop.f32.mrb[0].mxu0
      %v2941 = vadd.f32 %v2628, %v2940
      %v2942 = vpop.f32.mrb[0].mxu0
      %v2943 = vadd.f32 %v2630, %v2942
      %v2944 = vpop.f32.mrb[0].mxu0
      %v2945 = vadd.f32 %v2632, %v2944
      %v2946 = vpop.f32.mrb[0].mxu0
      %v2947 = vadd.f32 %v2634, %v2946
      %2948 = vmatprep.mubr.bf16.mxu0 %v1600
      %2949 = vmatmul.mubr.bf16.gmra.mrb[0].mxu0 %v1599
      %v2950 = vpop.f32.mrb[0].mxu0
      %v2951 = vadd.f32 %v2638, %v2950
      %v2952 = vpop.f32.mrb[0].mxu0
      %v2953 = vadd.f32 %v2640, %v2952
      %v2954 = vpop.f32.mrb[0].mxu0
      %v2955 = vadd.f32 %v2642, %v2954
      %v2956 = vpop.f32.mrb[0].mxu0
      %v2957 = vadd.f32 %v2644, %v2956
      %2958 = vmatprep.mubr.bf16.mxu0 %v1607
      %2959 = vmatmul.mubr.bf16.gmra.mrb[0].mxu0 %v1606
      %v2960 = vpop.f32.mrb[0].mxu0
      %v2961 = vadd.f32 %v2648, %v2960
      %v2962 = vpop.f32.mrb[0].mxu0
      %v2963 = vadd.f32 %v2650, %v2962
      %v2964 = vpop.f32.mrb[0].mxu0
      %v2965 = vadd.f32 %v2652, %v2964
      %v2966 = vpop.f32.mrb[0].mxu0
      %v2967 = vadd.f32 %v2654, %v2966
      %2968 = vmatprep.mubr.bf16.mxu0 %v1614
      %2969 = vmatmul.mubr.bf16.gmra.mrb[0].mxu0 %v1613
      %v2970 = vpop.f32.mrb[0].mxu0
      %v2971 = vadd.f32 %v2658, %v2970
      %v2972 = vpop.f32.mrb[0].mxu0
      %v2973 = vadd.f32 %v2660, %v2972
      %v2974 = vpop.f32.mrb[0].mxu0
      %v2975 = vadd.f32 %v2662, %v2974
      %v2976 = vpop.f32.mrb[0].mxu0
      %v2977 = vadd.f32 %v2664, %v2976
      %2978 = vmatprep.mubr.bf16.mxu0 %v1621
      %2979 = vmatmul.mubr.bf16.gmra.mrb[0].mxu0 %v1620
      %v2980 = vpop.f32.mrb[0].mxu0
      %v2981 = vadd.f32 %v2668, %v2980
      %v2982 = vpop.f32.mrb[0].mxu0
      %v2983 = vadd.f32 %v2670, %v2982
      %v2984 = vpop.f32.mrb[0].mxu0
      %v2985 = vadd.f32 %v2672, %v2984
      %v2986 = vpop.f32.mrb[0].mxu0
      %v2987 = vadd.f32 %v2674, %v2986
      %2988 = vmatprep.mubr.bf16.mxu0 %v1628
      %2989 = vmatmul.mubr.bf16.gmra.mrb[0].mxu0 %v1627
      %v2990 = vpop.f32.mrb[0].mxu0
      %v2991 = vadd.f32 %v2678, %v2990
      %v2992 = vpop.f32.mrb[0].mxu0
      %v2993 = vadd.f32 %v2680, %v2992
      %v2994 = vpop.f32.mrb[0].mxu0
      %v2995 = vadd.f32 %v2682, %v2994
      %v2996 = vpop.f32.mrb[0].mxu0
      %v2997 = vadd.f32 %v2684, %v2996
      %2998 = vmatprep.mubr.bf16.mxu0 %v1635
      %2999 = vmatmul.mubr.bf16.gmra.mrb[0].mxu0 %v1634
      %v3000 = vpop.f32.mrb[0].mxu0
      %v3001 = vadd.f32 %v2688, %v3000
      %v3002 = vpop.f32.mrb[0].mxu0
      %v3003 = vadd.f32 %v2690, %v3002
      %v3004 = vpop.f32.mrb[0].mxu0
      %v3005 = vadd.f32 %v2692, %v3004
      %v3006 = vpop.f32.mrb[0].mxu0
      %v3007 = vadd.f32 %v2694, %v3006
      %3008 = vmatprep.mubr.bf16.mxu0 %v1642
      %3009 = vmatmul.mubr.bf16.gmra.mrb[0].mxu0 %v1641
      %v3010 = vpop.f32.mrb[0].mxu0
      %v3011 = vadd.f32 %v2698, %v3010
      %v3012 = vpop.f32.mrb[0].mxu0
      %v3013 = vadd.f32 %v2700, %v3012
      %v3014 = vpop.f32.mrb[0].mxu0
      %v3015 = vadd.f32 %v2702, %v3014
      %v3016 = vpop.f32.mrb[0].mxu0
      %v3017 = vadd.f32 %v2704, %v3016
      %3018 = vmatprep.mubr.bf16.mxu0 %v1649
      %3019 = vmatmul.mubr.bf16.gmra.mrb[0].mxu0 %v1648
      %v3020 = vpop.f32.mrb[0].mxu0
      %v3021 = vadd.f32 %v2708, %v3020
      %v3022 = vpop.f32.mrb[0].mxu0
      %v3023 = vadd.f32 %v2710, %v3022
      %v3024 = vpop.f32.mrb[0].mxu0
      %v3025 = vadd.f32 %v2712, %v3024
      %v3026 = vpop.f32.mrb[0].mxu0
      %v3027 = vadd.f32 %v2714, %v3026
      %3028 = vmatprep.mubr.bf16.mxu0 %v1656
      %3029 = vmatmul.mubr.bf16.gmra.mrb[0].mxu0 %v1655
      %v3030 = vpop.f32.mrb[0].mxu0
      %v3031 = vadd.f32 %v2718, %v3030
      %v3032 = vpop.f32.mrb[0].mxu0
      %v3033 = vadd.f32 %v2720, %v3032
      %v3034 = vpop.f32.mrb[0].mxu0
      %v3035 = vadd.f32 %v2722, %v3034
      %v3036 = vpop.f32.mrb[0].mxu0
      %v3037 = vadd.f32 %v2724, %v3036
      %3038 = vmatprep.mubr.bf16.mxu0 %v1663
      %3039 = vmatmul.mubr.bf16.gmra.mrb[0].mxu0 %v1662
      %v3040 = vpop.f32.mrb[0].mxu0
      %v3041 = vadd.f32 %v2728, %v3040
      %v3042 = vpop.f32.mrb[0].mxu0
      %v3043 = vadd.f32 %v2730, %v3042
      %v3044 = vpop.f32.mrb[0].mxu0
      %v3045 = vadd.f32 %v2732, %v3044
      %v3046 = vpop.f32.mrb[0].mxu0
      %v3047 = vadd.f32 %v2734, %v3046
      %3048 = vdwg.mxu0
      %3049 = vmatprep.subr.bf16.mxu0 %v2264
      %3050 = vmatpush1.bf16.msra.mxu0 %v2263
      %3051 = vmatprep.subr.bf16.mxu0 %v2266
      %3052 = vmatpush1.bf16.msra.mxu0 %v2265
      %3053 = vmatprep.subr.bf16.mxu0 %v2268
      %3054 = vmatpush1.bf16.msra.mxu0 %v2267
      %3055 = vmatprep.subr.bf16.mxu0 %v2270
      %3056 = vmatpush1.bf16.msra.mxu0 %v2269
      %3057 = vmatprep.subr.bf16.mxu0 %v2272
      %3058 = vmatpush1.bf16.msra.mxu0 %v2271
      %3059 = vmatprep.subr.bf16.mxu0 %v2274
      %3060 = vmatpush1.bf16.msra.mxu0 %v2273
      %3061 = vmatprep.subr.bf16.mxu0 %v2276
      %3062 = vmatpush1.bf16.msra.mxu0 %v2275
      %3063 = vmatprep.subr.bf16.mxu0 %v2278
      %3064 = vmatpush1.bf16.msra.mxu0 %v2277
      %3065 = vmatprep.subr.bf16.mxu0 %v2280
      %3066 = vmatpush1.bf16.msra.mxu0 %v2279
      %3067 = vmatprep.subr.bf16.mxu0 %v2282
      %3068 = vmatpush1.bf16.msra.mxu0 %v2281
      %3069 = vmatprep.subr.bf16.mxu0 %v2284
      %3070 = vmatpush1.bf16.msra.mxu0 %v2283
      %3071 = vmatprep.subr.bf16.mxu0 %v2286
      %3072 = vmatpush1.bf16.msra.mxu0 %v2285
      %3073 = vmatprep.subr.bf16.mxu0 %v2288
      %3074 = vmatpush1.bf16.msra.mxu0 %v2287
      %3075 = vmatprep.subr.bf16.mxu0 %v2290
      %3076 = vmatpush1.bf16.msra.mxu0 %v2289
      %3077 = vmatprep.subr.bf16.mxu0 %v2292
      %3078 = vmatpush1.bf16.msra.mxu0 %v2291
      %3079 = vmatprep.subr.bf16.mxu0 %v2294
      %3080 = vmatpush1.bf16.msra.mxu0 %v2293
      %3081 = vmatprep.mubr.bf16.mxu0 %v1476
      %3082 = vmatmul.mubr.bf16.gmra.mrb[0].mxu0 %v1475
      %v3083 = vpop.f32.mrb[0].mxu0
      %v3084 = vadd.f32 %v2771, %v3083
      %v3085 = vpop.f32.mrb[0].mxu0
      %v3086 = vadd.f32 %v2773, %v3085
      %v3087 = vpop.f32.mrb[0].mxu0
      %v3088 = vadd.f32 %v2775, %v3087
      %v3089 = vpop.f32.mrb[0].mxu0
      %v3090 = vadd.f32 %v2777, %v3089
      %3091 = vmatprep.mubr.bf16.mxu0 %v1483
      %3092 = vmatmul.mubr.bf16.gmra.mrb[0].mxu0 %v1482
      %v3093 = vpop.f32.mrb[0].mxu0
      %v3094 = vadd.f32 %v2781, %v3093
      %v3095 = vpop.f32.mrb[0].mxu0
      %v3096 = vadd.f32 %v2783, %v3095
      %v3097 = vpop.f32.mrb[0].mxu0
      %v3098 = vadd.f32 %v2785, %v3097
      %v3099 = vpop.f32.mrb[0].mxu0
      %v3100 = vadd.f32 %v2787, %v3099
      %3101 = vmatprep.mubr.bf16.mxu0 %v1490
      %3102 = vmatmul.mubr.bf16.gmra.mrb[0].mxu0 %v1489
      %v3103 = vpop.f32.mrb[0].mxu0
      %v3104 = vadd.f32 %v2791, %v3103
      %v3105 = vpop.f32.mrb[0].mxu0
      %v3106 = vadd.f32 %v2793, %v3105
      %v3107 = vpop.f32.mrb[0].mxu0
      %v3108 = vadd.f32 %v2795, %v3107
      %v3109 = vpop.f32.mrb[0].mxu0
      %v3110 = vadd.f32 %v2797, %v3109
      %3111 = vmatprep.mubr.bf16.mxu0 %v1497
      %3112 = vmatmul.mubr.bf16.gmra.mrb[0].mxu0 %v1496
      %v3113 = vpop.f32.mrb[0].mxu0
      %v3114 = vadd.f32 %v2801, %v3113
      %v3115 = vpop.f32.mrb[0].mxu0
      %v3116 = vadd.f32 %v2803, %v3115
      %v3117 = vpop.f32.mrb[0].mxu0
      %v3118 = vadd.f32 %v2805, %v3117
      %v3119 = vpop.f32.mrb[0].mxu0
      %v3120 = vadd.f32 %v2807, %v3119
      %3121 = vmatprep.mubr.bf16.mxu0 %v1504
      %3122 = vmatmul.mubr.bf16.gmra.mrb[0].mxu0 %v1503
      %v3123 = vpop.f32.mrb[0].mxu0
      %v3124 = vadd.f32 %v2811, %v3123
      %v3125 = vpop.f32.mrb[0].mxu0
      %v3126 = vadd.f32 %v2813, %v3125
      %v3127 = vpop.f32.mrb[0].mxu0
      %v3128 = vadd.f32 %v2815, %v3127
      %v3129 = vpop.f32.mrb[0].mxu0
      %v3130 = vadd.f32 %v2817, %v3129
      %3131 = vmatprep.mubr.bf16.mxu0 %v1511
      %3132 = vmatmul.mubr.bf16.gmra.mrb[0].mxu0 %v1510
      %v3133 = vpop.f32.mrb[0].mxu0
      %v3134 = vadd.f32 %v2821, %v3133
      %v3135 = vpop.f32.mrb[0].mxu0
      %v3136 = vadd.f32 %v2823, %v3135
      %v3137 = vpop.f32.mrb[0].mxu0
      %v3138 = vadd.f32 %v2825, %v3137
      %v3139 = vpop.f32.mrb[0].mxu0
      %v3140 = vadd.f32 %v2827, %v3139
      %3141 = vmatprep.mubr.bf16.mxu0 %v1518
      %3142 = vmatmul.mubr.bf16.gmra.mrb[0].mxu0 %v1517
      %v3143 = vpop.f32.mrb[0].mxu0
      %v3144 = vadd.f32 %v2831, %v3143
      %v3145 = vpop.f32.mrb[0].mxu0
      %v3146 = vadd.f32 %v2833, %v3145
      %v3147 = vpop.f32.mrb[0].mxu0
      %v3148 = vadd.f32 %v2835, %v3147
      %v3149 = vpop.f32.mrb[0].mxu0
      %v3150 = vadd.f32 %v2837, %v3149
      %3151 = vmatprep.mubr.bf16.mxu0 %v1525
      %3152 = vmatmul.mubr.bf16.gmra.mrb[0].mxu0 %v1524
      %v3153 = vpop.f32.mrb[0].mxu0
      %v3154 = vadd.f32 %v2841, %v3153
      %v3155 = vpop.f32.mrb[0].mxu0
      %v3156 = vadd.f32 %v2843, %v3155
      %v3157 = vpop.f32.mrb[0].mxu0
      %v3158 = vadd.f32 %v2845, %v3157
      %v3159 = vpop.f32.mrb[0].mxu0
      %v3160 = vadd.f32 %v2847, %v3159
      %3161 = vmatprep.mubr.bf16.mxu0 %v1532
      %3162 = vmatmul.mubr.bf16.gmra.mrb[0].mxu0 %v1531
      %v3163 = vpop.f32.mrb[0].mxu0
      %v3164 = vadd.f32 %v2851, %v3163
      %v3165 = vpop.f32.mrb[0].mxu0
      %v3166 = vadd.f32 %v2853, %v3165
      %v3167 = vpop.f32.mrb[0].mxu0
      %v3168 = vadd.f32 %v2855, %v3167
      %v3169 = vpop.f32.mrb[0].mxu0
      %v3170 = vadd.f32 %v2857, %v3169
      %3171 = vmatprep.mubr.bf16.mxu0 %v1539
      %3172 = vmatmul.mubr.bf16.gmra.mrb[0].mxu0 %v1538
      %v3173 = vpop.f32.mrb[0].mxu0
      %v3174 = vadd.f32 %v2861, %v3173
      %v3175 = vpop.f32.mrb[0].mxu0
      %v3176 = vadd.f32 %v2863, %v3175
      %v3177 = vpop.f32.mrb[0].mxu0
      %v3178 = vadd.f32 %v2865, %v3177
      %v3179 = vpop.f32.mrb[0].mxu0
      %v3180 = vadd.f32 %v2867, %v3179
      %3181 = vmatprep.mubr.bf16.mxu0 %v1546
      %3182 = vmatmul.mubr.bf16.gmra.mrb[0].mxu0 %v1545
      %v3183 = vpop.f32.mrb[0].mxu0
      %v3184 = vadd.f32 %v2871, %v3183
      %v3185 = vpop.f32.mrb[0].mxu0
      %v3186 = vadd.f32 %v2873, %v3185
      %v3187 = vpop.f32.mrb[0].mxu0
      %v3188 = vadd.f32 %v2875, %v3187
      %v3189 = vpop.f32.mrb[0].mxu0
      %v3190 = vadd.f32 %v2877, %v3189
      %3191 = vmatprep.mubr.bf16.mxu0 %v1553
      %3192 = vmatmul.mubr.bf16.gmra.mrb[0].mxu0 %v1552
      %v3193 = vpop.f32.mrb[0].mxu0
      %v3194 = vadd.f32 %v2881, %v3193
      %v3195 = vpop.f32.mrb[0].mxu0
      %v3196 = vadd.f32 %v2883, %v3195
      %v3197 = vpop.f32.mrb[0].mxu0
      %v3198 = vadd.f32 %v2885, %v3197
      %v3199 = vpop.f32.mrb[0].mxu0
      %v3200 = vadd.f32 %v2887, %v3199
      %3201 = vmatprep.mubr.bf16.mxu0 %v1560
      %3202 = vmatmul.mubr.bf16.gmra.mrb[0].mxu0 %v1559
      %v3203 = vpop.f32.mrb[0].mxu0
      %v3204 = vadd.f32 %v2891, %v3203
      %v3205 = vpop.f32.mrb[0].mxu0
      %v3206 = vadd.f32 %v2893, %v3205
      %v3207 = vpop.f32.mrb[0].mxu0
      %v3208 = vadd.f32 %v2895, %v3207
      %v3209 = vpop.f32.mrb[0].mxu0
      %v3210 = vadd.f32 %v2897, %v3209
      %3211 = vmatprep.mubr.bf16.mxu0 %v1567
      %3212 = vmatmul.mubr.bf16.gmra.mrb[0].mxu0 %v1566
      %v3213 = vpop.f32.mrb[0].mxu0
      %v3214 = vadd.f32 %v2901, %v3213
      %v3215 = vpop.f32.mrb[0].mxu0
      %v3216 = vadd.f32 %v2903, %v3215
      %v3217 = vpop.f32.mrb[0].mxu0
      %v3218 = vadd.f32 %v2905, %v3217
      %v3219 = vpop.f32.mrb[0].mxu0
      %v3220 = vadd.f32 %v2907, %v3219
      %3221 = vmatprep.mubr.bf16.mxu0 %v1574
      %3222 = vmatmul.mubr.bf16.gmra.mrb[0].mxu0 %v1573
      %v3223 = vpop.f32.mrb[0].mxu0
      %v3224 = vadd.f32 %v2911, %v3223
      %v3225 = vpop.f32.mrb[0].mxu0
      %v3226 = vadd.f32 %v2913, %v3225
      %v3227 = vpop.f32.mrb[0].mxu0
      %v3228 = vadd.f32 %v2915, %v3227
      %v3229 = vpop.f32.mrb[0].mxu0
      %v3230 = vadd.f32 %v2917, %v3229
      %3231 = vmatprep.mubr.bf16.mxu0 %v1581
      %3232 = vmatmul.mubr.bf16.gmra.mrb[0].mxu0 %v1580
      %v3233 = vpop.f32.mrb[0].mxu0
      %v3234 = vadd.f32 %v2921, %v3233
      %v3235 = vpop.f32.mrb[0].mxu0
      %v3236 = vadd.f32 %v2923, %v3235
      %v3237 = vpop.f32.mrb[0].mxu0
      %v3238 = vadd.f32 %v2925, %v3237
      %v3239 = vpop.f32.mrb[0].mxu0
      %v3240 = vadd.f32 %v2927, %v3239
      %3241 = vmatprep.mubr.bf16.mxu0 %v1588
      %3242 = vmatmul.mubr.bf16.gmra.mrb[0].mxu0 %v1587
      %v3243 = vpop.f32.mrb[0].mxu0
      %v3244 = vadd.f32 %v2931, %v3243
      %v3245 = vpop.f32.mrb[0].mxu0
      %v3246 = vadd.f32 %v2933, %v3245
      %v3247 = vpop.f32.mrb[0].mxu0
      %v3248 = vadd.f32 %v2935, %v3247
      %v3249 = vpop.f32.mrb[0].mxu0
      %v3250 = vadd.f32 %v2937, %v3249
      %3251 = vmatprep.mubr.bf16.mxu0 %v1595
      %3252 = vmatmul.mubr.bf16.gmra.mrb[0].mxu0 %v1594
      %v3253 = vpop.f32.mrb[0].mxu0
      %v3254 = vadd.f32 %v2941, %v3253
      %v3255 = vpop.f32.mrb[0].mxu0
      %v3256 = vadd.f32 %v2943, %v3255
      %v3257 = vpop.f32.mrb[0].mxu0
      %v3258 = vadd.f32 %v2945, %v3257
      %v3259 = vpop.f32.mrb[0].mxu0
      %v3260 = vadd.f32 %v2947, %v3259
      %3261 = vmatprep.mubr.bf16.mxu0 %v1602
      %3262 = vmatmul.mubr.bf16.gmra.mrb[0].mxu0 %v1601
      %v3263 = vpop.f32.mrb[0].mxu0
      %v3264 = vadd.f32 %v2951, %v3263
      %v3265 = vpop.f32.mrb[0].mxu0
      %v3266 = vadd.f32 %v2953, %v3265
      %v3267 = vpop.f32.mrb[0].mxu0
      %v3268 = vadd.f32 %v2955, %v3267
      %v3269 = vpop.f32.mrb[0].mxu0
      %v3270 = vadd.f32 %v2957, %v3269
      %3271 = vmatprep.mubr.bf16.mxu0 %v1609
      %3272 = vmatmul.mubr.bf16.gmra.mrb[0].mxu0 %v1608
      %v3273 = vpop.f32.mrb[0].mxu0
      %v3274 = vadd.f32 %v2961, %v3273
      %v3275 = vpop.f32.mrb[0].mxu0
      %v3276 = vadd.f32 %v2963, %v3275
      %v3277 = vpop.f32.mrb[0].mxu0
      %v3278 = vadd.f32 %v2965, %v3277
      %v3279 = vpop.f32.mrb[0].mxu0
      %v3280 = vadd.f32 %v2967, %v3279
      %3281 = vmatprep.mubr.bf16.mxu0 %v1616
      %3282 = vmatmul.mubr.bf16.gmra.mrb[0].mxu0 %v1615
      %v3283 = vpop.f32.mrb[0].mxu0
      %v3284 = vadd.f32 %v2971, %v3283
      %v3285 = vpop.f32.mrb[0].mxu0
      %v3286 = vadd.f32 %v2973, %v3285
      %v3287 = vpop.f32.mrb[0].mxu0
      %v3288 = vadd.f32 %v2975, %v3287
      %v3289 = vpop.f32.mrb[0].mxu0
      %v3290 = vadd.f32 %v2977, %v3289
      %3291 = vmatprep.mubr.bf16.mxu0 %v1623
      %3292 = vmatmul.mubr.bf16.gmra.mrb[0].mxu0 %v1622
      %v3293 = vpop.f32.mrb[0].mxu0
      %v3294 = vadd.f32 %v2981, %v3293
      %v3295 = vpop.f32.mrb[0].mxu0
      %v3296 = vadd.f32 %v2983, %v3295
      %v3297 = vpop.f32.mrb[0].mxu0
      %v3298 = vadd.f32 %v2985, %v3297
      %v3299 = vpop.f32.mrb[0].mxu0
      %v3300 = vadd.f32 %v2987, %v3299
      %3301 = vmatprep.mubr.bf16.mxu0 %v1630
      %3302 = vmatmul.mubr.bf16.gmra.mrb[0].mxu0 %v1629
      %v3303 = vpop.f32.mrb[0].mxu0
      %v3304 = vadd.f32 %v2991, %v3303
      %v3305 = vpop.f32.mrb[0].mxu0
      %v3306 = vadd.f32 %v2993, %v3305
      %v3307 = vpop.f32.mrb[0].mxu0
      %v3308 = vadd.f32 %v2995, %v3307
      %v3309 = vpop.f32.mrb[0].mxu0
      %v3310 = vadd.f32 %v2997, %v3309
      %3311 = vmatprep.mubr.bf16.mxu0 %v1637
      %3312 = vmatmul.mubr.bf16.gmra.mrb[0].mxu0 %v1636
      %v3313 = vpop.f32.mrb[0].mxu0
      %v3314 = vadd.f32 %v3001, %v3313
      %v3315 = vpop.f32.mrb[0].mxu0
      %v3316 = vadd.f32 %v3003, %v3315
      %v3317 = vpop.f32.mrb[0].mxu0
      %v3318 = vadd.f32 %v3005, %v3317
      %v3319 = vpop.f32.mrb[0].mxu0
      %v3320 = vadd.f32 %v3007, %v3319
      %3321 = vmatprep.mubr.bf16.mxu0 %v1644
      %3322 = vmatmul.mubr.bf16.gmra.mrb[0].mxu0 %v1643
      %v3323 = vpop.f32.mrb[0].mxu0
      %v3324 = vadd.f32 %v3011, %v3323
      %v3325 = vpop.f32.mrb[0].mxu0
      %v3326 = vadd.f32 %v3013, %v3325
      %v3327 = vpop.f32.mrb[0].mxu0
      %v3328 = vadd.f32 %v3015, %v3327
      %v3329 = vpop.f32.mrb[0].mxu0
      %v3330 = vadd.f32 %v3017, %v3329
      %3331 = vmatprep.mubr.bf16.mxu0 %v1651
      %3332 = vmatmul.mubr.bf16.gmra.mrb[0].mxu0 %v1650
      %v3333 = vpop.f32.mrb[0].mxu0
      %v3334 = vadd.f32 %v3021, %v3333
      %v3335 = vpop.f32.mrb[0].mxu0
      %v3336 = vadd.f32 %v3023, %v3335
      %v3337 = vpop.f32.mrb[0].mxu0
      %v3338 = vadd.f32 %v3025, %v3337
      %v3339 = vpop.f32.mrb[0].mxu0
      %v3340 = vadd.f32 %v3027, %v3339
      %3341 = vmatprep.mubr.bf16.mxu0 %v1658
      %3342 = vmatmul.mubr.bf16.gmra.mrb[0].mxu0 %v1657
      %v3343 = vpop.f32.mrb[0].mxu0
      %v3344 = vadd.f32 %v3031, %v3343
      %v3345 = vpop.f32.mrb[0].mxu0
      %v3346 = vadd.f32 %v3033, %v3345
      %v3347 = vpop.f32.mrb[0].mxu0
      %v3348 = vadd.f32 %v3035, %v3347
      %v3349 = vpop.f32.mrb[0].mxu0
      %v3350 = vadd.f32 %v3037, %v3349
      %3351 = vmatprep.mubr.bf16.mxu0 %v1665
      %3352 = vmatmul.mubr.bf16.gmra.mrb[0].mxu0 %v1664
      %v3353 = vpop.f32.mrb[0].mxu0
      %v3354 = vadd.f32 %v3041, %v3353
      %v3355 = vpop.f32.mrb[0].mxu0
      %v3356 = vadd.f32 %v3043, %v3355
      %v3357 = vpop.f32.mrb[0].mxu0
      %v3358 = vadd.f32 %v3045, %v3357
      %v3359 = vpop.f32.mrb[0].mxu0
      %v3360 = vadd.f32 %v3047, %v3359
      %3361 = vdwg.mxu0
      %3362 = vmatprep.subr.bf16.mxu0 %v2296
      %3363 = vmatpush1.bf16.msra.mxu0 %v2295
      %3364 = vmatprep.subr.bf16.mxu0 %v2298
      %3365 = vmatpush1.bf16.msra.mxu0 %v2297
      %3366 = vmatprep.subr.bf16.mxu0 %v2300
      %3367 = vmatpush1.bf16.msra.mxu0 %v2299
      %3368 = vmatprep.subr.bf16.mxu0 %v2302
      %3369 = vmatpush1.bf16.msra.mxu0 %v2301
      %3370 = vmatprep.subr.bf16.mxu0 %v2304
      %3371 = vmatpush1.bf16.msra.mxu0 %v2303
      %3372 = vmatprep.subr.bf16.mxu0 %v2306
      %3373 = vmatpush1.bf16.msra.mxu0 %v2305
      %3374 = vmatprep.subr.bf16.mxu0 %v2308
      %3375 = vmatpush1.bf16.msra.mxu0 %v2307
      %3376 = vmatprep.subr.bf16.mxu0 %v2310
      %3377 = vmatpush1.bf16.msra.mxu0 %v2309
      %3378 = vmatprep.subr.bf16.mxu0 0
      %3379 = vmatpush1.bf16.msra.mxu0 0
      %3380 = vmatprep.subr.bf16.mxu0 0
      %3381 = vmatpush1.bf16.msra.mxu0 0
      %3382 = vmatprep.subr.bf16.mxu0 0
      %3383 = vmatpush1.bf16.msra.mxu0 0
      %3384 = vmatprep.subr.bf16.mxu0 0
      %3385 = vmatpush1.bf16.msra.mxu0 0
      %3386 = vmatprep.subr.bf16.mxu0 0
      %3387 = vmatpush1.bf16.msra.mxu0 0
      %3388 = vmatprep.subr.bf16.mxu0 0
      %3389 = vmatpush1.bf16.msra.mxu0 0
      %3390 = vmatprep.subr.bf16.mxu0 0
      %3391 = vmatpush1.bf16.msra.mxu0 0
      %3392 = vmatprep.subr.bf16.mxu0 0
      %3393 = vmatpush1.bf16.msra.mxu0 0
      %3394 = vmatprep.mubr.bf16.mxu0 0
      %3395 = vmatmul.mubr.bf16.gmra.mrb[0].mxu0 %v1477
      %v3396 = vpop.f32.mrb[0].mxu0
      %v3397 = vadd.f32 %v3084, %v3396
      %v3398 = vpop.f32.mrb[0].mxu0
      %v3399 = vadd.f32 %v3086, %v3398
      %v3400 = vpop.f32.mrb[0].mxu0
      %v3401 = vadd.f32 %v3088, %v3400
      %v3402 = vpop.f32.mrb[0].mxu0
      %v3403 = vadd.f32 %v3090, %v3402
      %3404 = vmatprep.mubr.bf16.mxu0 0
      %3405 = vmatmul.mubr.bf16.gmra.mrb[0].mxu0 %v1484
      %v3406 = vpop.f32.mrb[0].mxu0
      %v3407 = vadd.f32 %v3094, %v3406
      %v3408 = vpop.f32.mrb[0].mxu0
      %v3409 = vadd.f32 %v3096, %v3408
      %v3410 = vpop.f32.mrb[0].mxu0
      %v3411 = vadd.f32 %v3098, %v3410
      %v3412 = vpop.f32.mrb[0].mxu0
      %v3413 = vadd.f32 %v3100, %v3412
      %3414 = vmatprep.mubr.bf16.mxu0 0
      %3415 = vmatmul.mubr.bf16.gmra.mrb[0].mxu0 %v1491
      %v3416 = vpop.f32.mrb[0].mxu0
      %v3417 = vadd.f32 %v3104, %v3416
      %v3418 = vpop.f32.mrb[0].mxu0
      %v3419 = vadd.f32 %v3106, %v3418
      %v3420 = vpop.f32.mrb[0].mxu0
      %v3421 = vadd.f32 %v3108, %v3420
      %v3422 = vpop.f32.mrb[0].mxu0
      %v3423 = vadd.f32 %v3110, %v3422
      %3424 = vmatprep.mubr.bf16.mxu0 0
      %3425 = vmatmul.mubr.bf16.gmra.mrb[0].mxu0 %v1498
      %v3426 = vpop.f32.mrb[0].mxu0
      %v3427 = vadd.f32 %v3114, %v3426
      %v3428 = vpop.f32.mrb[0].mxu0
      %v3429 = vadd.f32 %v3116, %v3428
      %v3430 = vpop.f32.mrb[0].mxu0
      %v3431 = vadd.f32 %v3118, %v3430
      %v3432 = vpop.f32.mrb[0].mxu0
      %v3433 = vadd.f32 %v3120, %v3432
      %3434 = vmatprep.mubr.bf16.mxu0 0
      %3435 = vmatmul.mubr.bf16.gmra.mrb[0].mxu0 %v1505
      %v3436 = vpop.f32.mrb[0].mxu0
      %v3437 = vadd.f32 %v3124, %v3436
      %v3438 = vpop.f32.mrb[0].mxu0
      %v3439 = vadd.f32 %v3126, %v3438
      %v3440 = vpop.f32.mrb[0].mxu0
      %v3441 = vadd.f32 %v3128, %v3440
      %v3442 = vpop.f32.mrb[0].mxu0
      %v3443 = vadd.f32 %v3130, %v3442
      %3444 = vmatprep.mubr.bf16.mxu0 0
      %3445 = vmatmul.mubr.bf16.gmra.mrb[0].mxu0 %v1512
      %v3446 = vpop.f32.mrb[0].mxu0
      %v3447 = vadd.f32 %v3134, %v3446
      %v3448 = vpop.f32.mrb[0].mxu0
      %v3449 = vadd.f32 %v3136, %v3448
      %v3450 = vpop.f32.mrb[0].mxu0
      %v3451 = vadd.f32 %v3138, %v3450
      %v3452 = vpop.f32.mrb[0].mxu0
      %v3453 = vadd.f32 %v3140, %v3452
      %3454 = vmatprep.mubr.bf16.mxu0 0
      %3455 = vmatmul.mubr.bf16.gmra.mrb[0].mxu0 %v1519
      %v3456 = vpop.f32.mrb[0].mxu0
      %v3457 = vadd.f32 %v3144, %v3456
      %v3458 = vpop.f32.mrb[0].mxu0
      %v3459 = vadd.f32 %v3146, %v3458
      %v3460 = vpop.f32.mrb[0].mxu0
      %v3461 = vadd.f32 %v3148, %v3460
      %v3462 = vpop.f32.mrb[0].mxu0
      %v3463 = vadd.f32 %v3150, %v3462
      %3464 = vmatprep.mubr.bf16.mxu0 0
      %3465 = vmatmul.mubr.bf16.gmra.mrb[0].mxu0 %v1526
      %v3466 = vpop.f32.mrb[0].mxu0
      %v3467 = vadd.f32 %v3154, %v3466
      %v3468 = vpop.f32.mrb[0].mxu0
      %v3469 = vadd.f32 %v3156, %v3468
      %v3470 = vpop.f32.mrb[0].mxu0
      %v3471 = vadd.f32 %v3158, %v3470
      %v3472 = vpop.f32.mrb[0].mxu0
      %v3473 = vadd.f32 %v3160, %v3472
      %3474 = vmatprep.mubr.bf16.mxu0 0
      %3475 = vmatmul.mubr.bf16.gmra.mrb[0].mxu0 %v1533
      %v3476 = vpop.f32.mrb[0].mxu0
      %v3477 = vadd.f32 %v3164, %v3476
      %v3478 = vpop.f32.mrb[0].mxu0
      %v3479 = vadd.f32 %v3166, %v3478
      %v3480 = vpop.f32.mrb[0].mxu0
      %v3481 = vadd.f32 %v3168, %v3480
      %v3482 = vpop.f32.mrb[0].mxu0
      %v3483 = vadd.f32 %v3170, %v3482
      %3484 = vmatprep.mubr.bf16.mxu0 0
      %3485 = vmatmul.mubr.bf16.gmra.mrb[0].mxu0 %v1540
      %v3486 = vpop.f32.mrb[0].mxu0
      %v3487 = vadd.f32 %v3174, %v3486
      %v3488 = vpop.f32.mrb[0].mxu0
      %v3489 = vadd.f32 %v3176, %v3488
      %v3490 = vpop.f32.mrb[0].mxu0
      %v3491 = vadd.f32 %v3178, %v3490
      %v3492 = vpop.f32.mrb[0].mxu0
      %v3493 = vadd.f32 %v3180, %v3492
      %3494 = vmatprep.mubr.bf16.mxu0 0
      %3495 = vmatmul.mubr.bf16.gmra.mrb[0].mxu0 %v1547
      %v3496 = vpop.f32.mrb[0].mxu0
      %v3497 = vadd.f32 %v3184, %v3496
      %v3498 = vpop.f32.mrb[0].mxu0
      %v3499 = vadd.f32 %v3186, %v3498
      %v3500 = vpop.f32.mrb[0].mxu0
      %v3501 = vadd.f32 %v3188, %v3500
      %v3502 = vpop.f32.mrb[0].mxu0
      %v3503 = vadd.f32 %v3190, %v3502
      %3504 = vmatprep.mubr.bf16.mxu0 0
      %3505 = vmatmul.mubr.bf16.gmra.mrb[0].mxu0 %v1554
      %v3506 = vpop.f32.mrb[0].mxu0
      %v3507 = vadd.f32 %v3194, %v3506
      %v3508 = vpop.f32.mrb[0].mxu0
      %v3509 = vadd.f32 %v3196, %v3508
      %v3510 = vpop.f32.mrb[0].mxu0
      %v3511 = vadd.f32 %v3198, %v3510
      %v3512 = vpop.f32.mrb[0].mxu0
      %v3513 = vadd.f32 %v3200, %v3512
      %3514 = vmatprep.mubr.bf16.mxu0 0
      %3515 = vmatmul.mubr.bf16.gmra.mrb[0].mxu0 %v1561
      %v3516 = vpop.f32.mrb[0].mxu0
      %v3517 = vadd.f32 %v3204, %v3516
      %v3518 = vpop.f32.mrb[0].mxu0
      %v3519 = vadd.f32 %v3206, %v3518
      %v3520 = vpop.f32.mrb[0].mxu0
      %v3521 = vadd.f32 %v3208, %v3520
      %v3522 = vpop.f32.mrb[0].mxu0
      %v3523 = vadd.f32 %v3210, %v3522
      %3524 = vmatprep.mubr.bf16.mxu0 0
      %3525 = vmatmul.mubr.bf16.gmra.mrb[0].mxu0 %v1568
      %v3526 = vpop.f32.mrb[0].mxu0
      %v3527 = vadd.f32 %v3214, %v3526
      %v3528 = vpop.f32.mrb[0].mxu0
      %v3529 = vadd.f32 %v3216, %v3528
      %v3530 = vpop.f32.mrb[0].mxu0
      %v3531 = vadd.f32 %v3218, %v3530
      %v3532 = vpop.f32.mrb[0].mxu0
      %v3533 = vadd.f32 %v3220, %v3532
      %3534 = vmatprep.mubr.bf16.mxu0 0
      %3535 = vmatmul.mubr.bf16.gmra.mrb[0].mxu0 %v1575
      %v3536 = vpop.f32.mrb[0].mxu0
      %v3537 = vadd.f32 %v3224, %v3536
      %v3538 = vpop.f32.mrb[0].mxu0
      %v3539 = vadd.f32 %v3226, %v3538
      %v3540 = vpop.f32.mrb[0].mxu0
      %v3541 = vadd.f32 %v3228, %v3540
      %v3542 = vpop.f32.mrb[0].mxu0
      %v3543 = vadd.f32 %v3230, %v3542
      %3544 = vmatprep.mubr.bf16.mxu0 0
      %3545 = vmatmul.mubr.bf16.gmra.mrb[0].mxu0 %v1582
      %v3546 = vpop.f32.mrb[0].mxu0
      %v3547 = vadd.f32 %v3234, %v3546
      %v3548 = vpop.f32.mrb[0].mxu0
      %v3549 = vadd.f32 %v3236, %v3548
      %v3550 = vpop.f32.mrb[0].mxu0
      %v3551 = vadd.f32 %v3238, %v3550
      %v3552 = vpop.f32.mrb[0].mxu0
      %v3553 = vadd.f32 %v3240, %v3552
      %3554 = vmatprep.mubr.bf16.mxu0 0
      %3555 = vmatmul.mubr.bf16.gmra.mrb[0].mxu0 %v1589
      %v3556 = vpop.f32.mrb[0].mxu0
      %v3557 = vadd.f32 %v3244, %v3556
      %v3558 = vpop.f32.mrb[0].mxu0
      %v3559 = vadd.f32 %v3246, %v3558
      %v3560 = vpop.f32.mrb[0].mxu0
      %v3561 = vadd.f32 %v3248, %v3560
      %v3562 = vpop.f32.mrb[0].mxu0
      %v3563 = vadd.f32 %v3250, %v3562
      %3564 = vmatprep.mubr.bf16.mxu0 0
      %3565 = vmatmul.mubr.bf16.gmra.mrb[0].mxu0 %v1596
      %v3566 = vpop.f32.mrb[0].mxu0
      %v3567 = vadd.f32 %v3254, %v3566
      %v3568 = vpop.f32.mrb[0].mxu0
      %v3569 = vadd.f32 %v3256, %v3568
      %v3570 = vpop.f32.mrb[0].mxu0
      %v3571 = vadd.f32 %v3258, %v3570
      %v3572 = vpop.f32.mrb[0].mxu0
      %v3573 = vadd.f32 %v3260, %v3572
      %3574 = vmatprep.mubr.bf16.mxu0 0
      %3575 = vmatmul.mubr.bf16.gmra.mrb[0].mxu0 %v1603
      %v3576 = vpop.f32.mrb[0].mxu0
      %v3577 = vadd.f32 %v3264, %v3576
      %v3578 = vpop.f32.mrb[0].mxu0
      %v3579 = vadd.f32 %v3266, %v3578
      %v3580 = vpop.f32.mrb[0].mxu0
      %v3581 = vadd.f32 %v3268, %v3580
      %v3582 = vpop.f32.mrb[0].mxu0
      %v3583 = vadd.f32 %v3270, %v3582
      %3584 = vmatprep.mubr.bf16.mxu0 0
      %3585 = vmatmul.mubr.bf16.gmra.mrb[0].mxu0 %v1610
      %v3586 = vpop.f32.mrb[0].mxu0
      %v3587 = vadd.f32 %v3274, %v3586
      %v3588 = vpop.f32.mrb[0].mxu0
      %v3589 = vadd.f32 %v3276, %v3588
      %v3590 = vpop.f32.mrb[0].mxu0
      %v3591 = vadd.f32 %v3278, %v3590
      %v3592 = vpop.f32.mrb[0].mxu0
      %v3593 = vadd.f32 %v3280, %v3592
      %3594 = vmatprep.mubr.bf16.mxu0 0
      %3595 = vmatmul.mubr.bf16.gmra.mrb[0].mxu0 %v1617
      %v3596 = vpop.f32.mrb[0].mxu0
      %v3597 = vadd.f32 %v3284, %v3596
      %v3598 = vpop.f32.mrb[0].mxu0
      %v3599 = vadd.f32 %v3286, %v3598
      %v3600 = vpop.f32.mrb[0].mxu0
      %v3601 = vadd.f32 %v3288, %v3600
      %v3602 = vpop.f32.mrb[0].mxu0
      %v3603 = vadd.f32 %v3290, %v3602
      %3604 = vmatprep.mubr.bf16.mxu0 0
      %3605 = vmatmul.mubr.bf16.gmra.mrb[0].mxu0 %v1624
      %v3606 = vpop.f32.mrb[0].mxu0
      %v3607 = vadd.f32 %v3294, %v3606
      %v3608 = vpop.f32.mrb[0].mxu0
      %v3609 = vadd.f32 %v3296, %v3608
      %v3610 = vpop.f32.mrb[0].mxu0
      %v3611 = vadd.f32 %v3298, %v3610
      %v3612 = vpop.f32.mrb[0].mxu0
      %v3613 = vadd.f32 %v3300, %v3612
      %3614 = vmatprep.mubr.bf16.mxu0 0
      %3615 = vmatmul.mubr.bf16.gmra.mrb[0].mxu0 %v1631
      %v3616 = vpop.f32.mrb[0].mxu0
      %v3617 = vadd.f32 %v3304, %v3616
      %v3618 = vpop.f32.mrb[0].mxu0
      %v3619 = vadd.f32 %v3306, %v3618
      %v3620 = vpop.f32.mrb[0].mxu0
      %v3621 = vadd.f32 %v3308, %v3620
      %v3622 = vpop.f32.mrb[0].mxu0
      %v3623 = vadd.f32 %v3310, %v3622
      %3624 = vmatprep.mubr.bf16.mxu0 0
      %3625 = vmatmul.mubr.bf16.gmra.mrb[0].mxu0 %v1638
      %v3626 = vpop.f32.mrb[0].mxu0
      %v3627 = vadd.f32 %v3314, %v3626
      %v3628 = vpop.f32.mrb[0].mxu0
      %v3629 = vadd.f32 %v3316, %v3628
      %v3630 = vpop.f32.mrb[0].mxu0
      %v3631 = vadd.f32 %v3318, %v3630
      %v3632 = vpop.f32.mrb[0].mxu0
      %v3633 = vadd.f32 %v3320, %v3632
      %3634 = vmatprep.mubr.bf16.mxu0 0
      %3635 = vmatmul.mubr.bf16.gmra.mrb[0].mxu0 %v1645
      %v3636 = vpop.f32.mrb[0].mxu0
      %v3637 = vadd.f32 %v3324, %v3636
      %v3638 = vpop.f32.mrb[0].mxu0
      %v3639 = vadd.f32 %v3326, %v3638
      %v3640 = vpop.f32.mrb[0].mxu0
      %v3641 = vadd.f32 %v3328, %v3640
      %v3642 = vpop.f32.mrb[0].mxu0
      %v3643 = vadd.f32 %v3330, %v3642
      %3644 = vmatprep.mubr.bf16.mxu0 0
      %3645 = vmatmul.mubr.bf16.gmra.mrb[0].mxu0 %v1652
      %v3646 = vpop.f32.mrb[0].mxu0
      %v3647 = vadd.f32 %v3334, %v3646
      %v3648 = vpop.f32.mrb[0].mxu0
      %v3649 = vadd.f32 %v3336, %v3648
      %v3650 = vpop.f32.mrb[0].mxu0
      %v3651 = vadd.f32 %v3338, %v3650
      %v3652 = vpop.f32.mrb[0].mxu0
      %v3653 = vadd.f32 %v3340, %v3652
      %3654 = vmatprep.mubr.bf16.mxu0 0
      %3655 = vmatmul.mubr.bf16.gmra.mrb[0].mxu0 %v1659
      %v3656 = vpop.f32.mrb[0].mxu0
      %v3657 = vadd.f32 %v3344, %v3656
      %v3658 = vpop.f32.mrb[0].mxu0
      %v3659 = vadd.f32 %v3346, %v3658
      %v3660 = vpop.f32.mrb[0].mxu0
      %v3661 = vadd.f32 %v3348, %v3660
      %v3662 = vpop.f32.mrb[0].mxu0
      %v3663 = vadd.f32 %v3350, %v3662
      %3664 = vmatprep.mubr.bf16.mxu0 0
      %3665 = vmatmul.mubr.bf16.gmra.mrb[0].mxu0 %v1666
      %v3666 = vpop.f32.mrb[0].mxu0
      %v3667 = vadd.f32 %v3354, %v3666
      %v3668 = vpop.f32.mrb[0].mxu0
      %v3669 = vadd.f32 %v3356, %v3668
      %v3670 = vpop.f32.mrb[0].mxu0
      %v3671 = vadd.f32 %v3358, %v3670
      %v3672 = vpop.f32.mrb[0].mxu0
      %v3673 = vadd.f32 %v3360, %v3672
      %3674 = vdwg.mxu0
      %3675 = vst [vmem:[%s177] sm:$0xff] %v3397
      %vm3676 = vcmask 556032
      %3677 = vst.msk [vmem:[%s177 + $0x8] sm:$0xff] %vm3676, %v3399
      %3678 = vst [vmem:[%s177 + $0x10] sm:$0xff] %v3401
      %3679 = vst.msk [vmem:[%s177 + $0x18] sm:$0xff] %vm3676, %v3403
      %3680 = vst [vmem:[%s177 + $0x20] sm:$0xff] %v3407
      %3681 = vst.msk [vmem:[%s177 + $0x28] sm:$0xff] %vm3676, %v3409
      %3682 = vst [vmem:[%s177 + $0x30] sm:$0xff] %v3411
      %3683 = vst.msk [vmem:[%s177 + $0x38] sm:$0xff] %vm3676, %v3413
      %3684 = vst [vmem:[%s177 + $0x40] sm:$0xff] %v3417
      %3685 = vst.msk [vmem:[%s177 + $0x48] sm:$0xff] %vm3676, %v3419
      %3686 = vst [vmem:[%s177 + $0x50] sm:$0xff] %v3421
      %3687 = vst.msk [vmem:[%s177 + $0x58] sm:$0xff] %vm3676, %v3423
      %3688 = vst [vmem:[%s177 + $0x60] sm:$0xff] %v3427
      %3689 = vst.msk [vmem:[%s177 + $0x68] sm:$0xff] %vm3676, %v3429
      %3690 = vst [vmem:[%s177 + $0x70] sm:$0xff] %v3431
      %3691 = vst.msk [vmem:[%s177 + $0x78] sm:$0xff] %vm3676, %v3433
      %3692 = vst [vmem:[%s177 + $0x80] sm:$0xff] %v3437
      %3693 = vst.msk [vmem:[%s177 + $0x88] sm:$0xff] %vm3676, %v3439
      %3694 = vst [vmem:[%s177 + $0x90] sm:$0xff] %v3441
      %3695 = vst.msk [vmem:[%s177 + $0x98] sm:$0xff] %vm3676, %v3443
      %3696 = vst [vmem:[%s177 + $0xa0] sm:$0xff] %v3447
      %3697 = vst.msk [vmem:[%s177 + $0xa8] sm:$0xff] %vm3676, %v3449
      %3698 = vst [vmem:[%s177 + $0xb0] sm:$0xff] %v3451
      %3699 = vst.msk [vmem:[%s177 + $0xb8] sm:$0xff] %vm3676, %v3453
      %3700 = vst [vmem:[%s177 + $0xc0] sm:$0xff] %v3457
      %3701 = vst.msk [vmem:[%s177 + $0xc8] sm:$0xff] %vm3676, %v3459
      %3702 = vst [vmem:[%s177 + $0xd0] sm:$0xff] %v3461
      %3703 = vst.msk [vmem:[%s177 + $0xd8] sm:$0xff] %vm3676, %v3463
      %3704 = vst [vmem:[%s177 + $0xe0] sm:$0xff] %v3467
      %3705 = vst.msk [vmem:[%s177 + $0xe8] sm:$0xff] %vm3676, %v3469
      %3706 = vst [vmem:[%s177 + $0xf0] sm:$0xff] %v3471
      %3707 = vst.msk [vmem:[%s177 + $0xf8] sm:$0xff] %vm3676, %v3473
      %3708 = vst [vmem:[%s177 + $0x100] sm:$0xff] %v3477
      %3709 = vst.msk [vmem:[%s177 + $0x108] sm:$0xff] %vm3676, %v3479
      %3710 = vst [vmem:[%s177 + $0x110] sm:$0xff] %v3481
      %3711 = vst.msk [vmem:[%s177 + $0x118] sm:$0xff] %vm3676, %v3483
      %3712 = vst [vmem:[%s177 + $0x120] sm:$0xff] %v3487
      %3713 = vst.msk [vmem:[%s177 + $0x128] sm:$0xff] %vm3676, %v3489
      %3714 = vst [vmem:[%s177 + $0x130] sm:$0xff] %v3491
      %3715 = vst.msk [vmem:[%s177 + $0x138] sm:$0xff] %vm3676, %v3493
      %3716 = vst [vmem:[%s177 + $0x140] sm:$0xff] %v3497
      %3717 = vst.msk [vmem:[%s177 + $0x148] sm:$0xff] %vm3676, %v3499
      %3718 = vst [vmem:[%s177 + $0x150] sm:$0xff] %v3501
      %3719 = vst.msk [vmem:[%s177 + $0x158] sm:$0xff] %vm3676, %v3503
      %3720 = vst [vmem:[%s177 + $0x160] sm:$0xff] %v3507
      %3721 = vst.msk [vmem:[%s177 + $0x168] sm:$0xff] %vm3676, %v3509
      %3722 = vst [vmem:[%s177 + $0x170] sm:$0xff] %v3511
      %3723 = vst.msk [vmem:[%s177 + $0x178] sm:$0xff] %vm3676, %v3513
      %3724 = vst [vmem:[%s177 + $0x180] sm:$0xff] %v3517
      %3725 = vst.msk [vmem:[%s177 + $0x188] sm:$0xff] %vm3676, %v3519
      %3726 = vst [vmem:[%s177 + $0x190] sm:$0xff] %v3521
      %3727 = vst.msk [vmem:[%s177 + $0x198] sm:$0xff] %vm3676, %v3523
      %3728 = vst [vmem:[%s177 + $0x1a0] sm:$0xff] %v3527
      %3729 = vst.msk [vmem:[%s177 + $0x1a8] sm:$0xff] %vm3676, %v3529
      %3730 = vst [vmem:[%s177 + $0x1b0] sm:$0xff] %v3531
      %3731 = vst.msk [vmem:[%s177 + $0x1b8] sm:$0xff] %vm3676, %v3533
      %3732 = vst [vmem:[%s177 + $0x1c0] sm:$0xff] %v3537
      %3733 = vst.msk [vmem:[%s177 + $0x1c8] sm:$0xff] %vm3676, %v3539
      %3734 = vst [vmem:[%s177 + $0x1d0] sm:$0xff] %v3541
      %3735 = vst.msk [vmem:[%s177 + $0x1d8] sm:$0xff] %vm3676, %v3543
      %3736 = vst [vmem:[%s177 + $0x1e0] sm:$0xff] %v3547
      %3737 = vst.msk [vmem:[%s177 + $0x1e8] sm:$0xff] %vm3676, %v3549
      %3738 = vst [vmem:[%s177 + $0x1f0] sm:$0xff] %v3551
      %3739 = vst.msk [vmem:[%s177 + $0x1f8] sm:$0xff] %vm3676, %v3553
      %3740 = vst [vmem:[%s177 + $0x200] sm:$0xff] %v3557
      %3741 = vst.msk [vmem:[%s177 + $0x208] sm:$0xff] %vm3676, %v3559
      %3742 = vst [vmem:[%s177 + $0x210] sm:$0xff] %v3561
      %3743 = vst.msk [vmem:[%s177 + $0x218] sm:$0xff] %vm3676, %v3563
      %3744 = vst [vmem:[%s177 + $0x220] sm:$0xff] %v3567
      %3745 = vst.msk [vmem:[%s177 + $0x228] sm:$0xff] %vm3676, %v3569
      %3746 = vst [vmem:[%s177 + $0x230] sm:$0xff] %v3571
      %3747 = vst.msk [vmem:[%s177 + $0x238] sm:$0xff] %vm3676, %v3573
      %3748 = vst [vmem:[%s177 + $0x240] sm:$0xff] %v3577
      %3749 = vst.msk [vmem:[%s177 + $0x248] sm:$0xff] %vm3676, %v3579
      %3750 = vst [vmem:[%s177 + $0x250] sm:$0xff] %v3581
      %3751 = vst.msk [vmem:[%s177 + $0x258] sm:$0xff] %vm3676, %v3583
      %3752 = vst [vmem:[%s177 + $0x260] sm:$0xff] %v3587
      %3753 = vst.msk [vmem:[%s177 + $0x268] sm:$0xff] %vm3676, %v3589
      %3754 = vst [vmem:[%s177 + $0x270] sm:$0xff] %v3591
      %3755 = vst.msk [vmem:[%s177 + $0x278] sm:$0xff] %vm3676, %v3593
      %3756 = vst [vmem:[%s177 + $0x280] sm:$0xff] %v3597
      %3757 = vst.msk [vmem:[%s177 + $0x288] sm:$0xff] %vm3676, %v3599
      %3758 = vst [vmem:[%s177 + $0x290] sm:$0xff] %v3601
      %3759 = vst.msk [vmem:[%s177 + $0x298] sm:$0xff] %vm3676, %v3603
      %3760 = vst [vmem:[%s177 + $0x2a0] sm:$0xff] %v3607
      %3761 = vst.msk [vmem:[%s177 + $0x2a8] sm:$0xff] %vm3676, %v3609
      %3762 = vst [vmem:[%s177 + $0x2b0] sm:$0xff] %v3611
      %3763 = vst.msk [vmem:[%s177 + $0x2b8] sm:$0xff] %vm3676, %v3613
      %3764 = vst [vmem:[%s177 + $0x2c0] sm:$0xff] %v3617
      %3765 = vst.msk [vmem:[%s177 + $0x2c8] sm:$0xff] %vm3676, %v3619
      %3766 = vst [vmem:[%s177 + $0x2d0] sm:$0xff] %v3621
      %3767 = vst.msk [vmem:[%s177 + $0x2d8] sm:$0xff] %vm3676, %v3623
      %3768 = vst [vmem:[%s177 + $0x2e0] sm:$0xff] %v3627
      %3769 = vst.msk [vmem:[%s177 + $0x2e8] sm:$0xff] %vm3676, %v3629
      %3770 = vst [vmem:[%s177 + $0x2f0] sm:$0xff] %v3631
      %3771 = vst.msk [vmem:[%s177 + $0x2f8] sm:$0xff] %vm3676, %v3633
      %3772 = vst [vmem:[%s177 + $0x300] sm:$0xff] %v3637
      %3773 = vst.msk [vmem:[%s177 + $0x308] sm:$0xff] %vm3676, %v3639
      %3774 = vst [vmem:[%s177 + $0x310] sm:$0xff] %v3641
      %3775 = vst.msk [vmem:[%s177 + $0x318] sm:$0xff] %vm3676, %v3643
      %3776 = vst [vmem:[%s177 + $0x320] sm:$0xff] %v3647
      %3777 = vst.msk [vmem:[%s177 + $0x328] sm:$0xff] %vm3676, %v3649
      %3778 = vst [vmem:[%s177 + $0x330] sm:$0xff] %v3651
      %3779 = vst.msk [vmem:[%s177 + $0x338] sm:$0xff] %vm3676, %v3653
      %3780 = vst [vmem:[%s177 + $0x340] sm:$0xff] %v3657
      %3781 = vst.msk [vmem:[%s177 + $0x348] sm:$0xff] %vm3676, %v3659
      %3782 = vst [vmem:[%s177 + $0x350] sm:$0xff] %v3661
      %3783 = vst.msk [vmem:[%s177 + $0x358] sm:$0xff] %vm3676, %v3663
      %3784 = vst [vmem:[%s177 + $0x360] sm:$0xff] %v3667
      %3785 = vst.msk [vmem:[%s177 + $0x368] sm:$0xff] %vm3676, %v3669
      %3786 = vst [vmem:[%s177 + $0x370] sm:$0xff] %v3671
      %3787 = vst.msk [vmem:[%s177 + $0x378] sm:$0xff] %vm3676, %v3673
      %s3788 = smul.u32 56, %s14
      %p3789 = scmp.lt.s32.totalorder %s3788, 111
      %s3790 = scalar_select %p3789, %s3788, 111
      %s3791 = smul.addr %s3790, 2
      %s3792 = smul.addr %s3791, 8
      %s3793 = scalar_lea.vmem %s3, %s3792
      // Predicated region
      $region33: #{forward.1} parent=31 // pred_check
        %p3794 = pneg %p100
      $region34: #{forward.1} parent=31 // pred_check_branch
        %3796 = sbr.rel (%p3794) target = $region36
      $region35: #{forward.1} parent=31 // pred_region
        %s3797 = smul.u32 56, %s14
      $region36: #{forward.1} parent=31 // pred_fallthru
        _
    $region32: #{forward.1} parent=5 // pred_fallthru
      _
    %p3798 = scmp.le.s32.totalorder 2, %s9
    // Predicated region
    $region37: #{forward.1} parent=5 // pred_check
      %p3799 = pneg %p3798
    $region38: #{forward.1} parent=5 // pred_check_branch
      %3801 = sbr.rel (%p3799) target = $region40
    $region39: #{forward.1} parent=5 // pred_region
      %s3802 = ssub.s32 %s9, 2
      // Predicated region
      $region41: #{forward.1} parent=39 // pred_check
        %p3803 = pneg %p106
      $region42: #{forward.1} parent=39 // pred_check_branch
        %3805 = sbr.rel (%p3803) target = $region44
      $region43: #{forward.1} parent=39 // pred_region
        %s3806 = smul.u32 56, %s15
        %p3807 = scmp.lt.s32.totalorder %s3806, 111
        %s3808 = scalar_select %p3807, %s3806, 111
        %s3809 = smul.addr %s3808, 2
        %s3810 = smul.addr %s3809, 8
        %s3811 = scalar_lea.vmem %s3, %s3810
      $region44: #{forward.1} parent=39 // pred_fallthru
        _
    $region40: #{forward.1} parent=5 // pred_fallthru
      _
  $region6: #{forward.1} parent=0 // loop_footer
    %s13 = sadd.s32 1, %s9
  $region7: #{forward.1} parent=0 // loop_footer_branch
    %8 = sbr.rel target = $region3
  $region8: #{forward.1} parent=0 // loop_exit
    _

</llo_original>
